<compile_context>
chip_gen: v6e
topology: v6e:2x2x1
jax: 0.10.0
libtpu: 0.0.40
codegen_flags: <defaults>
</compile_context>

<pallas_src>
import functools
import math

import jax
import jax.numpy as jnp
import numpy as np
from jax.experimental import pallas as pl
from jax.experimental.pallas import tpu as pltpu

INF = 1.0e9
LN_EPS = 1.0e-5


# --------------------- fused LN + pair-bias + gated MHA ----------------------
def _attention_kernel(qx_ref, kvx_ref, xp_ref, mask_ref,
                      lnw_ref, lnb_ref, wlt_ref,
                      wqg_ref, bg_ref, wkv_ref, wo_ref, bo_ref,
                      o_ref, kv_cache_ref, *,
                      no_heads, c_hidden, pair_transposed,
                      normalize_kv, cache_kv, mxu_dtype):
    H, Ch = no_heads, c_hidden
    HC = H * Ch
    lnw = lnw_ref[...]                                    # [1, C]
    lnb = lnb_ref[...]                                    # [1, C]

    def _ln(x):                                           # f32 VPU work
        mu = jnp.mean(x, axis=-1, keepdims=True)
        xc = x - mu
        var = jnp.mean(xc * xc, axis=-1, keepdims=True)
        return xc * jax.lax.rsqrt(var + LN_EPS) * lnw + lnb

    # --- K/V LayerNorm + wide K|V projection, cached across Q tiles ---
    def _project_kv():
        kvx = kvx_ref[0].astype(jnp.float32)              # [K, C]
        if normalize_kv:
            kvx = _ln(kvx)
        kv = jnp.dot(kvx.astype(mxu_dtype), wkv_ref[...].astype(mxu_dtype),
                     preferred_element_type=jnp.float32)  # [K, 2*HC]
        kv_cache_ref[...] = kv.astype(kv_cache_ref.dtype)

    if cache_kv:
        @pl.when(pl.program_id(1) == 0)
        def _():
            _project_kv()
    else:
        _project_kv()

    kv_all = kv_cache_ref[...]                            # [K, 2*HC], mxu_dtype

    # --- Q-side: LayerNorm prologue + wide Q|G projection ---
    qx = _ln(qx_ref[0].astype(jnp.float32))               # [TQ, C]
    TQ, C = qx.shape
    K = kv_all.shape[0]

    qg = jnp.dot(qx.astype(mxu_dtype), wqg_ref[...].astype(mxu_dtype),
                 preferred_element_type=jnp.float32)      # [TQ, 2*HC]
    q_all = qg[:, :HC].astype(mxu_dtype)                  # 1/sqrt(Ch) folded into wq
    g_all = jax.nn.sigmoid(qg[:, HC:] + bg_ref[...])      # [TQ, HC], f32

    # --- triangle bias (kept in f32) + mask bias ---
    xp2 = xp_ref[0].astype(jnp.float32).reshape(-1, C)    # rows in block-natural order
    tb = jax.lax.dot_general(wlt_ref[...], xp2,
                             (((1,), (1,)), ((), ())),
                             preferred_element_type=jnp.float32)   # [H, TQ*K] / [H, K*TQ]
    tb = tb.reshape((H, K, TQ) if pair_transposed else (H, TQ, K))
    mb = INF * (mask_ref[0].astype(jnp.float32) - 1.0)    # [TQ, K] (pre-transposed host-side)

    # --- per-head scores / softmax / AV (inherently skinny); XLU transpose per head ---
    parts = []
    for h in range(H):                                    # static, head slices of activations
        sl = slice(h * Ch, (h + 1) * Ch)
        q_h = q_all[:, sl]                                # [TQ, Ch]
        k_h = kv_all[:, sl]                               # [K, Ch]
        v_h = kv_all[:, HC + h * Ch:HC + (h + 1) * Ch]    # [K, Ch]
        bias_h = (tb[h].T if pair_transposed else tb[h]) + mb

        s = jax.lax.dot_general(q_h, k_h, (((1,), (1,)), ((), ())),
                                preferred_element_type=jnp.float32)  # [TQ, K]
        s = s + bias_h
        s = s - jnp.max(s, axis=-1, keepdims=True)
        p = jnp.exp(s)
        p = p * pl.reciprocal(jnp.sum(p, axis=-1, keepdims=True), approx=True)
        parts.append(jnp.dot(p.astype(mxu_dtype), v_h,
                             preferred_element_type=jnp.float32))    # [TQ, Ch]

    # --- gate + single wide output projection + residual on LayerNormed input ---
    o_cat = jnp.concatenate(parts, axis=-1) * g_all       # [TQ, HC]
    out = jnp.dot(o_cat.astype(mxu_dtype), wo_ref[...].astype(mxu_dtype),
                  preferred_element_type=jnp.float32) + bo_ref[...]
    o_ref[0] = (qx + out).astype(o_ref.dtype)


def _pick_q_block(Q, K, C, B):
    # Cap the (double-buffered) x_pair tile at ~6 MiB per buffer: v7x-friendly (64 MiB
    # VMEM); v5e/v6e simply end up with the full Q most of the time.
    budget_rows = max(8, (6 << 20) // max(K * C * 4, 1))
    qb = Q
    if Q > budget_rows:
        best = None
        d = 8
        while d <= budget_rows and d <= Q:
            if Q % d == 0:
                best = d
            d += 8
        qb = best if best is not None else Q
    # Guarantee >=2 grid cells when B == 1 so both v7x TensorCores get work.
    if B == 1 and qb == Q and Q % 16 == 0:
        qb = Q // 2
    return qb


def _fused_attn(q_in, kv_in, x_pair, mask_q, ln_w, ln_b, wlt, p, *,
                no_heads, c_hidden, pair_transposed, normalize_kv,
                q_block=None, mxu_dtype=jnp.float32):
    B, Q, C = q_in.shape
    K = kv_in.shape[1]
    H, Ch = no_heads, c_hidden
    HC = H * Ch

    qb = _pick_q_block(Q, K, C, B) if q_block is None else min(q_block, Q)
    if Q % qb != 0 or (qb != Q and qb % 8 != 0):
        qb = Q                                             # fall back to untiled Q
    nq = Q // qb

    # KV cache across Q tiles needs the qi axis sequential per batch element. When the
    # batch axis alone cannot feed both TensorCores (B == 1), trade the cache for a
    # parallel qi axis instead.
    cache_kv = (nq == 1) or (B > 1)
    qi_sem = "arbitrary" if (cache_kv and nq > 1) else "parallel"

    if pair_transposed:     # queries run along the J axis of x_pair
        xp_spec = pl.BlockSpec((1, K, qb, C), lambda b, qi: (b, 0, qi, 0))
    else:                   # queries run along the I axis of x_pair
        xp_spec = pl.BlockSpec((1, qb, K, C), lambda b, qi: (b, qi, 0, 0))

    const2 = lambda b, qi: (0, 0)

    kernel = functools.partial(_attention_kernel, no_heads=H, c_hidden=Ch,
                               pair_transposed=pair_transposed,
                               normalize_kv=normalize_kv, cache_kv=cache_kv,
                               mxu_dtype=mxu_dtype)

    # Explicit VMEM budget: double-buffered tiles + weights + KV scratch + bias work.
    itom = jnp.dtype(mxu_dtype).itemsize
    est = (2 * (qb * K * C * 4 + 2 * qb * C * 4 + qb * K * 4 + K * C * 4)
           + 2 * (2 * C + H * C + 2 * (C * 2 * HC) + HC + HC * C + C) * 4
           + K * 2 * HC * itom
           + (H + 4) * qb * K * 4)
    vmem_limit = int(min(max(2 * est, 32 << 20), 64 << 20))

    # NOTE: constant-index operands (weights, kv) could be single-buffered with
    # pipeline_mode=pl.Buffered(1) to free extra VMEM on v7x; for very long sequences add
    # a K-axis grid with online softmax. Not needed at these sizes.
    return pl.pallas_call(
        kernel,
        out_shape=jax.ShapeDtypeStruct((B, Q, C), jnp.float32),
        grid=(B, nq),
        in_specs=[
            pl.BlockSpec((1, qb, C), lambda b, qi: (b, qi, 0)),   # q input (raw)
            pl.BlockSpec((1, K, C), lambda b, qi: (b, 0, 0)),     # kv input (raw)
            xp_spec,                                              # x_pair tile
            pl.BlockSpec((1, qb, K), lambda b, qi: (b, qi, 0)),   # mask (query-major)
            pl.BlockSpec((1, C), const2),                         # ln_w
            pl.BlockSpec((1, C), const2),                         # ln_b
            pl.BlockSpec((H, C), const2),                         # wl^T
            pl.BlockSpec((C, 2 * HC), const2),                    # [wq/sqrt(Ch) | wg]
            pl.BlockSpec((1, HC), const2),                        # bg
            pl.BlockSpec((C, 2 * HC), const2),                    # [wk | wv]
            pl.BlockSpec((HC, C), const2),                        # wo
            pl.BlockSpec((1, C), const2),                         # bo
        ],
        out_specs=pl.BlockSpec((1, qb, C), lambda b, qi: (b, qi, 0)),
        scratch_shapes=[pltpu.VMEM((K, 2 * HC), mxu_dtype)],      # cached K|V projections
        compiler_params=pltpu.CompilerParams(
            dimension_semantics=("parallel", qi_sem),
            vmem_limit_bytes=vmem_limit),
    )(q_in, kv_in, x_pair, mask_q, ln_w, ln_b, wlt,
      p["wqg"], p["bg"], p["wkv"], p["wo"], p["bo"])


# --------------------------- host-side weight prep ---------------------------
def prepare_params(params, *, no_heads, c_hidden):
    """One-time parameter repack (call OUTSIDE jit): weight concat / transpose / scale."""
    C = params["ln_w"].shape[0]
    H, Ch = no_heads, c_hidden
    HC = H * Ch
    scale = 1.0 / math.sqrt(Ch)

    def prep_mha(p):
        return dict(
            wqg=jnp.concatenate([p["wq"] * scale, p["wg"]], axis=1),   # [C, 2*HC]
            wkv=jnp.concatenate([p["wk"], p["wv"]], axis=1),           # [C, 2*HC]
            bg=p["bg"].reshape(1, HC),
            wo=p["wo"].reshape(HC, C),
            bo=p["bo"].reshape(1, C),
        )

    return dict(
        ln_w=params["ln_w"].reshape(1, C),
        ln_b=params["ln_b"].reshape(1, C),
        wlt=params["wl"].T,                                            # [H, C]
        mha1=prep_mha(params["mha1"]),
        mha2=prep_mha(params["mha2"]),
    )


# ------------------------------ module forward -------------------------------
def bidirectional_triangle_attention(x1, x2, x_pair, mask, prep, *,
                                     no_heads, c_hidden, q_block=None,
                                     mxu_dtype=jnp.float32):
    # mxu_dtype=jnp.bfloat16 is the production setting on v5e/v6e/v7x (f32 accumulate,
    # LN/softmax/sigmoid/bias stay f32).
    # mha_1: x1 attends to x2; LN of both inputs + triangle bias fused in-kernel.
    x1_new = _fused_attn(x1, x2, x_pair, mask,
                         prep["ln_w"], prep["ln_b"], prep["wlt"], prep["mha1"],
                         no_heads=no_heads, c_hidden=c_hidden,
                         pair_transposed=False, normalize_kv=True,
                         q_block=q_block, mxu_dtype=mxu_dtype)
    # mha_2: x2 attends to the UPDATED x1 (no re-norm of kv). Only the tiny mask is
    # transposed in HBM; the transposed pair bias is handled via BlockSpec slicing and a
    # per-head in-kernel transpose.
    mask_t = jnp.swapaxes(mask, 1, 2)
    x2_new = _fused_attn(x2, x1_new, x_pair, mask_t,
                         prep["ln_w"], prep["ln_b"], prep["wlt"], prep["mha2"],
                         no_heads=no_heads, c_hidden=c_hidden,
                         pair_transposed=True, normalize_kv=False,
                         q_block=q_block, mxu_dtype=mxu_dtype)
    return x1_new, x2_new


# ------------------------------ params / reference ---------------------------
def init_params(key, c_in, c_hidden, no_heads):
    HC = c_hidden * no_heads

    def glorot(k, shape):
        fan_in, fan_out = shape
        lim = math.sqrt(6.0 / (fan_in + fan_out))
        return jax.random.uniform(k, shape, jnp.float32, -lim, lim)

    def mha(k):
        kk = jax.random.split(k, 7)
        return dict(
            wq=glorot(kk[0], (c_in, HC)),
            wk=glorot(kk[1], (c_in, HC)),
            wv=glorot(kk[2], (c_in, HC)),
            wg=glorot(kk[3], (c_in, HC)),
            bg=0.1 * jax.random.normal(kk[4], (1, HC), jnp.float32),
            wo=glorot(kk[5], (HC, c_in)),
            bo=0.1 * jax.random.normal(kk[6], (1, c_in), jnp.float32),
        )

    ks = jax.random.split(key, 5)
    return dict(
        ln_w=jnp.ones((c_in,), jnp.float32) + 0.1 * jax.random.normal(ks[0], (c_in,), jnp.float32),
        ln_b=0.1 * jax.random.normal(ks[1], (c_in,), jnp.float32),
        wl=glorot(ks[2], (c_in, no_heads)),
        mha1=mha(ks[3]),
        mha2=mha(ks[4]),
    )


def reference_forward(x1, x2, x_pair, mask, params, *, no_heads, c_hidden):
    hi = jax.lax.Precision.HIGHEST

    def ln(x):
        mu = jnp.mean(x, -1, keepdims=True)
        var = jnp.mean((x - mu) ** 2, -1, keepdims=True)
        return (x - mu) / jnp.sqrt(var + LN_EPS) * params["ln_w"] + params["ln_b"]

    x1n, x2n = ln(x1), ln(x2)
    mask_bias = (INF * (mask - 1.0))[:, None, :, :]                               # [B,1,I,J]
    tb = jnp.einsum("bijc,ch->bhij", x_pair, params["wl"], precision=hi)          # [B,H,I,J]

    def attn(qx, kvx, biases, p):
        B, Q, C = qx.shape
        K = kvx.shape[1]
        q = jnp.einsum("bqc,cd->bqd", qx, p["wq"], precision=hi)
        k = jnp.einsum("bkc,cd->bkd", kvx, p["wk"], precision=hi)
        v = jnp.einsum("bkc,cd->bkd", kvx, p["wv"], precision=hi)
        q = q.reshape(B, Q, no_heads, c_hidden).transpose(0, 2, 1, 3) / math.sqrt(c_hidden)
        k = k.reshape(B, K, no_heads, c_hidden).transpose(0, 2, 1, 3)
        v = v.reshape(B, K, no_heads, c_hidden).transpose(0, 2, 1, 3)
        a = jnp.einsum("bhqd,bhkd->bhqk", q, k, precision=hi)
        for bb in biases:
            a = a + bb
        a = jax.nn.softmax(a, axis=-1)
        o = jnp.einsum("bhqk,bhkd->bhqd", a, v, precision=hi)
        o = o.transpose(0, 2, 1, 3).reshape(B, Q, no_heads * c_hidden)
        g = jax.nn.sigmoid(jnp.einsum("bqc,cd->bqd", qx, p["wg"], precision=hi) + p["bg"])
        o = o * g
        return jnp.einsum("bqd,dc->bqc", o, p["wo"], precision=hi) + p["bo"]

    x1f = x1n + attn(x1n, x2n, [mask_bias, tb], params["mha1"])
    x2f = x2n + attn(x2n, x1f,
                     [jnp.swapaxes(mask_bias, -1, -2), jnp.swapaxes(tb, -1, -2)],
                     params["mha2"])
    return x1f, x2f


# ------------------------------------ main ------------------------------------
if __name__ == "__main__":
    B, I, J = 2, 16, 8
    c_in, c_hidden, no_heads = 32, 8, 4

    key = jax.random.PRNGKey(0)
    k1, k2, k3, k4, kp = jax.random.split(key, 5)
    x1 = jax.random.normal(k1, (B, I, c_in), jnp.float32)
    x2 = jax.random.normal(k2, (B, J, c_in), jnp.float32)
    x_pair = jax.random.normal(k3, (B, I, J, c_in), jnp.float32)
    mask = (jax.random.uniform(k4, (B, I, J)) > 0.15).astype(jnp.float32)
    params = init_params(kp, c_in, c_hidden, no_heads)

    # Hoisted out of jit: one-time weight repack (concat / transpose / scale fold).
    prep = prepare_params(params, no_heads=no_heads, c_hidden=c_hidden)

    fwd = jax.jit(functools.partial(bidirectional_triangle_attention,
                                    no_heads=no_heads, c_hidden=c_hidden))
    x1_out, x2_out = fwd(x1, x2, x_pair, mask, prep)
    jax.block_until_ready((x1_out, x2_out))

    r1, r2 = reference_forward(x1, x2, x_pair, mask, params,
                               no_heads=no_heads, c_hidden=c_hidden)
    np.testing.assert_allclose(np.asarray(x1_out), np.asarray(r1), rtol=2e-2, atol=2e-2)
    np.testing.assert_allclose(np.asarray(x2_out), np.asarray(r2), rtol=2e-2, atol=2e-2)
    print("KERNEL_OK")
</pallas_src>

<mosaic_0001>
module attributes {stable_mosaic.version = 11 : i64} {
  func.func @_attention_kernel(%arg0: i32, %arg1: i32, %arg2: memref<1x16x32xf32, #tpu.memory_space<vmem>>, %arg3: memref<1x8x32xf32, #tpu.memory_space<vmem>>, %arg4: memref<1x16x8x32xf32, #tpu.memory_space<vmem>>, %arg5: memref<1x16x8xf32, #tpu.memory_space<vmem>>, %arg6: memref<1x32xf32, #tpu.memory_space<vmem>>, %arg7: memref<1x32xf32, #tpu.memory_space<vmem>>, %arg8: memref<4x32xf32, #tpu.memory_space<vmem>>, %arg9: memref<32x64xf32, #tpu.memory_space<vmem>>, %arg10: memref<1x32xf32, #tpu.memory_space<vmem>>, %arg11: memref<32x64xf32, #tpu.memory_space<vmem>>, %arg12: memref<32x32xf32, #tpu.memory_space<vmem>>, %arg13: memref<1x32xf32, #tpu.memory_space<vmem>>, %arg14: memref<1x16x32xf32, #tpu.memory_space<vmem>>, %arg15: memref<8x64xf32, #tpu.memory_space<vmem>>) attributes {dimension_semantics = [#tpu.dimension_semantics<parallel>, #tpu.dimension_semantics<parallel>], iteration_bounds = array<i64: 2, 1>, scalar_prefetch = 0 : i64, scratch_operands = 1 : i64, tpu.core_type = #tpu.core_type<tc>, window_params = [{transform_indices = @transform_0, window_bounds = array<i64: 1, 16, 32>}, {transform_indices = @transform_1, window_bounds = array<i64: 1, 8, 32>}, {transform_indices = @transform_2, window_bounds = array<i64: 1, 16, 8, 32>}, {transform_indices = @transform_3, window_bounds = array<i64: 1, 16, 8>}, {pipeline_mode = #tpu.pipeline_mode<synchronous>, transform_indices = @transform_4, window_bounds = array<i64: 1, 32>}, {pipeline_mode = #tpu.pipeline_mode<synchronous>, transform_indices = @transform_5, window_bounds = array<i64: 1, 32>}, {pipeline_mode = #tpu.pipeline_mode<synchronous>, transform_indices = @transform_6, window_bounds = array<i64: 4, 32>}, {pipeline_mode = #tpu.pipeline_mode<synchronous>, transform_indices = @transform_7, window_bounds = array<i64: 32, 64>}, {pipeline_mode = #tpu.pipeline_mode<synchronous>, transform_indices = @transform_8, window_bounds = array<i64: 1, 32>}, {pipeline_mode = #tpu.pipeline_mode<synchronous>, transform_indices = @transform_9, window_bounds = array<i64: 32, 64>}, {pipeline_mode = #tpu.pipeline_mode<synchronous>, transform_indices = @transform_10, window_bounds = array<i64: 32, 32>}, {pipeline_mode = #tpu.pipeline_mode<synchronous>, transform_indices = @transform_11, window_bounds = array<i64: 1, 32>}, {transform_indices = @transform_12, window_bounds = array<i64: 1, 16, 32>}]} {
    %c0 = arith.constant 0 : index
    %c0_0 = arith.constant 0 : index
    %0 = vector.load %arg6[%c0, %c0_0] : memref<1x32xf32, #tpu.memory_space<vmem>>, vector<1x32xf32>
    %c0_1 = arith.constant 0 : index
    %c0_2 = arith.constant 0 : index
    %1 = vector.load %arg7[%c0_1, %c0_2] : memref<1x32xf32, #tpu.memory_space<vmem>>, vector<1x32xf32>
    %c0_i32 = arith.constant 0 : i32
    %2 = arith.cmpi eq, %arg1, %c0_i32 : i32
    %3 = arith.extui %2 : i1 to i32
    %c0_i32_3 = arith.constant 0 : i32
    %4 = arith.cmpi ne, %3, %c0_i32_3 : i32
    scf.if %4 {
      %c0_55 = arith.constant 0 : index
      %c0_56 = arith.constant 0 : index
      %c0_57 = arith.constant 0 : index
      %139 = vector.load %arg3[%c0_55, %c0_56, %c0_57] : memref<1x8x32xf32, #tpu.memory_space<vmem>>, vector<1x8x32xf32>
      %140 = vector.shape_cast %139 : vector<1x8x32xf32> to vector<8x32xf32>
      %cst_58 = arith.constant dense<0.000000e+00> : vector<8xf32>
      %141 = vector.multi_reduction <add>, %140, %cst_58 [1] : vector<8x32xf32> to vector<8xf32>
      %142 = vector.shape_cast %141 : vector<8xf32> to vector<8x1xf32>
      %cst_59 = arith.constant 3.200000e+01 : f32
      %143 = vector.broadcast %cst_59 : f32 to vector<8x1xf32>
      %144 = arith.divf %142, %143 : vector<8x1xf32>
      %145 = vector.broadcast %144 : vector<8x1xf32> to vector<8x32xf32>
      %146 = arith.subf %140, %145 : vector<8x32xf32>
      %147 = arith.mulf %146, %146 : vector<8x32xf32>
      %cst_60 = arith.constant dense<0.000000e+00> : vector<8xf32>
      %148 = vector.multi_reduction <add>, %147, %cst_60 [1] : vector<8x32xf32> to vector<8xf32>
      %149 = vector.shape_cast %148 : vector<8xf32> to vector<8x1xf32>
      %cst_61 = arith.constant 3.200000e+01 : f32
      %150 = vector.broadcast %cst_61 : f32 to vector<8x1xf32>
      %151 = arith.divf %149, %150 : vector<8x1xf32>
      %cst_62 = arith.constant 9.99999974E-6 : f32
      %152 = vector.broadcast %cst_62 : f32 to vector<8x1xf32>
      %153 = arith.addf %151, %152 : vector<8x1xf32>
      %154 = math.rsqrt %153 : vector<8x1xf32>
      %155 = vector.broadcast %154 : vector<8x1xf32> to vector<8x32xf32>
      %156 = arith.mulf %146, %155 : vector<8x32xf32>
      %157 = vector.broadcast %0 : vector<1x32xf32> to vector<8x32xf32>
      %158 = arith.mulf %156, %157 : vector<8x32xf32>
      %159 = vector.broadcast %1 : vector<1x32xf32> to vector<8x32xf32>
      %160 = arith.addf %158, %159 : vector<8x32xf32>
      %c0_63 = arith.constant 0 : index
      %c0_64 = arith.constant 0 : index
      %161 = vector.load %arg11[%c0_63, %c0_64] : memref<32x64xf32, #tpu.memory_space<vmem>>, vector<32x64xf32>
      %cst_65 = arith.constant dense<0.000000e+00> : vector<8x64xf32>
      %162 = tpu.matmul %160, %161, %cst_65 {dimension_numbers = #tpu.dot_dimension_numbers<[1], [0], [0], [1], [0, 0, 1, 1], [], []>} : vector<8x32xf32>, vector<32x64xf32>, vector<8x64xf32> -> vector<8x64xf32>
      %c0_66 = arith.constant 0 : index
      %c0_67 = arith.constant 0 : index
      %163 = vector.load %arg15[%c0_66, %c0_67] : memref<8x64xf32, #tpu.memory_space<vmem>>, vector<8x64xf32>
      tpu.vector_store %arg15[%c0_66, %c0_67], %162 {strides = array<i32>} : memref<8x64xf32, #tpu.memory_space<vmem>>, vector<8x64xf32>,
    } else {
    }
    %c0_4 = arith.constant 0 : index
    %c0_5 = arith.constant 0 : index
    %5 = vector.load %arg15[%c0_4, %c0_5] : memref<8x64xf32, #tpu.memory_space<vmem>>, vector<8x64xf32>
    %c0_6 = arith.constant 0 : index
    %c0_7 = arith.constant 0 : index
    %c0_8 = arith.constant 0 : index
    %6 = vector.load %arg2[%c0_6, %c0_7, %c0_8] : memref<1x16x32xf32, #tpu.memory_space<vmem>>, vector<1x16x32xf32>
    %7 = vector.shape_cast %6 : vector<1x16x32xf32> to vector<16x32xf32>
    %cst = arith.constant dense<0.000000e+00> : vector<16xf32>
    %8 = vector.multi_reduction <add>, %7, %cst [1] : vector<16x32xf32> to vector<16xf32>
    %9 = vector.shape_cast %8 : vector<16xf32> to vector<16x1xf32>
    %cst_9 = arith.constant 3.200000e+01 : f32
    %10 = vector.broadcast %cst_9 : f32 to vector<16x1xf32>
    %11 = arith.divf %9, %10 : vector<16x1xf32>
    %12 = vector.broadcast %11 : vector<16x1xf32> to vector<16x32xf32>
    %13 = arith.subf %7, %12 : vector<16x32xf32>
    %14 = arith.mulf %13, %13 : vector<16x32xf32>
    %cst_10 = arith.constant dense<0.000000e+00> : vector<16xf32>
    %15 = vector.multi_reduction <add>, %14, %cst_10 [1] : vector<16x32xf32> to vector<16xf32>
    %16 = vector.shape_cast %15 : vector<16xf32> to vector<16x1xf32>
    %cst_11 = arith.constant 3.200000e+01 : f32
    %17 = vector.broadcast %cst_11 : f32 to vector<16x1xf32>
    %18 = arith.divf %16, %17 : vector<16x1xf32>
    %cst_12 = arith.constant 9.99999974E-6 : f32
    %19 = vector.broadcast %cst_12 : f32 to vector<16x1xf32>
    %20 = arith.addf %18, %19 : vector<16x1xf32>
    %21 = math.rsqrt %20 : vector<16x1xf32>
    %22 = vector.broadcast %21 : vector<16x1xf32> to vector<16x32xf32>
    %23 = arith.mulf %13, %22 : vector<16x32xf32>
    %24 = vector.broadcast %0 : vector<1x32xf32> to vector<16x32xf32>
    %25 = arith.mulf %23, %24 : vector<16x32xf32>
    %26 = vector.broadcast %1 : vector<1x32xf32> to vector<16x32xf32>
    %27 = arith.addf %25, %26 : vector<16x32xf32>
    %c0_13 = arith.constant 0 : index
    %c0_14 = arith.constant 0 : index
    %28 = vector.load %arg9[%c0_13, %c0_14] : memref<32x64xf32, #tpu.memory_space<vmem>>, vector<32x64xf32>
    %cst_15 = arith.constant dense<0.000000e+00> : vector<16x64xf32>
    %29 = tpu.matmul %27, %28, %cst_15 {dimension_numbers = #tpu.dot_dimension_numbers<[1], [0], [0], [1], [0, 0, 1, 1], [], []>} : vector<16x32xf32>, vector<32x64xf32>, vector<16x64xf32> -> vector<16x64xf32>
    %30 = vector.extract_strided_slice %29 {offsets = [0, 0], sizes = [16, 32], strides = [1, 1]} : vector<16x64xf32> to vector<16x32xf32>
    %31 = vector.extract_strided_slice %29 {offsets = [0, 32], sizes = [16, 32], strides = [1, 1]} : vector<16x64xf32> to vector<16x32xf32>
    %c0_16 = arith.constant 0 : index
    %c0_17 = arith.constant 0 : index
    %32 = vector.load %arg10[%c0_16, %c0_17] : memref<1x32xf32, #tpu.memory_space<vmem>>, vector<1x32xf32>
    %33 = vector.broadcast %32 : vector<1x32xf32> to vector<16x32xf32>
    %34 = arith.addf %31, %33 : vector<16x32xf32>
    %35 = arith.negf %34 : vector<16x32xf32>
    %36 = math.exp %35 : vector<16x32xf32>
    %cst_18 = arith.constant 1.000000e+00 : f32
    %37 = vector.broadcast %cst_18 : f32 to vector<16x32xf32>
    %38 = arith.addf %37, %36 : vector<16x32xf32>
    %39 = arith.divf %37, %38 : vector<16x32xf32>
    %c0_19 = arith.constant 0 : index
    %c0_20 = arith.constant 0 : index
    %c0_21 = arith.constant 0 : index
    %c0_22 = arith.constant 0 : index
    %40 = vector.load %arg4[%c0_19, %c0_20, %c0_21, %c0_22] : memref<1x16x8x32xf32, #tpu.memory_space<vmem>>, vector<1x16x8x32xf32>
    %41 = vector.shape_cast %40 : vector<1x16x8x32xf32> to vector<16x8x32xf32>
    %42 = vector.shape_cast %41 : vector<16x8x32xf32> to vector<128x32xf32>
    %c0_23 = arith.constant 0 : index
    %c0_24 = arith.constant 0 : index
    %43 = vector.load %arg8[%c0_23, %c0_24] : memref<4x32xf32, #tpu.memory_space<vmem>>, vector<4x32xf32>
    %cst_25 = arith.constant dense<0.000000e+00> : vector<4x128xf32>
    %44 = tpu.matmul %43, %42, %cst_25 {dimension_numbers = #tpu.dot_dimension_numbers<[1], [1], [0], [0], [0, 0, 1, 0], [], []>} : vector<4x32xf32>, vector<128x32xf32>, vector<4x128xf32> -> vector<4x128xf32>
    %45 = vector.shape_cast %44 : vector<4x128xf32> to vector<4x16x8xf32>
    %c0_26 = arith.constant 0 : index
    %c0_27 = arith.constant 0 : index
    %c0_28 = arith.constant 0 : index
    %46 = vector.load %arg5[%c0_26, %c0_27, %c0_28] : memref<1x16x8xf32, #tpu.memory_space<vmem>>, vector<1x16x8xf32>
    %47 = vector.shape_cast %46 : vector<1x16x8xf32> to vector<16x8xf32>
    %cst_29 = arith.constant 1.000000e+00 : f32
    %48 = vector.broadcast %cst_29 : f32 to vector<16x8xf32>
    %49 = arith.subf %47, %48 : vector<16x8xf32>
    %cst_30 = arith.constant 1.000000e+09 : f32
    %50 = vector.broadcast %cst_30 : f32 to vector<16x8xf32>
    %51 = arith.mulf %50, %49 : vector<16x8xf32>
    %52 = vector.extract_strided_slice %30 {offsets = [0, 0], sizes = [16, 8], strides = [1, 1]} : vector<16x32xf32> to vector<16x8xf32>
    %53 = vector.extract_strided_slice %5 {offsets = [0, 0], sizes = [8, 8], strides = [1, 1]} : vector<8x64xf32> to vector<8x8xf32>
    %54 = vector.extract_strided_slice %5 {offsets = [0, 32], sizes = [8, 8], strides = [1, 1]} : vector<8x64xf32> to vector<8x8xf32>
    %55 = vector.extract_strided_slice %45 {offsets = [0, 0, 0], sizes = [1, 16, 8], strides = [1, 1, 1]} : vector<4x16x8xf32> to vector<1x16x8xf32>
    %56 = vector.shape_cast %55 : vector<1x16x8xf32> to vector<16x8xf32>
    %57 = arith.addf %56, %51 : vector<16x8xf32>
    %cst_31 = arith.constant dense<0.000000e+00> : vector<16x8xf32>
    %58 = tpu.matmul %52, %53, %cst_31 {dimension_numbers = #tpu.dot_dimension_numbers<[1], [1], [0], [0], [0, 0, 1, 0], [], []>} : vector<16x8xf32>, vector<8x8xf32>, vector<16x8xf32> -> vector<16x8xf32>
    %59 = arith.addf %58, %57 : vector<16x8xf32>
    %cst_32 = arith.constant dense<0xFF800000> : vector<16xf32>
    %60 = vector.multi_reduction <maximumf>, %59, %cst_32 [1] : vector<16x8xf32> to vector<16xf32>
    %61 = vector.shape_cast %60 : vector<16xf32> to vector<16x1xf32>
    %62 = vector.broadcast %61 : vector<16x1xf32> to vector<16x8xf32>
    %63 = arith.subf %59, %62 : vector<16x8xf32>
    %64 = math.exp %63 : vector<16x8xf32>
    %cst_33 = arith.constant dense<0.000000e+00> : vector<16xf32>
    %65 = vector.multi_reduction <add>, %64, %cst_33 [1] : vector<16x8xf32> to vector<16xf32>
    %66 = vector.shape_cast %65 : vector<16xf32> to vector<16x1xf32>
    %67 = tpu.reciprocal %66 {approx = true} : vector<16x1xf32> -> vector<16x1xf32>
    %68 = vector.broadcast %67 : vector<16x1xf32> to vector<16x8xf32>
    %69 = arith.mulf %64, %68 : vector<16x8xf32>
    %cst_34 = arith.constant dense<0.000000e+00> : vector<16x8xf32>
    %70 = tpu.matmul %69, %54, %cst_34 {dimension_numbers = #tpu.dot_dimension_numbers<[1], [0], [0], [1], [0, 0, 1, 1], [], []>} : vector<16x8xf32>, vector<8x8xf32>, vector<16x8xf32> -> vector<16x8xf32>
    %71 = vector.extract_strided_slice %30 {offsets = [0, 8], sizes = [16, 8], strides = [1, 1]} : vector<16x32xf32> to vector<16x8xf32>
    %72 = vector.extract_strided_slice %5 {offsets = [0, 8], sizes = [8, 8], strides = [1, 1]} : vector<8x64xf32> to vector<8x8xf32>
    %73 = vector.extract_strided_slice %5 {offsets = [0, 40], sizes = [8, 8], strides = [1, 1]} : vector<8x64xf32> to vector<8x8xf32>
    %74 = vector.extract_strided_slice %45 {offsets = [1, 0, 0], sizes = [1, 16, 8], strides = [1, 1, 1]} : vector<4x16x8xf32> to vector<1x16x8xf32>
    %75 = vector.shape_cast %74 : vector<1x16x8xf32> to vector<16x8xf32>
    %76 = arith.addf %75, %51 : vector<16x8xf32>
    %cst_35 = arith.constant dense<0.000000e+00> : vector<16x8xf32>
    %77 = tpu.matmul %71, %72, %cst_35 {dimension_numbers = #tpu.dot_dimension_numbers<[1], [1], [0], [0], [0, 0, 1, 0], [], []>} : vector<16x8xf32>, vector<8x8xf32>, vector<16x8xf32> -> vector<16x8xf32>
    %78 = arith.addf %77, %76 : vector<16x8xf32>
    %cst_36 = arith.constant dense<0xFF800000> : vector<16xf32>
    %79 = vector.multi_reduction <maximumf>, %78, %cst_36 [1] : vector<16x8xf32> to vector<16xf32>
    %80 = vector.shape_cast %79 : vector<16xf32> to vector<16x1xf32>
    %81 = vector.broadcast %80 : vector<16x1xf32> to vector<16x8xf32>
    %82 = arith.subf %78, %81 : vector<16x8xf32>
    %83 = math.exp %82 : vector<16x8xf32>
    %cst_37 = arith.constant dense<0.000000e+00> : vector<16xf32>
    %84 = vector.multi_reduction <add>, %83, %cst_37 [1] : vector<16x8xf32> to vector<16xf32>
    %85 = vector.shape_cast %84 : vector<16xf32> to vector<16x1xf32>
    %86 = tpu.reciprocal %85 {approx = true} : vector<16x1xf32> -> vector<16x1xf32>
    %87 = vector.broadcast %86 : vector<16x1xf32> to vector<16x8xf32>
    %88 = arith.mulf %83, %87 : vector<16x8xf32>
    %cst_38 = arith.constant dense<0.000000e+00> : vector<16x8xf32>
    %89 = tpu.matmul %88, %73, %cst_38 {dimension_numbers = #tpu.dot_dimension_numbers<[1], [0], [0], [1], [0, 0, 1, 1], [], []>} : vector<16x8xf32>, vector<8x8xf32>, vector<16x8xf32> -> vector<16x8xf32>
    %90 = vector.extract_strided_slice %30 {offsets = [0, 16], sizes = [16, 8], strides = [1, 1]} : vector<16x32xf32> to vector<16x8xf32>
    %91 = vector.extract_strided_slice %5 {offsets = [0, 16], sizes = [8, 8], strides = [1, 1]} : vector<8x64xf32> to vector<8x8xf32>
    %92 = vector.extract_strided_slice %5 {offsets = [0, 48], sizes = [8, 8], strides = [1, 1]} : vector<8x64xf32> to vector<8x8xf32>
    %93 = vector.extract_strided_slice %45 {offsets = [2, 0, 0], sizes = [1, 16, 8], strides = [1, 1, 1]} : vector<4x16x8xf32> to vector<1x16x8xf32>
    %94 = vector.shape_cast %93 : vector<1x16x8xf32> to vector<16x8xf32>
    %95 = arith.addf %94, %51 : vector<16x8xf32>
    %cst_39 = arith.constant dense<0.000000e+00> : vector<16x8xf32>
    %96 = tpu.matmul %90, %91, %cst_39 {dimension_numbers = #tpu.dot_dimension_numbers<[1], [1], [0], [0], [0, 0, 1, 0], [], []>} : vector<16x8xf32>, vector<8x8xf32>, vector<16x8xf32> -> vector<16x8xf32>
    %97 = arith.addf %96, %95 : vector<16x8xf32>
    %cst_40 = arith.constant dense<0xFF800000> : vector<16xf32>
    %98 = vector.multi_reduction <maximumf>, %97, %cst_40 [1] : vector<16x8xf32> to vector<16xf32>
    %99 = vector.shape_cast %98 : vector<16xf32> to vector<16x1xf32>
    %100 = vector.broadcast %99 : vector<16x1xf32> to vector<16x8xf32>
    %101 = arith.subf %97, %100 : vector<16x8xf32>
    %102 = math.exp %101 : vector<16x8xf32>
    %cst_41 = arith.constant dense<0.000000e+00> : vector<16xf32>
    %103 = vector.multi_reduction <add>, %102, %cst_41 [1] : vector<16x8xf32> to vector<16xf32>
    %104 = vector.shape_cast %103 : vector<16xf32> to vector<16x1xf32>
    %105 = tpu.reciprocal %104 {approx = true} : vector<16x1xf32> -> vector<16x1xf32>
    %106 = vector.broadcast %105 : vector<16x1xf32> to vector<16x8xf32>
    %107 = arith.mulf %102, %106 : vector<16x8xf32>
    %cst_42 = arith.constant dense<0.000000e+00> : vector<16x8xf32>
    %108 = tpu.matmul %107, %92, %cst_42 {dimension_numbers = #tpu.dot_dimension_numbers<[1], [0], [0], [1], [0, 0, 1, 1], [], []>} : vector<16x8xf32>, vector<8x8xf32>, vector<16x8xf32> -> vector<16x8xf32>
    %109 = vector.extract_strided_slice %30 {offsets = [0, 24], sizes = [16, 8], strides = [1, 1]} : vector<16x32xf32> to vector<16x8xf32>
    %110 = vector.extract_strided_slice %5 {offsets = [0, 24], sizes = [8, 8], strides = [1, 1]} : vector<8x64xf32> to vector<8x8xf32>
    %111 = vector.extract_strided_slice %5 {offsets = [0, 56], sizes = [8, 8], strides = [1, 1]} : vector<8x64xf32> to vector<8x8xf32>
    %112 = vector.extract_strided_slice %45 {offsets = [3, 0, 0], sizes = [1, 16, 8], strides = [1, 1, 1]} : vector<4x16x8xf32> to vector<1x16x8xf32>
    %113 = vector.shape_cast %112 : vector<1x16x8xf32> to vector<16x8xf32>
    %114 = arith.addf %113, %51 : vector<16x8xf32>
    %cst_43 = arith.constant dense<0.000000e+00> : vector<16x8xf32>
    %115 = tpu.matmul %109, %110, %cst_43 {dimension_numbers = #tpu.dot_dimension_numbers<[1], [1], [0], [0], [0, 0, 1, 0], [], []>} : vector<16x8xf32>, vector<8x8xf32>, vector<16x8xf32> -> vector<16x8xf32>
    %116 = arith.addf %115, %114 : vector<16x8xf32>
    %cst_44 = arith.constant dense<0xFF800000> : vector<16xf32>
    %117 = vector.multi_reduction <maximumf>, %116, %cst_44 [1] : vector<16x8xf32> to vector<16xf32>
    %118 = vector.shape_cast %117 : vector<16xf32> to vector<16x1xf32>
    %119 = vector.broadcast %118 : vector<16x1xf32> to vector<16x8xf32>
    %120 = arith.subf %116, %119 : vector<16x8xf32>
    %121 = math.exp %120 : vector<16x8xf32>
    %cst_45 = arith.constant dense<0.000000e+00> : vector<16xf32>
    %122 = vector.multi_reduction <add>, %121, %cst_45 [1] : vector<16x8xf32> to vector<16xf32>
    %123 = vector.shape_cast %122 : vector<16xf32> to vector<16x1xf32>
    %124 = tpu.reciprocal %123 {approx = true} : vector<16x1xf32> -> vector<16x1xf32>
    %125 = vector.broadcast %124 : vector<16x1xf32> to vector<16x8xf32>
    %126 = arith.mulf %121, %125 : vector<16x8xf32>
    %cst_46 = arith.constant dense<0.000000e+00> : vector<16x8xf32>
    %127 = tpu.matmul %126, %111, %cst_46 {dimension_numbers = #tpu.dot_dimension_numbers<[1], [0], [0], [1], [0, 0, 1, 1], [], []>} : vector<16x8xf32>, vector<8x8xf32>, vector<16x8xf32> -> vector<16x8xf32>
    %128 = tpu.concatenate %70, %89, %108, %127 in 1 : vector<16x8xf32>, vector<16x8xf32>, vector<16x8xf32>, vector<16x8xf32> -> vector<16x32xf32>
    %129 = arith.mulf %128, %39 : vector<16x32xf32>
    %c0_47 = arith.constant 0 : index
    %c0_48 = arith.constant 0 : index
    %130 = vector.load %arg12[%c0_47, %c0_48] : memref<32x32xf32, #tpu.memory_space<vmem>>, vector<32x32xf32>
    %cst_49 = arith.constant dense<0.000000e+00> : vector<16x32xf32>
    %131 = tpu.matmul %129, %130, %cst_49 {dimension_numbers = #tpu.dot_dimension_numbers<[1], [0], [0], [1], [0, 0, 1, 1], [], []>} : vector<16x32xf32>, vector<32x32xf32>, vector<16x32xf32> -> vector<16x32xf32>
    %c0_50 = arith.constant 0 : index
    %c0_51 = arith.constant 0 : index
    %132 = vector.load %arg13[%c0_50, %c0_51] : memref<1x32xf32, #tpu.memory_space<vmem>>, vector<1x32xf32>
    %133 = vector.broadcast %132 : vector<1x32xf32> to vector<16x32xf32>
    %134 = arith.addf %131, %133 : vector<16x32xf32>
    %135 = arith.addf %27, %134 : vector<16x32xf32>
    %c0_52 = arith.constant 0 : index
    %c0_53 = arith.constant 0 : index
    %c0_54 = arith.constant 0 : index
    %136 = vector.load %arg14[%c0_52, %c0_53, %c0_54] : memref<1x16x32xf32, #tpu.memory_space<vmem>>, vector<1x16x32xf32>
    %137 = vector.shape_cast %136 : vector<1x16x32xf32> to vector<16x32xf32>
    %138 = vector.shape_cast %135 : vector<16x32xf32> to vector<1x16x32xf32>
    tpu.vector_store %arg14[%c0_52, %c0_53, %c0_54], %138 {strides = array<i32>} : memref<1x16x32xf32, #tpu.memory_space<vmem>>, vector<1x16x32xf32>,
    return
  }
  func.func @transform_0(%arg0: i32, %arg1: i32) -> (i32, i32, i32) {
    %c0_i32 = arith.constant 0 : i32
    %c0_i32_0 = arith.constant 0 : i32
    return %arg0, %arg1, %c0_i32 : i32, i32, i32
  }
  func.func @transform_1(%arg0: i32, %arg1: i32) -> (i32, i32, i32) {
    %c0_i32 = arith.constant 0 : i32
    %c0_i32_0 = arith.constant 0 : i32
    %c0_i32_1 = arith.constant 0 : i32
    return %arg0, %c0_i32, %c0_i32_0 : i32, i32, i32
  }
  func.func @transform_2(%arg0: i32, %arg1: i32) -> (i32, i32, i32, i32) {
    %c0_i32 = arith.constant 0 : i32
    %c0_i32_0 = arith.constant 0 : i32
    %c0_i32_1 = arith.constant 0 : i32
    return %arg0, %arg1, %c0_i32, %c0_i32_0 : i32, i32, i32, i32
  }
  func.func @transform_3(%arg0: i32, %arg1: i32) -> (i32, i32, i32) {
    %c0_i32 = arith.constant 0 : i32
    %c0_i32_0 = arith.constant 0 : i32
    return %arg0, %arg1, %c0_i32 : i32, i32, i32
  }
  func.func @transform_4(%arg0: i32, %arg1: i32) -> (i32, i32) {
    %c0_i32 = arith.constant 0 : i32
    %c0_i32_0 = arith.constant 0 : i32
    %c0_i32_1 = arith.constant 0 : i32
    return %c0_i32, %c0_i32_0 : i32, i32
  }
  func.func @transform_5(%arg0: i32, %arg1: i32) -> (i32, i32) {
    %c0_i32 = arith.constant 0 : i32
    %c0_i32_0 = arith.constant 0 : i32
    %c0_i32_1 = arith.constant 0 : i32
    return %c0_i32, %c0_i32_0 : i32, i32
  }
  func.func @transform_6(%arg0: i32, %arg1: i32) -> (i32, i32) {
    %c0_i32 = arith.constant 0 : i32
    %c0_i32_0 = arith.constant 0 : i32
    %c0_i32_1 = arith.constant 0 : i32
    return %c0_i32, %c0_i32_0 : i32, i32
  }
  func.func @transform_7(%arg0: i32, %arg1: i32) -> (i32, i32) {
    %c0_i32 = arith.constant 0 : i32
    %c0_i32_0 = arith.constant 0 : i32
    %c0_i32_1 = arith.constant 0 : i32
    return %c0_i32, %c0_i32_0 : i32, i32
  }
  func.func @transform_8(%arg0: i32, %arg1: i32) -> (i32, i32) {
    %c0_i32 = arith.constant 0 : i32
    %c0_i32_0 = arith.constant 0 : i32
    %c0_i32_1 = arith.constant 0 : i32
    return %c0_i32, %c0_i32_0 : i32, i32
  }
  func.func @transform_9(%arg0: i32, %arg1: i32) -> (i32, i32) {
    %c0_i32 = arith.constant 0 : i32
    %c0_i32_0 = arith.constant 0 : i32
    %c0_i32_1 = arith.constant 0 : i32
    return %c0_i32, %c0_i32_0 : i32, i32
  }
  func.func @transform_10(%arg0: i32, %arg1: i32) -> (i32, i32) {
    %c0_i32 = arith.constant 0 : i32
    %c0_i32_0 = arith.constant 0 : i32
    %c0_i32_1 = arith.constant 0 : i32
    return %c0_i32, %c0_i32_0 : i32, i32
  }
  func.func @transform_11(%arg0: i32, %arg1: i32) -> (i32, i32) {
    %c0_i32 = arith.constant 0 : i32
    %c0_i32_0 = arith.constant 0 : i32
    %c0_i32_1 = arith.constant 0 : i32
    return %c0_i32, %c0_i32_0 : i32, i32
  }
  func.func @transform_12(%arg0: i32, %arg1: i32) -> (i32, i32, i32) {
    %c0_i32 = arith.constant 0 : i32
    %c0_i32_0 = arith.constant 0 : i32
    return %arg0, %arg1, %c0_i32 : i32, i32, i32
  }
}

module attributes {stable_mosaic.version = 11 : i64} {
  func.func @_attention_kernel(%arg0: i32, %arg1: i32, %arg2: memref<1x8x32xf32, #tpu.memory_space<vmem>>, %arg3: memref<1x16x32xf32, #tpu.memory_space<vmem>>, %arg4: memref<1x16x8x32xf32, #tpu.memory_space<vmem>>, %arg5: memref<1x8x16xf32, #tpu.memory_space<vmem>>, %arg6: memref<1x32xf32, #tpu.memory_space<vmem>>, %arg7: memref<1x32xf32, #tpu.memory_space<vmem>>, %arg8: memref<4x32xf32, #tpu.memory_space<vmem>>, %arg9: memref<32x64xf32, #tpu.memory_space<vmem>>, %arg10: memref<1x32xf32, #tpu.memory_space<vmem>>, %arg11: memref<32x64xf32, #tpu.memory_space<vmem>>, %arg12: memref<32x32xf32, #tpu.memory_space<vmem>>, %arg13: memref<1x32xf32, #tpu.memory_space<vmem>>, %arg14: memref<1x8x32xf32, #tpu.memory_space<vmem>>, %arg15: memref<16x64xf32, #tpu.memory_space<vmem>>) attributes {dimension_semantics = [#tpu.dimension_semantics<parallel>, #tpu.dimension_semantics<parallel>], iteration_bounds = array<i64: 2, 1>, scalar_prefetch = 0 : i64, scratch_operands = 1 : i64, tpu.core_type = #tpu.core_type<tc>, window_params = [{transform_indices = @transform_0, window_bounds = array<i64: 1, 8, 32>}, {transform_indices = @transform_1, window_bounds = array<i64: 1, 16, 32>}, {transform_indices = @transform_2, window_bounds = array<i64: 1, 16, 8, 32>}, {transform_indices = @transform_3, window_bounds = array<i64: 1, 8, 16>}, {pipeline_mode = #tpu.pipeline_mode<synchronous>, transform_indices = @transform_4, window_bounds = array<i64: 1, 32>}, {pipeline_mode = #tpu.pipeline_mode<synchronous>, transform_indices = @transform_5, window_bounds = array<i64: 1, 32>}, {pipeline_mode = #tpu.pipeline_mode<synchronous>, transform_indices = @transform_6, window_bounds = array<i64: 4, 32>}, {pipeline_mode = #tpu.pipeline_mode<synchronous>, transform_indices = @transform_7, window_bounds = array<i64: 32, 64>}, {pipeline_mode = #tpu.pipeline_mode<synchronous>, transform_indices = @transform_8, window_bounds = array<i64: 1, 32>}, {pipeline_mode = #tpu.pipeline_mode<synchronous>, transform_indices = @transform_9, window_bounds = array<i64: 32, 64>}, {pipeline_mode = #tpu.pipeline_mode<synchronous>, transform_indices = @transform_10, window_bounds = array<i64: 32, 32>}, {pipeline_mode = #tpu.pipeline_mode<synchronous>, transform_indices = @transform_11, window_bounds = array<i64: 1, 32>}, {transform_indices = @transform_12, window_bounds = array<i64: 1, 8, 32>}]} {
    %c0 = arith.constant 0 : index
    %c0_0 = arith.constant 0 : index
    %0 = vector.load %arg6[%c0, %c0_0] : memref<1x32xf32, #tpu.memory_space<vmem>>, vector<1x32xf32>
    %c0_1 = arith.constant 0 : index
    %c0_2 = arith.constant 0 : index
    %1 = vector.load %arg7[%c0_1, %c0_2] : memref<1x32xf32, #tpu.memory_space<vmem>>, vector<1x32xf32>
    %c0_i32 = arith.constant 0 : i32
    %2 = arith.cmpi eq, %arg1, %c0_i32 : i32
    %3 = arith.extui %2 : i1 to i32
    %c0_i32_3 = arith.constant 0 : i32
    %4 = arith.cmpi ne, %3, %c0_i32_3 : i32
    scf.if %4 {
      %c0_55 = arith.constant 0 : index
      %c0_56 = arith.constant 0 : index
      %c0_57 = arith.constant 0 : index
      %143 = vector.load %arg3[%c0_55, %c0_56, %c0_57] : memref<1x16x32xf32, #tpu.memory_space<vmem>>, vector<1x16x32xf32>
      %144 = vector.shape_cast %143 : vector<1x16x32xf32> to vector<16x32xf32>
      %c0_58 = arith.constant 0 : index
      %c0_59 = arith.constant 0 : index
      %145 = vector.load %arg11[%c0_58, %c0_59] : memref<32x64xf32, #tpu.memory_space<vmem>>, vector<32x64xf32>
      %cst_60 = arith.constant dense<0.000000e+00> : vector<16x64xf32>
      %146 = tpu.matmul %144, %145, %cst_60 {dimension_numbers = #tpu.dot_dimension_numbers<[1], [0], [0], [1], [0, 0, 1, 1], [], []>} : vector<16x32xf32>, vector<32x64xf32>, vector<16x64xf32> -> vector<16x64xf32>
      %c0_61 = arith.constant 0 : index
      %c0_62 = arith.constant 0 : index
      %147 = vector.load %arg15[%c0_61, %c0_62] : memref<16x64xf32, #tpu.memory_space<vmem>>, vector<16x64xf32>
      tpu.vector_store %arg15[%c0_61, %c0_62], %146 {strides = array<i32>} : memref<16x64xf32, #tpu.memory_space<vmem>>, vector<16x64xf32>,
    } else {
    }
    %c0_4 = arith.constant 0 : index
    %c0_5 = arith.constant 0 : index
    %5 = vector.load %arg15[%c0_4, %c0_5] : memref<16x64xf32, #tpu.memory_space<vmem>>, vector<16x64xf32>
    %c0_6 = arith.constant 0 : index
    %c0_7 = arith.constant 0 : index
    %c0_8 = arith.constant 0 : index
    %6 = vector.load %arg2[%c0_6, %c0_7, %c0_8] : memref<1x8x32xf32, #tpu.memory_space<vmem>>, vector<1x8x32xf32>
    %7 = vector.shape_cast %6 : vector<1x8x32xf32> to vector<8x32xf32>
    %cst = arith.constant dense<0.000000e+00> : vector<8xf32>
    %8 = vector.multi_reduction <add>, %7, %cst [1] : vector<8x32xf32> to vector<8xf32>
    %9 = vector.shape_cast %8 : vector<8xf32> to vector<8x1xf32>
    %cst_9 = arith.constant 3.200000e+01 : f32
    %10 = vector.broadcast %cst_9 : f32 to vector<8x1xf32>
    %11 = arith.divf %9, %10 : vector<8x1xf32>
    %12 = vector.broadcast %11 : vector<8x1xf32> to vector<8x32xf32>
    %13 = arith.subf %7, %12 : vector<8x32xf32>
    %14 = arith.mulf %13, %13 : vector<8x32xf32>
    %cst_10 = arith.constant dense<0.000000e+00> : vector<8xf32>
    %15 = vector.multi_reduction <add>, %14, %cst_10 [1] : vector<8x32xf32> to vector<8xf32>
    %16 = vector.shape_cast %15 : vector<8xf32> to vector<8x1xf32>
    %cst_11 = arith.constant 3.200000e+01 : f32
    %17 = vector.broadcast %cst_11 : f32 to vector<8x1xf32>
    %18 = arith.divf %16, %17 : vector<8x1xf32>
    %cst_12 = arith.constant 9.99999974E-6 : f32
    %19 = vector.broadcast %cst_12 : f32 to vector<8x1xf32>
    %20 = arith.addf %18, %19 : vector<8x1xf32>
    %21 = math.rsqrt %20 : vector<8x1xf32>
    %22 = vector.broadcast %21 : vector<8x1xf32> to vector<8x32xf32>
    %23 = arith.mulf %13, %22 : vector<8x32xf32>
    %24 = vector.broadcast %0 : vector<1x32xf32> to vector<8x32xf32>
    %25 = arith.mulf %23, %24 : vector<8x32xf32>
    %26 = vector.broadcast %1 : vector<1x32xf32> to vector<8x32xf32>
    %27 = arith.addf %25, %26 : vector<8x32xf32>
    %c0_13 = arith.constant 0 : index
    %c0_14 = arith.constant 0 : index
    %28 = vector.load %arg9[%c0_13, %c0_14] : memref<32x64xf32, #tpu.memory_space<vmem>>, vector<32x64xf32>
    %cst_15 = arith.constant dense<0.000000e+00> : vector<8x64xf32>
    %29 = tpu.matmul %27, %28, %cst_15 {dimension_numbers = #tpu.dot_dimension_numbers<[1], [0], [0], [1], [0, 0, 1, 1], [], []>} : vector<8x32xf32>, vector<32x64xf32>, vector<8x64xf32> -> vector<8x64xf32>
    %30 = vector.extract_strided_slice %29 {offsets = [0, 0], sizes = [8, 32], strides = [1, 1]} : vector<8x64xf32> to vector<8x32xf32>
    %31 = vector.extract_strided_slice %29 {offsets = [0, 32], sizes = [8, 32], strides = [1, 1]} : vector<8x64xf32> to vector<8x32xf32>
    %c0_16 = arith.constant 0 : index
    %c0_17 = arith.constant 0 : index
    %32 = vector.load %arg10[%c0_16, %c0_17] : memref<1x32xf32, #tpu.memory_space<vmem>>, vector<1x32xf32>
    %33 = vector.broadcast %32 : vector<1x32xf32> to vector<8x32xf32>
    %34 = arith.addf %31, %33 : vector<8x32xf32>
    %35 = arith.negf %34 : vector<8x32xf32>
    %36 = math.exp %35 : vector<8x32xf32>
    %cst_18 = arith.constant 1.000000e+00 : f32
    %37 = vector.broadcast %cst_18 : f32 to vector<8x32xf32>
    %38 = arith.addf %37, %36 : vector<8x32xf32>
    %39 = arith.divf %37, %38 : vector<8x32xf32>
    %c0_19 = arith.constant 0 : index
    %c0_20 = arith.constant 0 : index
    %c0_21 = arith.constant 0 : index
    %c0_22 = arith.constant 0 : index
    %40 = vector.load %arg4[%c0_19, %c0_20, %c0_21, %c0_22] : memref<1x16x8x32xf32, #tpu.memory_space<vmem>>, vector<1x16x8x32xf32>
    %41 = vector.shape_cast %40 : vector<1x16x8x32xf32> to vector<16x8x32xf32>
    %42 = vector.shape_cast %41 : vector<16x8x32xf32> to vector<128x32xf32>
    %c0_23 = arith.constant 0 : index
    %c0_24 = arith.constant 0 : index
    %43 = vector.load %arg8[%c0_23, %c0_24] : memref<4x32xf32, #tpu.memory_space<vmem>>, vector<4x32xf32>
    %cst_25 = arith.constant dense<0.000000e+00> : vector<4x128xf32>
    %44 = tpu.matmul %43, %42, %cst_25 {dimension_numbers = #tpu.dot_dimension_numbers<[1], [1], [0], [0], [0, 0, 1, 0], [], []>} : vector<4x32xf32>, vector<128x32xf32>, vector<4x128xf32> -> vector<4x128xf32>
    %45 = vector.shape_cast %44 : vector<4x128xf32> to vector<4x16x8xf32>
    %c0_26 = arith.constant 0 : index
    %c0_27 = arith.constant 0 : index
    %c0_28 = arith.constant 0 : index
    %46 = vector.load %arg5[%c0_26, %c0_27, %c0_28] : memref<1x8x16xf32, #tpu.memory_space<vmem>>, vector<1x8x16xf32>
    %47 = vector.shape_cast %46 : vector<1x8x16xf32> to vector<8x16xf32>
    %cst_29 = arith.constant 1.000000e+00 : f32
    %48 = vector.broadcast %cst_29 : f32 to vector<8x16xf32>
    %49 = arith.subf %47, %48 : vector<8x16xf32>
    %cst_30 = arith.constant 1.000000e+09 : f32
    %50 = vector.broadcast %cst_30 : f32 to vector<8x16xf32>
    %51 = arith.mulf %50, %49 : vector<8x16xf32>
    %52 = vector.extract_strided_slice %30 {offsets = [0, 0], sizes = [8, 8], strides = [1, 1]} : vector<8x32xf32> to vector<8x8xf32>
    %53 = vector.extract_strided_slice %5 {offsets = [0, 0], sizes = [16, 8], strides = [1, 1]} : vector<16x64xf32> to vector<16x8xf32>
    %54 = vector.extract_strided_slice %5 {offsets = [0, 32], sizes = [16, 8], strides = [1, 1]} : vector<16x64xf32> to vector<16x8xf32>
    %55 = vector.extract_strided_slice %45 {offsets = [0, 0, 0], sizes = [1, 16, 8], strides = [1, 1, 1]} : vector<4x16x8xf32> to vector<1x16x8xf32>
    %56 = vector.shape_cast %55 : vector<1x16x8xf32> to vector<16x8xf32>
    %57 = tpu.transpose %56, [1, 0] : vector<16x8xf32> -> vector<8x16xf32>
    %58 = arith.addf %57, %51 : vector<8x16xf32>
    %cst_31 = arith.constant dense<0.000000e+00> : vector<8x16xf32>
    %59 = tpu.matmul %52, %53, %cst_31 {dimension_numbers = #tpu.dot_dimension_numbers<[1], [1], [0], [0], [0, 0, 1, 0], [], []>} : vector<8x8xf32>, vector<16x8xf32>, vector<8x16xf32> -> vector<8x16xf32>
    %60 = arith.addf %59, %58 : vector<8x16xf32>
    %cst_32 = arith.constant dense<0xFF800000> : vector<8xf32>
    %61 = vector.multi_reduction <maximumf>, %60, %cst_32 [1] : vector<8x16xf32> to vector<8xf32>
    %62 = vector.shape_cast %61 : vector<8xf32> to vector<8x1xf32>
    %63 = vector.broadcast %62 : vector<8x1xf32> to vector<8x16xf32>
    %64 = arith.subf %60, %63 : vector<8x16xf32>
    %65 = math.exp %64 : vector<8x16xf32>
    %cst_33 = arith.constant dense<0.000000e+00> : vector<8xf32>
    %66 = vector.multi_reduction <add>, %65, %cst_33 [1] : vector<8x16xf32> to vector<8xf32>
    %67 = vector.shape_cast %66 : vector<8xf32> to vector<8x1xf32>
    %68 = tpu.reciprocal %67 {approx = true} : vector<8x1xf32> -> vector<8x1xf32>
    %69 = vector.broadcast %68 : vector<8x1xf32> to vector<8x16xf32>
    %70 = arith.mulf %65, %69 : vector<8x16xf32>
    %cst_34 = arith.constant dense<0.000000e+00> : vector<8x8xf32>
    %71 = tpu.matmul %70, %54, %cst_34 {dimension_numbers = #tpu.dot_dimension_numbers<[1], [0], [0], [1], [0, 0, 1, 1], [], []>} : vector<8x16xf32>, vector<16x8xf32>, vector<8x8xf32> -> vector<8x8xf32>
    %72 = vector.extract_strided_slice %30 {offsets = [0, 8], sizes = [8, 8], strides = [1, 1]} : vector<8x32xf32> to vector<8x8xf32>
    %73 = vector.extract_strided_slice %5 {offsets = [0, 8], sizes = [16, 8], strides = [1, 1]} : vector<16x64xf32> to vector<16x8xf32>
    %74 = vector.extract_strided_slice %5 {offsets = [0, 40], sizes = [16, 8], strides = [1, 1]} : vector<16x64xf32> to vector<16x8xf32>
    %75 = vector.extract_strided_slice %45 {offsets = [1, 0, 0], sizes = [1, 16, 8], strides = [1, 1, 1]} : vector<4x16x8xf32> to vector<1x16x8xf32>
    %76 = vector.shape_cast %75 : vector<1x16x8xf32> to vector<16x8xf32>
    %77 = tpu.transpose %76, [1, 0] : vector<16x8xf32> -> vector<8x16xf32>
    %78 = arith.addf %77, %51 : vector<8x16xf32>
    %cst_35 = arith.constant dense<0.000000e+00> : vector<8x16xf32>
    %79 = tpu.matmul %72, %73, %cst_35 {dimension_numbers = #tpu.dot_dimension_numbers<[1], [1], [0], [0], [0, 0, 1, 0], [], []>} : vector<8x8xf32>, vector<16x8xf32>, vector<8x16xf32> -> vector<8x16xf32>
    %80 = arith.addf %79, %78 : vector<8x16xf32>
    %cst_36 = arith.constant dense<0xFF800000> : vector<8xf32>
    %81 = vector.multi_reduction <maximumf>, %80, %cst_36 [1] : vector<8x16xf32> to vector<8xf32>
    %82 = vector.shape_cast %81 : vector<8xf32> to vector<8x1xf32>
    %83 = vector.broadcast %82 : vector<8x1xf32> to vector<8x16xf32>
    %84 = arith.subf %80, %83 : vector<8x16xf32>
    %85 = math.exp %84 : vector<8x16xf32>
    %cst_37 = arith.constant dense<0.000000e+00> : vector<8xf32>
    %86 = vector.multi_reduction <add>, %85, %cst_37 [1] : vector<8x16xf32> to vector<8xf32>
    %87 = vector.shape_cast %86 : vector<8xf32> to vector<8x1xf32>
    %88 = tpu.reciprocal %87 {approx = true} : vector<8x1xf32> -> vector<8x1xf32>
    %89 = vector.broadcast %88 : vector<8x1xf32> to vector<8x16xf32>
    %90 = arith.mulf %85, %89 : vector<8x16xf32>
    %cst_38 = arith.constant dense<0.000000e+00> : vector<8x8xf32>
    %91 = tpu.matmul %90, %74, %cst_38 {dimension_numbers = #tpu.dot_dimension_numbers<[1], [0], [0], [1], [0, 0, 1, 1], [], []>} : vector<8x16xf32>, vector<16x8xf32>, vector<8x8xf32> -> vector<8x8xf32>
    %92 = vector.extract_strided_slice %30 {offsets = [0, 16], sizes = [8, 8], strides = [1, 1]} : vector<8x32xf32> to vector<8x8xf32>
    %93 = vector.extract_strided_slice %5 {offsets = [0, 16], sizes = [16, 8], strides = [1, 1]} : vector<16x64xf32> to vector<16x8xf32>
    %94 = vector.extract_strided_slice %5 {offsets = [0, 48], sizes = [16, 8], strides = [1, 1]} : vector<16x64xf32> to vector<16x8xf32>
    %95 = vector.extract_strided_slice %45 {offsets = [2, 0, 0], sizes = [1, 16, 8], strides = [1, 1, 1]} : vector<4x16x8xf32> to vector<1x16x8xf32>
    %96 = vector.shape_cast %95 : vector<1x16x8xf32> to vector<16x8xf32>
    %97 = tpu.transpose %96, [1, 0] : vector<16x8xf32> -> vector<8x16xf32>
    %98 = arith.addf %97, %51 : vector<8x16xf32>
    %cst_39 = arith.constant dense<0.000000e+00> : vector<8x16xf32>
    %99 = tpu.matmul %92, %93, %cst_39 {dimension_numbers = #tpu.dot_dimension_numbers<[1], [1], [0], [0], [0, 0, 1, 0], [], []>} : vector<8x8xf32>, vector<16x8xf32>, vector<8x16xf32> -> vector<8x16xf32>
    %100 = arith.addf %99, %98 : vector<8x16xf32>
    %cst_40 = arith.constant dense<0xFF800000> : vector<8xf32>
    %101 = vector.multi_reduction <maximumf>, %100, %cst_40 [1] : vector<8x16xf32> to vector<8xf32>
    %102 = vector.shape_cast %101 : vector<8xf32> to vector<8x1xf32>
    %103 = vector.broadcast %102 : vector<8x1xf32> to vector<8x16xf32>
    %104 = arith.subf %100, %103 : vector<8x16xf32>
    %105 = math.exp %104 : vector<8x16xf32>
    %cst_41 = arith.constant dense<0.000000e+00> : vector<8xf32>
    %106 = vector.multi_reduction <add>, %105, %cst_41 [1] : vector<8x16xf32> to vector<8xf32>
    %107 = vector.shape_cast %106 : vector<8xf32> to vector<8x1xf32>
    %108 = tpu.reciprocal %107 {approx = true} : vector<8x1xf32> -> vector<8x1xf32>
    %109 = vector.broadcast %108 : vector<8x1xf32> to vector<8x16xf32>
    %110 = arith.mulf %105, %109 : vector<8x16xf32>
    %cst_42 = arith.constant dense<0.000000e+00> : vector<8x8xf32>
    %111 = tpu.matmul %110, %94, %cst_42 {dimension_numbers = #tpu.dot_dimension_numbers<[1], [0], [0], [1], [0, 0, 1, 1], [], []>} : vector<8x16xf32>, vector<16x8xf32>, vector<8x8xf32> -> vector<8x8xf32>
    %112 = vector.extract_strided_slice %30 {offsets = [0, 24], sizes = [8, 8], strides = [1, 1]} : vector<8x32xf32> to vector<8x8xf32>
    %113 = vector.extract_strided_slice %5 {offsets = [0, 24], sizes = [16, 8], strides = [1, 1]} : vector<16x64xf32> to vector<16x8xf32>
    %114 = vector.extract_strided_slice %5 {offsets = [0, 56], sizes = [16, 8], strides = [1, 1]} : vector<16x64xf32> to vector<16x8xf32>
    %115 = vector.extract_strided_slice %45 {offsets = [3, 0, 0], sizes = [1, 16, 8], strides = [1, 1, 1]} : vector<4x16x8xf32> to vector<1x16x8xf32>
    %116 = vector.shape_cast %115 : vector<1x16x8xf32> to vector<16x8xf32>
    %117 = tpu.transpose %116, [1, 0] : vector<16x8xf32> -> vector<8x16xf32>
    %118 = arith.addf %117, %51 : vector<8x16xf32>
    %cst_43 = arith.constant dense<0.000000e+00> : vector<8x16xf32>
    %119 = tpu.matmul %112, %113, %cst_43 {dimension_numbers = #tpu.dot_dimension_numbers<[1], [1], [0], [0], [0, 0, 1, 0], [], []>} : vector<8x8xf32>, vector<16x8xf32>, vector<8x16xf32> -> vector<8x16xf32>
    %120 = arith.addf %119, %118 : vector<8x16xf32>
    %cst_44 = arith.constant dense<0xFF800000> : vector<8xf32>
    %121 = vector.multi_reduction <maximumf>, %120, %cst_44 [1] : vector<8x16xf32> to vector<8xf32>
    %122 = vector.shape_cast %121 : vector<8xf32> to vector<8x1xf32>
    %123 = vector.broadcast %122 : vector<8x1xf32> to vector<8x16xf32>
    %124 = arith.subf %120, %123 : vector<8x16xf32>
    %125 = math.exp %124 : vector<8x16xf32>
    %cst_45 = arith.constant dense<0.000000e+00> : vector<8xf32>
    %126 = vector.multi_reduction <add>, %125, %cst_45 [1] : vector<8x16xf32> to vector<8xf32>
    %127 = vector.shape_cast %126 : vector<8xf32> to vector<8x1xf32>
    %128 = tpu.reciprocal %127 {approx = true} : vector<8x1xf32> -> vector<8x1xf32>
    %129 = vector.broadcast %128 : vector<8x1xf32> to vector<8x16xf32>
    %130 = arith.mulf %125, %129 : vector<8x16xf32>
    %cst_46 = arith.constant dense<0.000000e+00> : vector<8x8xf32>
    %131 = tpu.matmul %130, %114, %cst_46 {dimension_numbers = #tpu.dot_dimension_numbers<[1], [0], [0], [1], [0, 0, 1, 1], [], []>} : vector<8x16xf32>, vector<16x8xf32>, vector<8x8xf32> -> vector<8x8xf32>
    %132 = tpu.concatenate %71, %91, %111, %131 in 1 : vector<8x8xf32>, vector<8x8xf32>, vector<8x8xf32>, vector<8x8xf32> -> vector<8x32xf32>
    %133 = arith.mulf %132, %39 : vector<8x32xf32>
    %c0_47 = arith.constant 0 : index
    %c0_48 = arith.constant 0 : index
    %134 = vector.load %arg12[%c0_47, %c0_48] : memref<32x32xf32, #tpu.memory_space<vmem>>, vector<32x32xf32>
    %cst_49 = arith.constant dense<0.000000e+00> : vector<8x32xf32>
    %135 = tpu.matmul %133, %134, %cst_49 {dimension_numbers = #tpu.dot_dimension_numbers<[1], [0], [0], [1], [0, 0, 1, 1], [], []>} : vector<8x32xf32>, vector<32x32xf32>, vector<8x32xf32> -> vector<8x32xf32>
    %c0_50 = arith.constant 0 : index
    %c0_51 = arith.constant 0 : index
    %136 = vector.load %arg13[%c0_50, %c0_51] : memref<1x32xf32, #tpu.memory_space<vmem>>, vector<1x32xf32>
    %137 = vector.broadcast %136 : vector<1x32xf32> to vector<8x32xf32>
    %138 = arith.addf %135, %137 : vector<8x32xf32>
    %139 = arith.addf %27, %138 : vector<8x32xf32>
    %c0_52 = arith.constant 0 : index
    %c0_53 = arith.constant 0 : index
    %c0_54 = arith.constant 0 : index
    %140 = vector.load %arg14[%c0_52, %c0_53, %c0_54] : memref<1x8x32xf32, #tpu.memory_space<vmem>>, vector<1x8x32xf32>
    %141 = vector.shape_cast %140 : vector<1x8x32xf32> to vector<8x32xf32>
    %142 = vector.shape_cast %139 : vector<8x32xf32> to vector<1x8x32xf32>
    tpu.vector_store %arg14[%c0_52, %c0_53, %c0_54], %142 {strides = array<i32>} : memref<1x8x32xf32, #tpu.memory_space<vmem>>, vector<1x8x32xf32>,
    return
  }
  func.func @transform_0(%arg0: i32, %arg1: i32) -> (i32, i32, i32) {
    %c0_i32 = arith.constant 0 : i32
    %c0_i32_0 = arith.constant 0 : i32
    return %arg0, %arg1, %c0_i32 : i32, i32, i32
  }
  func.func @transform_1(%arg0: i32, %arg1: i32) -> (i32, i32, i32) {
    %c0_i32 = arith.constant 0 : i32
    %c0_i32_0 = arith.constant 0 : i32
    %c0_i32_1 = arith.constant 0 : i32
    return %arg0, %c0_i32, %c0_i32_0 : i32, i32, i32
  }
  func.func @transform_2(%arg0: i32, %arg1: i32) -> (i32, i32, i32, i32) {
    %c0_i32 = arith.constant 0 : i32
    %c0_i32_0 = arith.constant 0 : i32
    %c0_i32_1 = arith.constant 0 : i32
    return %arg0, %c0_i32, %arg1, %c0_i32_0 : i32, i32, i32, i32
  }
  func.func @transform_3(%arg0: i32, %arg1: i32) -> (i32, i32, i32) {
    %c0_i32 = arith.constant 0 : i32
    %c0_i32_0 = arith.constant 0 : i32
    return %arg0, %arg1, %c0_i32 : i32, i32, i32
  }
  func.func @transform_4(%arg0: i32, %arg1: i32) -> (i32, i32) {
    %c0_i32 = arith.constant 0 : i32
    %c0_i32_0 = arith.constant 0 : i32
    %c0_i32_1 = arith.constant 0 : i32
    return %c0_i32, %c0_i32_0 : i32, i32
  }
  func.func @transform_5(%arg0: i32, %arg1: i32) -> (i32, i32) {
    %c0_i32 = arith.constant 0 : i32
    %c0_i32_0 = arith.constant 0 : i32
    %c0_i32_1 = arith.constant 0 : i32
    return %c0_i32, %c0_i32_0 : i32, i32
  }
  func.func @transform_6(%arg0: i32, %arg1: i32) -> (i32, i32) {
    %c0_i32 = arith.constant 0 : i32
    %c0_i32_0 = arith.constant 0 : i32
    %c0_i32_1 = arith.constant 0 : i32
    return %c0_i32, %c0_i32_0 : i32, i32
  }
  func.func @transform_7(%arg0: i32, %arg1: i32) -> (i32, i32) {
    %c0_i32 = arith.constant 0 : i32
    %c0_i32_0 = arith.constant 0 : i32
    %c0_i32_1 = arith.constant 0 : i32
    return %c0_i32, %c0_i32_0 : i32, i32
  }
  func.func @transform_8(%arg0: i32, %arg1: i32) -> (i32, i32) {
    %c0_i32 = arith.constant 0 : i32
    %c0_i32_0 = arith.constant 0 : i32
    %c0_i32_1 = arith.constant 0 : i32
    return %c0_i32, %c0_i32_0 : i32, i32
  }
  func.func @transform_9(%arg0: i32, %arg1: i32) -> (i32, i32) {
    %c0_i32 = arith.constant 0 : i32
    %c0_i32_0 = arith.constant 0 : i32
    %c0_i32_1 = arith.constant 0 : i32
    return %c0_i32, %c0_i32_0 : i32, i32
  }
  func.func @transform_10(%arg0: i32, %arg1: i32) -> (i32, i32) {
    %c0_i32 = arith.constant 0 : i32
    %c0_i32_0 = arith.constant 0 : i32
    %c0_i32_1 = arith.constant 0 : i32
    return %c0_i32, %c0_i32_0 : i32, i32
  }
  func.func @transform_11(%arg0: i32, %arg1: i32) -> (i32, i32) {
    %c0_i32 = arith.constant 0 : i32
    %c0_i32_0 = arith.constant 0 : i32
    %c0_i32_1 = arith.constant 0 : i32
    return %c0_i32, %c0_i32_0 : i32, i32
  }
  func.func @transform_12(%arg0: i32, %arg1: i32) -> (i32, i32, i32) {
    %c0_i32 = arith.constant 0 : i32
    %c0_i32_0 = arith.constant 0 : i32
    return %arg0, %arg1, %c0_i32 : i32, i32, i32
  }
}

</mosaic_0001>

<llo_original>
// kernel: bidirectional_triangle_attention.2
$region0: #{bidirectional_triangle_attention.2}
  #allocation0 [shape = 'u32[]', space=smem, size = 0x4, offset = 0x4, fixed_abs, tag = 'smem constant byte address 0x4 - core index']
  #allocation1 [shape = 'u32[144,128]{1,0:T(1,128)}', space=vmem, size = 0x12000, scoped, tag = 'internal scratch']
  #allocation2 [shape = 'f32[8,64]{1,0:T(8,128)}', space=vmem, size = 0x1000, scoped, tag = 'scratch operand']
  %s0 = inlined_call_operand.vmem [shape: f32[2,16,32], index: 0, kind: input, shape index: {}]
  %s1 = inlined_call_operand.vmem [shape: f32[2,8,32], index: 1, kind: input, shape index: {}]
  %s2 = inlined_call_operand.hbm [shape: f32[2,16,8,32], index: 2, kind: input, shape index: {}]
  %s3 = inlined_call_operand.vmem [shape: f32[2,16,8], index: 3, kind: input, shape index: {}]
  %s4 = inlined_call_operand.vmem [shape: f32[1,32], index: 4, kind: input, shape index: {}]
  %s5 = inlined_call_operand.vmem [shape: f32[1,32], index: 5, kind: input, shape index: {}]
  %s6 = inlined_call_operand.vmem [shape: f32[4,32], index: 6, kind: input, shape index: {}]
  %s7 = inlined_call_operand.hbm [shape: f32[32,64], index: 7, kind: input, shape index: {}]
  %s8 = inlined_call_operand.hbm [shape: f32[1,32], index: 8, kind: input, shape index: {}]
  %s9 = inlined_call_operand.hbm [shape: f32[32,64], index: 9, kind: input, shape index: {}]
  %s10 = inlined_call_operand.hbm [shape: f32[32,32], index: 10, kind: input, shape index: {}]
  %s11 = inlined_call_operand.hbm [shape: f32[1,32], index: 11, kind: input, shape index: {}]
  %s12 = inlined_call_operand.vmem [shape: f32[2,16,32], index: 12, kind: output, shape index: {}]
  %s13 = sld [smem:[#allocation0]]
  $region109: #{bidirectional_triangle_attention.2} parent=0
    _
  %s15 = ssub.s32 1, %s13
  %s16 = scalar_select 0, %s15, %s13
  $region1: #{bidirectional_triangle_attention.2} parent=0
    #allocation3 [shape = 'u8[131072]{0}', space=vmem, size = 0x20000, scoped, tag = 'input window, operand 2']
    #allocation4 [shape = 's32[2]{0}', space=sflag, size = 0x8, scoped, tag = 'scoped memory for bidirectional_triangle_attention.2']
    #allocation5 [shape = 'u8[16384]{0}', space=vmem, size = 0x4000, scoped, tag = 'input window, operand 7, single buffered']
    #allocation6 [shape = 's32[1]{0}', space=sflag, size = 0x4, scoped, tag = 'scoped memory for bidirectional_triangle_attention.2']
    #allocation7 [shape = 'u8[512]{0}', space=vmem, size = 0x400, scoped, tag = 'input window, operand 8, single buffered']
    #allocation8 [shape = 'u8[16384]{0}', space=vmem, size = 0x4000, scoped, tag = 'input window, operand 9, single buffered']
    #allocation9 [shape = 's32[1]{0}', space=sflag, size = 0x4, scoped, tag = 'scoped memory for bidirectional_triangle_attention.2']
    #allocation10 [shape = 'u8[16384]{0}', space=vmem, size = 0x4000, scoped, tag = 'input window, operand 10, single buffered']
    #allocation11 [shape = 'u8[512]{0}', space=vmem, size = 0x400, scoped, tag = 'input window, operand 11, single buffered']
    #allocation12 [shape = 's32[1]{0}', space=sflag, size = 0x4, scoped, tag = 'scoped memory for bidirectional_triangle_attention.2']
    %17 = vsyncpa [#allocation4], 0
    %s18 = scalar_lea.sflag [#allocation4], 1
    %19 = vsyncpa %s18, 0
    %20 = vsyncpa [#allocation6], 0
    %21 = vsyncpa [#allocation9], 0
    %22 = vsyncpa [#allocation12], 0
    loop: start=0, step=1, limit=4
    $region2: #{bidirectional_triangle_attention.2} parent=1 // loop_pre_header
      _
    $region3: #{bidirectional_triangle_attention.2} parent=1 // loop_header
      %s24 = sphi 0, %s28
      %p25 = scmp.ge.s32.totalorder %s24, 4
      %s31 = sphi 0, %s43
      %s32 = sphi 0, %s39
      %s33 = sphi 0, %s31
      %s34 = sphi 0, %s32
      %s35 = sphi 0, %s33
      %s36 = sphi 0, %s34
      %s48 = sphi 0, %s50
      %s51 = sphi 0, %s48
      %s52 = sphi 0, %s51
      %s68 = sphi 0, %s52
      %s74 = sphi 0, %s76
      %s77 = sphi 0, %s74
      %s78 = sphi 0, %s77
      %s94 = sphi 0, %s78
      %s102 = sphi 0, %s104
      %s105 = sphi 0, %s102
      %s106 = sphi 0, %s105
      %s122 = sphi 0, %s106
      %s130 = sphi 0, %s132
      %s133 = sphi 0, %s130
      %s134 = sphi 0, %s133
      %s150 = sphi 0, %s134
      %s154 = sphi 0, %s154
      %s156 = sphi 0, %s154
      %s157 = sphi 0, %s156
      %s171 = sphi 0, %s157
      %s175 = sphi 0, %s175
      %s177 = sphi 0, %s175
      %s178 = sphi 0, %s177
      %s192 = sphi 0, %s178
      %s196 = sphi 0, %s196
      %s198 = sphi 0, %s196
      %s199 = sphi 0, %s198
      %s213 = sphi 0, %s199
      %s217 = sphi 0, %s217
      %s219 = sphi 0, %s217
      %s220 = sphi 0, %s219
      %s234 = sphi 0, %s220
      %s238 = sphi 0, %s238
      %s240 = sphi 0, %s238
      %s241 = sphi 0, %s240
      %s255 = sphi 0, %s241
      %s259 = sphi 0, %s259
      %s261 = sphi 0, %s259
      %s262 = sphi 0, %s261
      %s276 = sphi 0, %s262
      %s280 = sphi 0, %s280
      %s282 = sphi 0, %s280
      %s283 = sphi 0, %s282
      %s297 = sphi 0, %s283
      %s301 = sphi 0, %s301
      %s303 = sphi 0, %s301
      %s304 = sphi 0, %s303
      %s318 = sphi 0, %s304
      %s326 = sphi 0, %s328
      %s329 = sphi 0, %s326
      %s330 = sphi 0, %s329
      %s346 = sphi 0, %s330
    $region4: #{bidirectional_triangle_attention.2} parent=1 // loop_header_branch
      %27 = sbr.rel (%p25) target = $region8
    $region5: #{bidirectional_triangle_attention.2} parent=1 // loop_body
      %s29 = ssub.s32 %s24, 1
      %s30 = ssub.s32 %s24, 2
      %s37 = sadd.s32 1, %s32
      %p38 = scmp.ge.s32.totalorder %s37, 1
      %s39 = scalar_select %p38, 0, %s37
      %s40 = sadd.s32 1, %s31
      %s41 = scalar_select %p38, %s40, %s31
      %p42 = scmp.ge.s32.totalorder %s41, 2
      %s43 = scalar_select %p42, 0, %s41
      %s44 = ssub.s32 %s31, %s43
      %s45 = ssub.s32 %s32, %s39
      %s46 = sor.u32 %s44, %s45
      %p47 = scmp.eq.s32.totalorder %s46, 0
      %s49 = sadd.s32 %s48, 1
      %s50 = scalar_select %p47, %s48, %s49
      %p53 = pneg %p47
      %p54 = scmp.eq.s32.totalorder %s24, 1
      %p55 = por %p53, %p54
      %p56 = scmp.ne.s32.totalorder %s48, %s51
      %p57 = scmp.eq.s32.totalorder %s24, 0
      %p58 = por %p56, %p57
      %p59 = scmp.ne.s32.totalorder %s48, %s51
      %p60 = scmp.eq.s32.totalorder %s29, 1
      %p61 = por %p59, %p60
      %p62 = scmp.ne.s32.totalorder %s51, %s52
      %p63 = scmp.eq.s32.totalorder %s29, 0
      %p64 = por %p62, %p63
      %p65 = scmp.ne.s32.totalorder %s51, %s52
      %p66 = scmp.eq.s32.totalorder %s30, 1
      %p67 = por %p65, %p66
      %p69 = scmp.ne.s32.totalorder %s52, %s68
      %p70 = scmp.eq.s32.totalorder %s30, 0
      %p71 = por %p69, %p70
      %s72 = ssub.s32 %s31, %s43
      %p73 = scmp.eq.s32.totalorder %s72, 0
      %s75 = sadd.s32 %s74, 1
      %s76 = scalar_select %p73, %s74, %s75
      %p79 = pneg %p73
      %p80 = scmp.eq.s32.totalorder %s24, 1
      %p81 = por %p79, %p80
      %p82 = scmp.ne.s32.totalorder %s74, %s77
      %p83 = scmp.eq.s32.totalorder %s24, 0
      %p84 = por %p82, %p83
      %p85 = scmp.ne.s32.totalorder %s74, %s77
      %p86 = scmp.eq.s32.totalorder %s29, 1
      %p87 = por %p85, %p86
      %p88 = scmp.ne.s32.totalorder %s77, %s78
      %p89 = scmp.eq.s32.totalorder %s29, 0
      %p90 = por %p88, %p89
      %p91 = scmp.ne.s32.totalorder %s77, %s78
      %p92 = scmp.eq.s32.totalorder %s30, 1
      %p93 = por %p91, %p92
      %p95 = scmp.ne.s32.totalorder %s78, %s94
      %p96 = scmp.eq.s32.totalorder %s30, 0
      %p97 = por %p95, %p96
      %s98 = ssub.s32 %s31, %s43
      %s99 = ssub.s32 %s32, %s39
      %s100 = sor.u32 %s98, %s99
      %p101 = scmp.eq.s32.totalorder %s100, 0
      %s103 = sadd.s32 %s102, 1
      %s104 = scalar_select %p101, %s102, %s103
      %p107 = pneg %p101
      %p108 = scmp.eq.s32.totalorder %s24, 1
      %p109 = por %p107, %p108
      %p110 = scmp.ne.s32.totalorder %s102, %s105
      %p111 = scmp.eq.s32.totalorder %s24, 0
      %p112 = por %p110, %p111
      %p113 = scmp.ne.s32.totalorder %s102, %s105
      %p114 = scmp.eq.s32.totalorder %s29, 1
      %p115 = por %p113, %p114
      %p116 = scmp.ne.s32.totalorder %s105, %s106
      %p117 = scmp.eq.s32.totalorder %s29, 0
      %p118 = por %p116, %p117
      %p119 = scmp.ne.s32.totalorder %s105, %s106
      %p120 = scmp.eq.s32.totalorder %s30, 1
      %p121 = por %p119, %p120
      %p123 = scmp.ne.s32.totalorder %s106, %s122
      %p124 = scmp.eq.s32.totalorder %s30, 0
      %p125 = por %p123, %p124
      %s126 = ssub.s32 %s31, %s43
      %s127 = ssub.s32 %s32, %s39
      %s128 = sor.u32 %s126, %s127
      %p129 = scmp.eq.s32.totalorder %s128, 0
      %s131 = sadd.s32 %s130, 1
      %s132 = scalar_select %p129, %s130, %s131
      %p135 = pneg %p129
      %p136 = scmp.eq.s32.totalorder %s24, 1
      %p137 = por %p135, %p136
      %p138 = scmp.ne.s32.totalorder %s130, %s133
      %p139 = scmp.eq.s32.totalorder %s24, 0
      %p140 = por %p138, %p139
      %p141 = scmp.ne.s32.totalorder %s130, %s133
      %p142 = scmp.eq.s32.totalorder %s29, 1
      %p143 = por %p141, %p142
      %p144 = scmp.ne.s32.totalorder %s133, %s134
      %p145 = scmp.eq.s32.totalorder %s29, 0
      %p146 = por %p144, %p145
      %p147 = scmp.ne.s32.totalorder %s133, %s134
      %p148 = scmp.eq.s32.totalorder %s30, 1
      %p149 = por %p147, %p148
      %p151 = scmp.ne.s32.totalorder %s134, %s150
      %p152 = scmp.eq.s32.totalorder %s30, 0
      %p153 = por %p151, %p152
      %s155 = sadd.s32 %s154, 1
      %p158 = scmp.eq.s32.totalorder %s24, 1
      %p159 = scmp.ne.s32.totalorder %s154, %s156
      %p160 = scmp.eq.s32.totalorder %s24, 0
      %p161 = por %p159, %p160
      %p162 = scmp.ne.s32.totalorder %s154, %s156
      %p163 = scmp.eq.s32.totalorder %s29, 1
      %p164 = por %p162, %p163
      %p165 = scmp.ne.s32.totalorder %s156, %s157
      %p166 = scmp.eq.s32.totalorder %s29, 0
      %p167 = por %p165, %p166
      %p168 = scmp.ne.s32.totalorder %s156, %s157
      %p169 = scmp.eq.s32.totalorder %s30, 1
      %p170 = por %p168, %p169
      %p172 = scmp.ne.s32.totalorder %s157, %s171
      %p173 = scmp.eq.s32.totalorder %s30, 0
      %p174 = por %p172, %p173
      %s176 = sadd.s32 %s175, 1
      %p179 = scmp.eq.s32.totalorder %s24, 1
      %p180 = scmp.ne.s32.totalorder %s175, %s177
      %p181 = scmp.eq.s32.totalorder %s24, 0
      %p182 = por %p180, %p181
      %p183 = scmp.ne.s32.totalorder %s175, %s177
      %p184 = scmp.eq.s32.totalorder %s29, 1
      %p185 = por %p183, %p184
      %p186 = scmp.ne.s32.totalorder %s177, %s178
      %p187 = scmp.eq.s32.totalorder %s29, 0
      %p188 = por %p186, %p187
      %p189 = scmp.ne.s32.totalorder %s177, %s178
      %p190 = scmp.eq.s32.totalorder %s30, 1
      %p191 = por %p189, %p190
      %p193 = scmp.ne.s32.totalorder %s178, %s192
      %p194 = scmp.eq.s32.totalorder %s30, 0
      %p195 = por %p193, %p194
      %s197 = sadd.s32 %s196, 1
      %p200 = scmp.eq.s32.totalorder %s24, 1
      %p201 = scmp.ne.s32.totalorder %s196, %s198
      %p202 = scmp.eq.s32.totalorder %s24, 0
      %p203 = por %p201, %p202
      %p204 = scmp.ne.s32.totalorder %s196, %s198
      %p205 = scmp.eq.s32.totalorder %s29, 1
      %p206 = por %p204, %p205
      %p207 = scmp.ne.s32.totalorder %s198, %s199
      %p208 = scmp.eq.s32.totalorder %s29, 0
      %p209 = por %p207, %p208
      %p210 = scmp.ne.s32.totalorder %s198, %s199
      %p211 = scmp.eq.s32.totalorder %s30, 1
      %p212 = por %p210, %p211
      %p214 = scmp.ne.s32.totalorder %s199, %s213
      %p215 = scmp.eq.s32.totalorder %s30, 0
      %p216 = por %p214, %p215
      %s218 = sadd.s32 %s217, 1
      %p221 = scmp.eq.s32.totalorder %s24, 1
      %p222 = scmp.ne.s32.totalorder %s217, %s219
      %p223 = scmp.eq.s32.totalorder %s24, 0
      %p224 = por %p222, %p223
      %p225 = scmp.ne.s32.totalorder %s217, %s219
      %p226 = scmp.eq.s32.totalorder %s29, 1
      %p227 = por %p225, %p226
      %p228 = scmp.ne.s32.totalorder %s219, %s220
      %p229 = scmp.eq.s32.totalorder %s29, 0
      %p230 = por %p228, %p229
      %p231 = scmp.ne.s32.totalorder %s219, %s220
      %p232 = scmp.eq.s32.totalorder %s30, 1
      %p233 = por %p231, %p232
      %p235 = scmp.ne.s32.totalorder %s220, %s234
      %p236 = scmp.eq.s32.totalorder %s30, 0
      %p237 = por %p235, %p236
      %s239 = sadd.s32 %s238, 1
      %p242 = scmp.eq.s32.totalorder %s24, 1
      %p243 = scmp.ne.s32.totalorder %s238, %s240
      %p244 = scmp.eq.s32.totalorder %s24, 0
      %p245 = por %p243, %p244
      %p246 = scmp.ne.s32.totalorder %s238, %s240
      %p247 = scmp.eq.s32.totalorder %s29, 1
      %p248 = por %p246, %p247
      %p249 = scmp.ne.s32.totalorder %s240, %s241
      %p250 = scmp.eq.s32.totalorder %s29, 0
      %p251 = por %p249, %p250
      %p252 = scmp.ne.s32.totalorder %s240, %s241
      %p253 = scmp.eq.s32.totalorder %s30, 1
      %p254 = por %p252, %p253
      %p256 = scmp.ne.s32.totalorder %s241, %s255
      %p257 = scmp.eq.s32.totalorder %s30, 0
      %p258 = por %p256, %p257
      %s260 = sadd.s32 %s259, 1
      %p263 = scmp.eq.s32.totalorder %s24, 1
      %p264 = scmp.ne.s32.totalorder %s259, %s261
      %p265 = scmp.eq.s32.totalorder %s24, 0
      %p266 = por %p264, %p265
      %p267 = scmp.ne.s32.totalorder %s259, %s261
      %p268 = scmp.eq.s32.totalorder %s29, 1
      %p269 = por %p267, %p268
      %p270 = scmp.ne.s32.totalorder %s261, %s262
      %p271 = scmp.eq.s32.totalorder %s29, 0
      %p272 = por %p270, %p271
      %p273 = scmp.ne.s32.totalorder %s261, %s262
      %p274 = scmp.eq.s32.totalorder %s30, 1
      %p275 = por %p273, %p274
      %p277 = scmp.ne.s32.totalorder %s262, %s276
      %p278 = scmp.eq.s32.totalorder %s30, 0
      %p279 = por %p277, %p278
      %s281 = sadd.s32 %s280, 1
      %p284 = scmp.eq.s32.totalorder %s24, 1
      %p285 = scmp.ne.s32.totalorder %s280, %s282
      %p286 = scmp.eq.s32.totalorder %s24, 0
      %p287 = por %p285, %p286
      %p288 = scmp.ne.s32.totalorder %s280, %s282
      %p289 = scmp.eq.s32.totalorder %s29, 1
      %p290 = por %p288, %p289
      %p291 = scmp.ne.s32.totalorder %s282, %s283
      %p292 = scmp.eq.s32.totalorder %s29, 0
      %p293 = por %p291, %p292
      %p294 = scmp.ne.s32.totalorder %s282, %s283
      %p295 = scmp.eq.s32.totalorder %s30, 1
      %p296 = por %p294, %p295
      %p298 = scmp.ne.s32.totalorder %s283, %s297
      %p299 = scmp.eq.s32.totalorder %s30, 0
      %p300 = por %p298, %p299
      %s302 = sadd.s32 %s301, 1
      %p305 = scmp.eq.s32.totalorder %s24, 1
      %p306 = scmp.ne.s32.totalorder %s301, %s303
      %p307 = scmp.eq.s32.totalorder %s24, 0
      %p308 = por %p306, %p307
      %p309 = scmp.ne.s32.totalorder %s301, %s303
      %p310 = scmp.eq.s32.totalorder %s29, 1
      %p311 = por %p309, %p310
      %p312 = scmp.ne.s32.totalorder %s303, %s304
      %p313 = scmp.eq.s32.totalorder %s29, 0
      %p314 = por %p312, %p313
      %p315 = scmp.ne.s32.totalorder %s303, %s304
      %p316 = scmp.eq.s32.totalorder %s30, 1
      %p317 = por %p315, %p316
      %p319 = scmp.ne.s32.totalorder %s304, %s318
      %p320 = scmp.eq.s32.totalorder %s30, 0
      %p321 = por %p319, %p320
      %s322 = ssub.s32 %s31, %s43
      %s323 = ssub.s32 %s32, %s39
      %s324 = sor.u32 %s322, %s323
      %p325 = scmp.eq.s32.totalorder %s324, 0
      %s327 = sadd.s32 %s326, 1
      %s328 = scalar_select %p325, %s326, %s327
      %p331 = pneg %p325
      %p332 = scmp.eq.s32.totalorder %s24, 1
      %p333 = por %p331, %p332
      %p334 = scmp.ne.s32.totalorder %s326, %s329
      %p335 = scmp.eq.s32.totalorder %s24, 0
      %p336 = por %p334, %p335
      %p337 = scmp.ne.s32.totalorder %s326, %s329
      %p338 = scmp.eq.s32.totalorder %s29, 1
      %p339 = por %p337, %p338
      %p340 = scmp.ne.s32.totalorder %s329, %s330
      %p341 = scmp.eq.s32.totalorder %s29, 0
      %p342 = por %p340, %p341
      %p343 = scmp.ne.s32.totalorder %s329, %s330
      %p344 = scmp.eq.s32.totalorder %s30, 1
      %p345 = por %p343, %p344
      %p347 = scmp.ne.s32.totalorder %s330, %s346
      %p348 = scmp.eq.s32.totalorder %s30, 0
      %p349 = por %p347, %p348
      %p350 = scmp.le.s32.totalorder 1, %s24
      %p351 = scmp.lt.s32.totalorder %s24, 3
      %p352 = pnand %p350, %p351
      %p353 = pneg %p352
      // Predicated region
      $region9: #{bidirectional_triangle_attention.2} parent=5 // pred_check
        _
      $region10: #{bidirectional_triangle_attention.2} parent=5 // pred_check_branch
        %355 = sbr.rel (%p352) target = $region12
      $region11: #{bidirectional_triangle_attention.2} parent=5 // pred_region
        %s356 = ssub.s32 %s24, 1
        // Predicated region
        $region13: #{bidirectional_triangle_attention.2} parent=11 // pred_check
          %p357 = pneg %p167
        $region14: #{bidirectional_triangle_attention.2} parent=11 // pred_check_branch
          %359 = sbr.rel (%p357) target = $region16
        $region15: #{bidirectional_triangle_attention.2} parent=11 // pred_region
          _
        $region16: #{bidirectional_triangle_attention.2} parent=11 // pred_fallthru
          _
        // Predicated region
        $region17: #{bidirectional_triangle_attention.2} parent=11 // pred_check
          %p360 = pneg %p188
        $region18: #{bidirectional_triangle_attention.2} parent=11 // pred_check_branch
          %362 = sbr.rel (%p360) target = $region20
        $region19: #{bidirectional_triangle_attention.2} parent=11 // pred_region
          _
        $region20: #{bidirectional_triangle_attention.2} parent=11 // pred_fallthru
          _
        // Predicated region
        $region21: #{bidirectional_triangle_attention.2} parent=11 // pred_check
          %p363 = pneg %p209
        $region22: #{bidirectional_triangle_attention.2} parent=11 // pred_check_branch
          %365 = sbr.rel (%p363) target = $region24
        $region23: #{bidirectional_triangle_attention.2} parent=11 // pred_region
          _
        $region24: #{bidirectional_triangle_attention.2} parent=11 // pred_fallthru
          _
        // Predicated region
        $region25: #{bidirectional_triangle_attention.2} parent=11 // pred_check
          %p366 = pneg %p230
        $region26: #{bidirectional_triangle_attention.2} parent=11 // pred_check_branch
          %368 = sbr.rel (%p366) target = $region28
        $region27: #{bidirectional_triangle_attention.2} parent=11 // pred_region
          %s370 = ssub.s32 512, 512
          %371 = vsyncadd [#allocation6], %s370
          %s372 = sshll.u32 [#allocation5], 4
          %s373 = int_to_ptr.vmem [resolvable:$true] %s372
          %378 = dma.hbm_to_vmem [thread:$0]  %s7, 512, %s373, [#allocation6], 128, 128, 8
        $region28: #{bidirectional_triangle_attention.2} parent=11 // pred_fallthru
          _
        // Predicated region
        $region29: #{bidirectional_triangle_attention.2} parent=11 // pred_check
          %p379 = pneg %p251
        $region30: #{bidirectional_triangle_attention.2} parent=11 // pred_check_branch
          %381 = sbr.rel (%p379) target = $region32
        $region31: #{bidirectional_triangle_attention.2} parent=11 // pred_region
          %s383 = ssub.s32 16, 16
          %384 = vsyncadd [#allocation6], %s383
          %s386 = sshll.u32 [#allocation7], 4
          %s387 = int_to_ptr.vmem [resolvable:$true] %s386
          %389 = dma.hbm_to_vmem [thread:$0]  %s8, 16, %s387, [#allocation6]
        $region32: #{bidirectional_triangle_attention.2} parent=11 // pred_fallthru
          _
        // Predicated region
        $region33: #{bidirectional_triangle_attention.2} parent=11 // pred_check
          %p390 = pneg %p272
        $region34: #{bidirectional_triangle_attention.2} parent=11 // pred_check_branch
          %392 = sbr.rel (%p390) target = $region36
        $region35: #{bidirectional_triangle_attention.2} parent=11 // pred_region
          %s394 = ssub.s32 512, 512
          %395 = vsyncadd [#allocation9], %s394
          %s396 = sshll.u32 [#allocation8], 4
          %s397 = int_to_ptr.vmem [resolvable:$true] %s396
          %402 = dma.hbm_to_vmem [thread:$0]  %s9, 512, %s397, [#allocation9], 128, 128, 8
        $region36: #{bidirectional_triangle_attention.2} parent=11 // pred_fallthru
          _
        // Predicated region
        $region37: #{bidirectional_triangle_attention.2} parent=11 // pred_check
          %p403 = pneg %p293
        $region38: #{bidirectional_triangle_attention.2} parent=11 // pred_check_branch
          %405 = sbr.rel (%p403) target = $region40
        $region39: #{bidirectional_triangle_attention.2} parent=11 // pred_region
          %s407 = ssub.s32 512, 512
          %408 = vsyncadd [#allocation9], %s407
          %s409 = sshll.u32 [#allocation10], 4
          %s410 = int_to_ptr.vmem [resolvable:$true] %s409
          %415 = dma.hbm_to_vmem [thread:$0]  %s10, 512, %s410, [#allocation9], 128, 128, 8
        $region40: #{bidirectional_triangle_attention.2} parent=11 // pred_fallthru
          _
        // Predicated region
        $region41: #{bidirectional_triangle_attention.2} parent=11 // pred_check
          %p416 = pneg %p314
        $region42: #{bidirectional_triangle_attention.2} parent=11 // pred_check_branch
          %418 = sbr.rel (%p416) target = $region44
        $region43: #{bidirectional_triangle_attention.2} parent=11 // pred_region
          %s420 = ssub.s32 16, 16
          %421 = vsyncadd [#allocation12], %s420
          %s423 = sshll.u32 [#allocation11], 4
          %s424 = int_to_ptr.vmem [resolvable:$true] %s423
          %426 = dma.hbm_to_vmem [thread:$0]  %s11, 16, %s424, [#allocation12]
        $region44: #{bidirectional_triangle_attention.2} parent=11 // pred_fallthru
          _
      $region12: #{bidirectional_triangle_attention.2} parent=5 // pred_fallthru
        _
      %p427 = scmp.lt.s32.totalorder %s24, 2
      // Predicated region
      $region45: #{bidirectional_triangle_attention.2} parent=5 // pred_check
        %p428 = pneg %p427
      $region46: #{bidirectional_triangle_attention.2} parent=5 // pred_check_branch
        %430 = sbr.rel (%p428) target = $region48
      $region47: #{bidirectional_triangle_attention.2} parent=5 // pred_region
        // Predicated region
        $region49: #{bidirectional_triangle_attention.2} parent=47 // pred_check
          %p431 = pneg %p58
        $region50: #{bidirectional_triangle_attention.2} parent=47 // pred_check_branch
          %433 = sbr.rel (%p431) target = $region52
        $region51: #{bidirectional_triangle_attention.2} parent=47 // pred_region
          %s434 = smul.u32 2, %s32
          %p435 = scmp.lt.s32.totalorder %s31, 1
          %s436 = scalar_select %p435, %s31, 1
          %p437 = scmp.lt.s32.totalorder %s434, 1
          %s438 = scalar_select %p437, %s434, 1
          %s439 = smul.addr %s436, 2
          %s440 = sadd.s32 %s438, %s439
          %s441 = smul.addr %s440, 8
          %s442 = scalar_lea.vmem %s0, %s441
          %s443 = smul.u32 2, %s32
        $region52: #{bidirectional_triangle_attention.2} parent=47 // pred_fallthru
          _
        // Predicated region
        $region53: #{bidirectional_triangle_attention.2} parent=47 // pred_check
          %p444 = pneg %p84
        $region54: #{bidirectional_triangle_attention.2} parent=47 // pred_check_branch
          %446 = sbr.rel (%p444) target = $region56
        $region55: #{bidirectional_triangle_attention.2} parent=47 // pred_region
          %p447 = scmp.lt.s32.totalorder %s31, 1
          %s448 = scalar_select %p447, %s31, 1
          %s449 = smul.addr %s448, 8
          %s450 = scalar_lea.vmem %s1, %s449
        $region56: #{bidirectional_triangle_attention.2} parent=47 // pred_fallthru
          _
        // Predicated region
        $region57: #{bidirectional_triangle_attention.2} parent=47 // pred_check
          %p451 = pneg %p112
        $region58: #{bidirectional_triangle_attention.2} parent=47 // pred_check_branch
          %453 = sbr.rel (%p451) target = $region60
        $region59: #{bidirectional_triangle_attention.2} parent=47 // pred_region
          %s454 = sand.u32 %s102, 1
          %s455 = scalar_lea.sflag [#allocation4], %s454
          %s456 = sand.u32 %s102, 1
          %s457 = smul.addr %s456, 128
          %s458 = scalar_lea.vmem [#allocation3], %s457
          %s459 = smul.u32 16, %s32
          %s461 = ssub.s32 2048, 2048
          %462 = vsyncadd %s455, %s461
          %s463 = smul.addr %s31, 16
          %s464 = sadd.s32 %s459, %s463
          %s465 = smul.addr %s464, 128
          %s466 = scalar_lea.hbm %s2, %s465
          %s467 = sshll.u32 %s458, 4
          %s468 = int_to_ptr.vmem [resolvable:$true] %s467
          %473 = dma.hbm_to_vmem [thread:$0]  %s466, 2048, %s468, %s455, 128, 128, 8
        $region60: #{bidirectional_triangle_attention.2} parent=47 // pred_fallthru
          _
        // Predicated region
        $region61: #{bidirectional_triangle_attention.2} parent=47 // pred_check
          %p474 = pneg %p140
        $region62: #{bidirectional_triangle_attention.2} parent=47 // pred_check_branch
          %476 = sbr.rel (%p474) target = $region64
        $region63: #{bidirectional_triangle_attention.2} parent=47 // pred_region
          %s477 = smul.u32 2, %s32
          %p478 = scmp.lt.s32.totalorder %s31, 1
          %s479 = scalar_select %p478, %s31, 1
          %p480 = scmp.lt.s32.totalorder %s477, 1
          %s481 = scalar_select %p480, %s477, 1
          %s482 = smul.addr %s479, 2
          %s483 = sadd.s32 %s481, %s482
          %s484 = smul.addr %s483, 8
          %s485 = scalar_lea.vmem %s3, %s484
          %s486 = smul.u32 2, %s32
        $region64: #{bidirectional_triangle_attention.2} parent=47 // pred_fallthru
          _
      $region48: #{bidirectional_triangle_attention.2} parent=5 // pred_fallthru
        _
      %p487 = scmp.le.s32.totalorder 1, %s24
      %p488 = scmp.lt.s32.totalorder %s24, 3
      %p489 = pnand %p487, %p488
      %p490 = pneg %p489
      // Predicated region
      $region65: #{bidirectional_triangle_attention.2} parent=5 // pred_check
        _
      $region66: #{bidirectional_triangle_attention.2} parent=5 // pred_check_branch
        %492 = sbr.rel (%p489) target = $region68
      $region67: #{bidirectional_triangle_attention.2} parent=5 // pred_region
        %s493 = ssub.s32 %s24, 1
        %s494 = sand.u32 %s105, 1
        %s495 = scalar_lea.sflag [#allocation4], %s494
        %s496 = sand.u32 %s105, 1
        %s497 = smul.addr %s496, 128
        %s498 = scalar_lea.vmem [#allocation3], %s497
        // Predicated region
        $region69: #{bidirectional_triangle_attention.2} parent=67 // pred_check
          %p499 = pneg %p118
        $region70: #{bidirectional_triangle_attention.2} parent=67 // pred_check_branch
          %501 = sbr.rel (%p499) target = $region72
        $region71: #{bidirectional_triangle_attention.2} parent=67 // pred_region
          %502 = dma.done %s495, 2048
        $region72: #{bidirectional_triangle_attention.2} parent=67 // pred_fallthru
          _
        // Predicated region
        $region73: #{bidirectional_triangle_attention.2} parent=67 // pred_check
          %p503 = pneg %p230
        $region74: #{bidirectional_triangle_attention.2} parent=67 // pred_check_branch
          %505 = sbr.rel (%p503) target = $region76
        $region75: #{bidirectional_triangle_attention.2} parent=67 // pred_region
          %506 = dma.done [#allocation6], 512
        $region76: #{bidirectional_triangle_attention.2} parent=67 // pred_fallthru
          _
        // Predicated region
        $region77: #{bidirectional_triangle_attention.2} parent=67 // pred_check
          %p507 = pneg %p251
        $region78: #{bidirectional_triangle_attention.2} parent=67 // pred_check_branch
          %509 = sbr.rel (%p507) target = $region80
        $region79: #{bidirectional_triangle_attention.2} parent=67 // pred_region
          %510 = dma.done [#allocation6], 16
        $region80: #{bidirectional_triangle_attention.2} parent=67 // pred_fallthru
          _
        // Predicated region
        $region81: #{bidirectional_triangle_attention.2} parent=67 // pred_check
          %p511 = pneg %p272
        $region82: #{bidirectional_triangle_attention.2} parent=67 // pred_check_branch
          %513 = sbr.rel (%p511) target = $region84
        $region83: #{bidirectional_triangle_attention.2} parent=67 // pred_region
          %514 = dma.done [#allocation9], 512
        $region84: #{bidirectional_triangle_attention.2} parent=67 // pred_fallthru
          _
        // Predicated region
        $region85: #{bidirectional_triangle_attention.2} parent=67 // pred_check
          %p515 = pneg %p293
        $region86: #{bidirectional_triangle_attention.2} parent=67 // pred_check_branch
          %517 = sbr.rel (%p515) target = $region88
        $region87: #{bidirectional_triangle_attention.2} parent=67 // pred_region
          %518 = dma.done [#allocation9], 512
        $region88: #{bidirectional_triangle_attention.2} parent=67 // pred_fallthru
          _
        // Predicated region
        $region89: #{bidirectional_triangle_attention.2} parent=67 // pred_check
          %p519 = pneg %p314
        $region90: #{bidirectional_triangle_attention.2} parent=67 // pred_check_branch
          %521 = sbr.rel (%p519) target = $region92
        $region91: #{bidirectional_triangle_attention.2} parent=67 // pred_region
          %522 = dma.done [#allocation12], 16
        $region92: #{bidirectional_triangle_attention.2} parent=67 // pred_fallthru
          _
        %s523 = smul.u32 2, %s34
        %p524 = scmp.lt.s32.totalorder %s33, 1
        %s525 = scalar_select %p524, %s33, 1
        %p526 = scmp.lt.s32.totalorder %s523, 1
        %s527 = scalar_select %p526, %s523, 1
        %s528 = smul.addr %s525, 2
        %s529 = sadd.s32 %s527, %s528
        %s530 = smul.addr %s529, 8
        %s531 = scalar_lea.vmem %s0, %s530
        %p532 = pneg %p64
        %p533 = pneg %p61
        %p534 = scmp.lt.s32.totalorder %s33, 1
        %s535 = scalar_select %p534, %s33, 1
        %s536 = smul.addr %s535, 8
        %s537 = scalar_lea.vmem %s1, %s536
        %p538 = pneg %p90
        %p539 = pneg %p87
        %s540 = sand.u32 %s105, 1
        %s541 = scalar_lea.sflag [#allocation4], %s540
        %s542 = sand.u32 %s105, 1
        %s543 = smul.addr %s542, 128
        %s544 = scalar_lea.vmem [#allocation3], %s543
        %p545 = pneg %p118
        %p546 = pneg %p115
        %s547 = smul.u32 2, %s34
        %p548 = scmp.lt.s32.totalorder %s33, 1
        %s549 = scalar_select %p548, %s33, 1
        %p550 = scmp.lt.s32.totalorder %s547, 1
        %s551 = scalar_select %p550, %s547, 1
        %s552 = smul.addr %s549, 2
        %s553 = sadd.s32 %s551, %s552
        %s554 = smul.addr %s553, 8
        %s555 = scalar_lea.vmem %s3, %s554
        %p556 = pneg %p146
        %p557 = pneg %p143
        %p558 = pneg %p167
        %p559 = pneg %p164
        %p560 = pneg %p188
        %p561 = pneg %p185
        %p562 = pneg %p209
        %p563 = pneg %p206
        %p564 = pneg %p230
        %p565 = pneg %p227
        %p566 = pneg %p251
        %p567 = pneg %p248
        %p568 = pneg %p272
        %p569 = pneg %p269
        %p570 = pneg %p293
        %p571 = pneg %p290
        %p572 = pneg %p314
        %p573 = pneg %p311
        %p574 = pneg %p342
        %p575 = pneg %p339
        %s576 = smul.u32 2, %s34
        %p577 = scmp.lt.s32.totalorder %s33, 1
        %s578 = scalar_select %p577, %s33, 1
        %p579 = scmp.lt.s32.totalorder %s576, 1
        %s580 = scalar_select %p579, %s576, 1
        %s581 = smul.addr %s578, 2
        %s582 = sadd.s32 %s580, %s581
        %s583 = smul.addr %s582, 8
        %s584 = scalar_lea.vmem %s12, %s583
        %s585 = smul.u32 2, %s34
        %p586 = scmp.lt.s32.totalorder %s33, 1
        %s587 = scalar_select %p586, %s33, 1
        %p588 = scmp.lt.s32.totalorder %s585, 1
        %s589 = scalar_select %p588, %s585, 1
        %s590 = smul.addr %s587, 2
        %s591 = sadd.s32 %s589, %s590
        %s592 = smul.addr %s591, 8
        %s593 = scalar_lea.vmem %s0, %s592
        %s594 = smul.u32 2, %s34
        %p595 = scmp.lt.s32.totalorder %s33, 1
        %s596 = scalar_select %p595, %s33, 1
        %s597 = smul.addr %s596, 8
        %s598 = scalar_lea.vmem %s1, %s597
        %s599 = smul.u32 16, %s34
        %s600 = smul.u32 2, %s34
        %p601 = scmp.lt.s32.totalorder %s33, 1
        %s602 = scalar_select %p601, %s33, 1
        %p603 = scmp.lt.s32.totalorder %s600, 1
        %s604 = scalar_select %p603, %s600, 1
        %s605 = smul.addr %s602, 2
        %s606 = sadd.s32 %s604, %s605
        %s607 = smul.addr %s606, 8
        %s608 = scalar_lea.vmem %s3, %s607
        %s609 = smul.u32 2, %s34
        %s610 = smul.u32 2, %s34
        %p611 = scmp.lt.s32.totalorder %s33, 1
        %s612 = scalar_select %p611, %s33, 1
        %p613 = scmp.lt.s32.totalorder %s610, 1
        %s614 = scalar_select %p613, %s610, 1
        %s615 = smul.addr %s612, 2
        %s616 = sadd.s32 %s614, %s615
        %s617 = smul.addr %s616, 8
        %s618 = scalar_lea.vmem %s12, %s617
        %s619 = smul.u32 2, %s34
        %v620 = vld [vmem:[%s4] sm:$0x1]
        %v621 = vld [vmem:[%s5] sm:$0x1]
        %p622 = scmp.eq.s32.totalorder %s34, 0
        // Predicated region
        $region93: #{bidirectional_triangle_attention.2} parent=67 // pred_check
          %p623 = pneg %p622
        $region94: #{bidirectional_triangle_attention.2} parent=67 // pred_check_branch
          %625 = sbr.rel (%p623) target = $region96
        $region95: #{bidirectional_triangle_attention.2} parent=67 // pred_region
          %v626 = vld [vmem:[%s598] sm:$0xff]
          %vm627 = vcmask 261120
          %v628 = vsel %vm627, %v626, 0.0
          %629 = vadd.xlane.f32.xlu0 %v628
          %v630 = vpop.xlane.xlu0 %629
          %v631 = vrcp.pop 32.0
          %v632 = vmul.f32 %v630, %v631
          %v633 = vsub.f32 %v626, %v632
          %v634 = vmul.f32 %v633, %v633
          %v635 = vsel %vm627, %v634, 0.0
          %636 = vadd.xlane.f32.xlu0 %v635
          %v637 = vpop.xlane.xlu0 %636
          %v638 = vmul.f32 %v637, %v631
          %v639 = vadd.f32 %v638, 1e-05
          %v640 = vrsqrt.pop %v639
          %v641 = vmul.f32 %v633, %v640
          %v643 = vlaneseq
          %v644 = vshrl.u32 %v643, 7
          %v645 = vsub.s32 0, %v644
          %v646 = vrot.slane %v620, %v645
          %v648 = vmul.f32 %v641, %v646
          %v650 = vlaneseq
          %v651 = vshrl.u32 %v650, 7
          %v652 = vsub.s32 0, %v651
          %v653 = vrot.slane %v621, %v652
          %v655 = vadd.f32 %v648, %v653
          %v656 = vld [vmem:[#allocation8] sm:$0xff]
          %v657 = vld [vmem:[#allocation8 + $0x8] sm:$0xff]
          %v658 = vld [vmem:[#allocation8 + $0x10] sm:$0xff]
          %v659 = vld [vmem:[#allocation8 + $0x18] sm:$0xff]
          %v661 = vsel %vm627, %v655, 0
          %663 = vmatprep.subr.mxu0 0.0
          %664 = vmatpush1.msra.mxu0 0.0
          %665 = vmatprep.subr.mxu0 0.0
          %666 = vmatpush1.msra.mxu0 0.0
          %667 = vmatprep.subr.mxu0 0.0
          %668 = vmatpush1.msra.mxu0 0.0
          %669 = vmatprep.subr.mxu0 0.0
          %670 = vmatpush1.msra.mxu0 0.0
          %671 = vmatprep.subr.mxu0 0.0
          %672 = vmatpush1.msra.mxu0 0.0
          %673 = vmatprep.subr.mxu0 0.0
          %674 = vmatpush1.msra.mxu0 0.0
          %675 = vmatprep.subr.mxu0 0.0
          %676 = vmatpush1.msra.mxu0 0.0
          %677 = vmatprep.subr.mxu0 0.0
          %678 = vmatpush1.msra.mxu0 0.0
          %679 = vmatprep.subr.mxu0 0.0
          %680 = vmatpush1.msra.mxu0 0.0
          %681 = vmatprep.subr.mxu0 0.0
          %682 = vmatpush1.msra.mxu0 0.0
          %683 = vmatprep.subr.mxu0 0.0
          %684 = vmatpush1.msra.mxu0 0.0
          %685 = vmatprep.subr.mxu0 0.0
          %686 = vmatpush1.msra.mxu0 0.0
          %687 = vmatprep.subr.mxu0 0.0
          %688 = vmatpush1.msra.mxu0 %v659
          %689 = vmatprep.subr.mxu0 0.0
          %690 = vmatpush1.msra.mxu0 %v658
          %691 = vmatprep.subr.mxu0 0.0
          %692 = vmatpush1.msra.mxu0 %v657
          %693 = vmatprep.subr.mxu0 0.0
          %694 = vmatpush1.msra.mxu0 %v656
          %695 = vmatprep.subr.mxu0 0.0
          %696 = vmatpush2.msra.mxu0 0.0
          %697 = vmatprep.subr.mxu0 0.0
          %698 = vmatpush2.msra.mxu0 0.0
          %699 = vmatprep.subr.mxu0 0.0
          %700 = vmatpush2.msra.mxu0 0.0
          %701 = vmatprep.subr.mxu0 0.0
          %702 = vmatpush2.msra.mxu0 0.0
          %703 = vmatprep.subr.mxu0 0.0
          %704 = vmatpush2.msra.mxu0 0.0
          %705 = vmatprep.subr.mxu0 0.0
          %706 = vmatpush2.msra.mxu0 0.0
          %707 = vmatprep.subr.mxu0 0.0
          %708 = vmatpush2.msra.mxu0 0.0
          %709 = vmatprep.subr.mxu0 0.0
          %710 = vmatpush2.msra.mxu0 0.0
          %711 = vmatprep.subr.mxu0 0.0
          %712 = vmatpush2.msra.mxu0 0.0
          %713 = vmatprep.subr.mxu0 0.0
          %714 = vmatpush2.msra.mxu0 0.0
          %715 = vmatprep.subr.mxu0 0.0
          %716 = vmatpush2.msra.mxu0 0.0
          %717 = vmatprep.subr.mxu0 0.0
          %718 = vmatpush2.msra.mxu0 0.0
          %719 = vmatprep.subr.mxu0 0.0
          %720 = vmatpush2.msra.mxu0 0.0
          %721 = vmatprep.subr.mxu0 0.0
          %722 = vmatpush2.msra.mxu0 0.0
          %723 = vmatprep.subr.mxu0 0.0
          %724 = vmatpush2.msra.mxu0 0.0
          %725 = vmatprep.subr.mxu0 0.0
          %726 = vmatpush2.msra.mxu0 0.0
          %727 = vmatprep.mubr.f32.mxu0 0.0
          %728 = vmatmul.mubr.f32.gmra.mxu0 %v661
          %v729 = vpop.f32.mrf.mxu0
          %v730 = vadd.f32 0.0, %v729
          %v731 = vpop.f32.mrf.mxu0
          %732 = vdwg.mxu0
          %vm733 = vcmask 523264
          %734 = vst.msk [vmem:[#allocation2] sm:$0xff] %vm733, %v730
        $region96: #{bidirectional_triangle_attention.2} parent=67 // pred_fallthru
          _
        %v735 = vld [vmem:[#allocation2] sm:$0xff]
        %v736 = vld [vmem:[%s593] sm:$0xff]
        %v737 = vld [vmem:[%s593 + $0x8] sm:$0xff]
        %vm738 = vcmask 261120
        %v739 = vsel %vm738, %v736, 0.0
        %740 = vadd.xlane.f32.xlu0 %v739
        %v741 = vpop.xlane.xlu0 %740
        %v742 = vsel %vm738, %v737, 0.0
        %743 = vadd.xlane.f32.xlu0 %v742
        %v744 = vpop.xlane.xlu0 %743
        %v745 = vrcp.pop 32.0
        %v746 = vmul.f32 %v741, %v745
        %v747 = vmul.f32 %v744, %v745
        %v748 = vsub.f32 %v736, %v746
        %v749 = vsub.f32 %v737, %v747
        %v750 = vmul.f32 %v748, %v748
        %v751 = vmul.f32 %v749, %v749
        %v752 = vsel %vm738, %v750, 0.0
        %753 = vadd.xlane.f32.xlu0 %v752
        %v754 = vpop.xlane.xlu0 %753
        %v755 = vsel %vm738, %v751, 0.0
        %756 = vadd.xlane.f32.xlu0 %v755
        %v757 = vpop.xlane.xlu0 %756
        %v758 = vmul.f32 %v754, %v745
        %v759 = vmul.f32 %v757, %v745
        %v760 = vadd.f32 %v758, 1e-05
        %v761 = vadd.f32 %v759, 1e-05
        %v762 = vrsqrt.pop %v760
        %v763 = vrsqrt.pop %v761
        %v764 = vmul.f32 %v748, %v762
        %v765 = vmul.f32 %v749, %v763
        %v767 = vlaneseq
        %v768 = vshrl.u32 %v767, 7
        %v769 = vsub.s32 0, %v768
        %v770 = vrot.slane %v620, %v769
        %v772 = vmul.f32 %v764, %v770
        %v773 = vmul.f32 %v765, %v770
        %v775 = vlaneseq
        %v776 = vshrl.u32 %v775, 7
        %v777 = vsub.s32 0, %v776
        %v778 = vrot.slane %v621, %v777
        %v780 = vadd.f32 %v772, %v778
        %v781 = vadd.f32 %v773, %v778
        %v782 = vld [vmem:[#allocation5] sm:$0xff]
        %v783 = vld [vmem:[#allocation5 + $0x8] sm:$0xff]
        %v784 = vld [vmem:[#allocation5 + $0x10] sm:$0xff]
        %v785 = vld [vmem:[#allocation5 + $0x18] sm:$0xff]
        %v787 = vsel %vm738, %v780, 0
        %v790 = vsel %vm738, %v781, 0
        %792 = vmatprep.subr.mxu0 0.0
        %793 = vmatpush1.msra.mxu0 0.0
        %794 = vmatprep.subr.mxu0 0.0
        %795 = vmatpush1.msra.mxu0 0.0
        %796 = vmatprep.subr.mxu0 0.0
        %797 = vmatpush1.msra.mxu0 0.0
        %798 = vmatprep.subr.mxu0 0.0
        %799 = vmatpush1.msra.mxu0 0.0
        %800 = vmatprep.subr.mxu0 0.0
        %801 = vmatpush1.msra.mxu0 0.0
        %802 = vmatprep.subr.mxu0 0.0
        %803 = vmatpush1.msra.mxu0 0.0
        %804 = vmatprep.subr.mxu0 0.0
        %805 = vmatpush1.msra.mxu0 0.0
        %806 = vmatprep.subr.mxu0 0.0
        %807 = vmatpush1.msra.mxu0 0.0
        %808 = vmatprep.subr.mxu0 0.0
        %809 = vmatpush1.msra.mxu0 0.0
        %810 = vmatprep.subr.mxu0 0.0
        %811 = vmatpush1.msra.mxu0 0.0
        %812 = vmatprep.subr.mxu0 0.0
        %813 = vmatpush1.msra.mxu0 0.0
        %814 = vmatprep.subr.mxu0 0.0
        %815 = vmatpush1.msra.mxu0 0.0
        %816 = vmatprep.subr.mxu0 0.0
        %817 = vmatpush1.msra.mxu0 %v785
        %818 = vmatprep.subr.mxu0 0.0
        %819 = vmatpush1.msra.mxu0 %v784
        %820 = vmatprep.subr.mxu0 0.0
        %821 = vmatpush1.msra.mxu0 %v783
        %822 = vmatprep.subr.mxu0 0.0
        %823 = vmatpush1.msra.mxu0 %v782
        %824 = vmatprep.subr.mxu0 0.0
        %825 = vmatpush2.msra.mxu0 0.0
        %826 = vmatprep.subr.mxu0 0.0
        %827 = vmatpush2.msra.mxu0 0.0
        %828 = vmatprep.subr.mxu0 0.0
        %829 = vmatpush2.msra.mxu0 0.0
        %830 = vmatprep.subr.mxu0 0.0
        %831 = vmatpush2.msra.mxu0 0.0
        %832 = vmatprep.subr.mxu0 0.0
        %833 = vmatpush2.msra.mxu0 0.0
        %834 = vmatprep.subr.mxu0 0.0
        %835 = vmatpush2.msra.mxu0 0.0
        %836 = vmatprep.subr.mxu0 0.0
        %837 = vmatpush2.msra.mxu0 0.0
        %838 = vmatprep.subr.mxu0 0.0
        %839 = vmatpush2.msra.mxu0 0.0
        %840 = vmatprep.subr.mxu0 0.0
        %841 = vmatpush2.msra.mxu0 0.0
        %842 = vmatprep.subr.mxu0 0.0
        %843 = vmatpush2.msra.mxu0 0.0
        %844 = vmatprep.subr.mxu0 0.0
        %845 = vmatpush2.msra.mxu0 0.0
        %846 = vmatprep.subr.mxu0 0.0
        %847 = vmatpush2.msra.mxu0 0.0
        %848 = vmatprep.subr.mxu0 0.0
        %849 = vmatpush2.msra.mxu0 0.0
        %850 = vmatprep.subr.mxu0 0.0
        %851 = vmatpush2.msra.mxu0 0.0
        %852 = vmatprep.subr.mxu0 0.0
        %853 = vmatpush2.msra.mxu0 0.0
        %854 = vmatprep.subr.mxu0 0.0
        %855 = vmatpush2.msra.mxu0 0.0
        %856 = vmatprep.mubr.f32.mxu0 0.0
        %857 = vmatmul.mubr.f32.gmra.mxu0 %v787
        %v858 = vpop.f32.mrf.mxu0
        %v859 = vadd.f32 0.0, %v858
        %v860 = vpop.f32.mrf.mxu0
        %861 = vmatprep.mubr.f32.mxu0 0.0
        %862 = vmatmul.mubr.f32.gmra.mxu0 %v790
        %v863 = vpop.f32.mrf.mxu0
        %v864 = vadd.f32 0.0, %v863
        %v865 = vpop.f32.mrf.mxu0
        %866 = vdwg.mxu0
        %v867 = vld [vmem:[#allocation7] sm:$0x1]
        %v869 = vlaneseq
        %v870 = vshrl.u32 %v869, 7
        %v871 = vsub.s32 0, %v870
        %v872 = vrot.slane %v867, %v871
        %873 = vrot.lane.b32.xlu0 %v872, 32
        %v874 = vpop.permute.xlu0 %873
        %v876 = vadd.f32 %v859, %v874
        %v877 = vadd.f32 %v864, %v874
        %v878 = vxor.u32 %v876, 2147483648
        %v879 = vxor.u32 %v877, 2147483648
        %v880 = vmul.f32 %v878, 1.442695
        %v881 = vpow.pop %v880
        %v882 = vmul.f32 %v879, 1.442695
        %v883 = vpow.pop %v882
        %v884 = vadd.f32 %v881, 1.0
        %v885 = vadd.f32 %v883, 1.0
        %v886 = vrcp.pop %v884
        %v887 = vmul.f32 1.0, %v886
        %v888 = vrcp.pop %v885
        %v889 = vmul.f32 1.0, %v888
        %v890 = vld [vmem:[%s498] sm:$0xff]
        %v891 = vld [vmem:[%s498 + $0x8] sm:$0xff]
        %v892 = vld [vmem:[%s498 + $0x10] sm:$0xff]
        %v893 = vld [vmem:[%s498 + $0x18] sm:$0xff]
        %v894 = vld [vmem:[%s498 + $0x20] sm:$0xff]
        %v895 = vld [vmem:[%s498 + $0x28] sm:$0xff]
        %v896 = vld [vmem:[%s498 + $0x30] sm:$0xff]
        %v897 = vld [vmem:[%s498 + $0x38] sm:$0xff]
        %v898 = vld [vmem:[%s498 + $0x40] sm:$0xff]
        %v899 = vld [vmem:[%s498 + $0x48] sm:$0xff]
        %v900 = vld [vmem:[%s498 + $0x50] sm:$0xff]
        %v901 = vld [vmem:[%s498 + $0x58] sm:$0xff]
        %v902 = vld [vmem:[%s498 + $0x60] sm:$0xff]
        %v903 = vld [vmem:[%s498 + $0x68] sm:$0xff]
        %v904 = vld [vmem:[%s498 + $0x70] sm:$0xff]
        %v905 = vld [vmem:[%s498 + $0x78] sm:$0xff]
        %v906 = vld [vmem:[%s6] sm:$0xf]
        %v908 = vsel %vm738, %v906, 0
        %v911 = vsel %vm738, %v890, 0
        %v914 = vsel %vm738, %v891, 0
        %v917 = vsel %vm738, %v892, 0
        %v920 = vsel %vm738, %v893, 0
        %v923 = vsel %vm738, %v894, 0
        %v926 = vsel %vm738, %v895, 0
        %v929 = vsel %vm738, %v896, 0
        %v932 = vsel %vm738, %v897, 0
        %v935 = vsel %vm738, %v898, 0
        %v938 = vsel %vm738, %v899, 0
        %v941 = vsel %vm738, %v900, 0
        %v944 = vsel %vm738, %v901, 0
        %v947 = vsel %vm738, %v902, 0
        %v950 = vsel %vm738, %v903, 0
        %v953 = vsel %vm738, %v904, 0
        %v956 = vsel %vm738, %v905, 0
        %958 = vmatprep.subr.mxu0 0.0
        %959 = vmatpush1.xpose.msra.mxu0 %v956
        %960 = vmatprep.subr.mxu0 0.0
        %961 = vmatpush1.xpose.msra.mxu0 %v953
        %962 = vmatprep.subr.mxu0 0.0
        %963 = vmatpush1.xpose.msra.mxu0 %v950
        %964 = vmatprep.subr.mxu0 0.0
        %965 = vmatpush1.xpose.msra.mxu0 %v947
        %966 = vmatprep.subr.mxu0 0.0
        %967 = vmatpush1.xpose.msra.mxu0 %v944
        %968 = vmatprep.subr.mxu0 0.0
        %969 = vmatpush1.xpose.msra.mxu0 %v941
        %970 = vmatprep.subr.mxu0 0.0
        %971 = vmatpush1.xpose.msra.mxu0 %v938
        %972 = vmatprep.subr.mxu0 0.0
        %973 = vmatpush1.xpose.msra.mxu0 %v935
        %974 = vmatprep.subr.mxu0 0.0
        %975 = vmatpush1.xpose.msra.mxu0 %v932
        %976 = vmatprep.subr.mxu0 0.0
        %977 = vmatpush1.xpose.msra.mxu0 %v929
        %978 = vmatprep.subr.mxu0 0.0
        %979 = vmatpush1.xpose.msra.mxu0 %v926
        %980 = vmatprep.subr.mxu0 0.0
        %981 = vmatpush1.xpose.msra.mxu0 %v923
        %982 = vmatprep.subr.mxu0 0.0
        %983 = vmatpush1.xpose.msra.mxu0 %v920
        %984 = vmatprep.subr.mxu0 0.0
        %985 = vmatpush1.xpose.msra.mxu0 %v917
        %986 = vmatprep.subr.mxu0 0.0
        %987 = vmatpush1.xpose.msra.mxu0 %v914
        %988 = vmatprep.subr.mxu0 0.0
        %989 = vmatpush1.xpose.msra.mxu0 %v911
        %990 = vmatprep.subr.mxu0 0.0
        %991 = vmatpush2.xpose.msra.mxu0 0.0
        %992 = vmatprep.subr.mxu0 0.0
        %993 = vmatpush2.xpose.msra.mxu0 0.0
        %994 = vmatprep.subr.mxu0 0.0
        %995 = vmatpush2.xpose.msra.mxu0 0.0
        %996 = vmatprep.subr.mxu0 0.0
        %997 = vmatpush2.xpose.msra.mxu0 0.0
        %998 = vmatprep.subr.mxu0 0.0
        %999 = vmatpush2.xpose.msra.mxu0 0.0
        %1000 = vmatprep.subr.mxu0 0.0
        %1001 = vmatpush2.xpose.msra.mxu0 0.0
        %1002 = vmatprep.subr.mxu0 0.0
        %1003 = vmatpush2.xpose.msra.mxu0 0.0
        %1004 = vmatprep.subr.mxu0 0.0
        %1005 = vmatpush2.xpose.msra.mxu0 0.0
        %1006 = vmatprep.subr.mxu0 0.0
        %1007 = vmatpush2.xpose.msra.mxu0 0.0
        %1008 = vmatprep.subr.mxu0 0.0
        %1009 = vmatpush2.xpose.msra.mxu0 0.0
        %1010 = vmatprep.subr.mxu0 0.0
        %1011 = vmatpush2.xpose.msra.mxu0 0.0
        %1012 = vmatprep.subr.mxu0 0.0
        %1013 = vmatpush2.xpose.msra.mxu0 0.0
        %1014 = vmatprep.subr.mxu0 0.0
        %1015 = vmatpush2.xpose.msra.mxu0 0.0
        %1016 = vmatprep.subr.mxu0 0.0
        %1017 = vmatpush2.xpose.msra.mxu0 0.0
        %1018 = vmatprep.subr.mxu0 0.0
        %1019 = vmatpush2.xpose.msra.mxu0 0.0
        %1020 = vmatprep.subr.mxu0 0.0
        %1021 = vmatpush2.xpose.msra.mxu0 0.0
        %1022 = vmatprep.mubr.f32.mxu0 0.0
        %1023 = vmatmul.mubr.f32.gmra.mxu0 %v908
        %v1024 = vpop.f32.mrf.mxu0
        %v1025 = vadd.f32 0.0, %v1024
        %v1026 = vpop.f32.mrf.mxu0
        %1027 = vdwg.mxu0
        %1029 = vrot.lane.b32.xlu0 %v1025, 120
        %v1030 = vpop.permute.xlu0 %1029
        %1032 = vrot.lane.b32.xlu0 %v1025, 112
        %v1033 = vpop.permute.xlu0 %1032
        %1035 = vrot.lane.b32.xlu0 %v1025, 104
        %v1036 = vpop.permute.xlu0 %1035
        %1038 = vrot.lane.b32.xlu0 %v1025, 96
        %v1039 = vpop.permute.xlu0 %1038
        %1041 = vrot.lane.b32.xlu0 %v1025, 88
        %v1042 = vpop.permute.xlu0 %1041
        %1044 = vrot.lane.b32.xlu0 %v1025, 80
        %v1045 = vpop.permute.xlu0 %1044
        %1047 = vrot.lane.b32.xlu0 %v1025, 72
        %v1048 = vpop.permute.xlu0 %1047
        %1050 = vrot.lane.b32.xlu0 %v1025, 64
        %v1051 = vpop.permute.xlu0 %1050
        %1053 = vrot.lane.b32.xlu0 %v1025, 56
        %v1054 = vpop.permute.xlu0 %1053
        %1056 = vrot.lane.b32.xlu0 %v1025, 48
        %v1057 = vpop.permute.xlu0 %1056
        %1059 = vrot.lane.b32.xlu0 %v1025, 40
        %v1060 = vpop.permute.xlu0 %1059
        %1062 = vrot.lane.b32.xlu0 %v1025, 32
        %v1063 = vpop.permute.xlu0 %1062
        %1065 = vrot.lane.b32.xlu0 %v1025, 24
        %v1066 = vpop.permute.xlu0 %1065
        %1068 = vrot.lane.b32.xlu0 %v1025, 16
        %v1069 = vpop.permute.xlu0 %1068
        %1071 = vrot.lane.b32.xlu0 %v1025, 8
        %v1072 = vpop.permute.xlu0 %1071
        %v1074 = vcombine.low %v1025, %v1033
        %v1076 = vunpack.c.l.s4 1983009808
        %v1077 = vunpack.c.0.s8 %v1076
        %v1078 = vlaneseq
        %v1079 = vshrl.u32 %v1078, 7
        %v1080 = vsub.s32 %v1077, %v1079
        %v1081 = vrot.slane %v1074, %v1080
        %v1082 = vcombine.low %v1030, %v1036
        %v1084 = vunpack.c.l.s4 1983009808
        %v1085 = vunpack.c.0.s8 %v1084
        %v1086 = vlaneseq
        %v1087 = vshrl.u32 %v1086, 7
        %v1088 = vsub.s32 %v1085, %v1087
        %v1089 = vrot.slane %v1082, %v1088
        %v1090 = vcombine.low %v1039, %v1045
        %v1092 = vunpack.c.l.s4 1983009808
        %v1093 = vunpack.c.0.s8 %v1092
        %v1094 = vlaneseq
        %v1095 = vshrl.u32 %v1094, 7
        %v1096 = vsub.s32 %v1093, %v1095
        %v1097 = vrot.slane %v1090, %v1096
        %v1098 = vcombine.low %v1042, %v1048
        %v1100 = vunpack.c.l.s4 1983009808
        %v1101 = vunpack.c.0.s8 %v1100
        %v1102 = vlaneseq
        %v1103 = vshrl.u32 %v1102, 7
        %v1104 = vsub.s32 %v1101, %v1103
        %v1105 = vrot.slane %v1098, %v1104
        %v1106 = vcombine.low %v1081, %v1089
        %v1107 = vcombine.high %v1081, %v1089
        %v1109 = vunpack.c.l.s4 1934713408
        %v1110 = vunpack.c.0.s8 %v1109
        %v1111 = vlaneseq
        %v1112 = vshrl.u32 %v1111, 7
        %v1113 = vsub.s32 %v1110, %v1112
        %v1114 = vrot.slane %v1106, %v1113
        %v1116 = vunpack.c.l.s4 1934713408
        %v1117 = vunpack.c.0.s8 %v1116
        %v1118 = vlaneseq
        %v1119 = vshrl.u32 %v1118, 7
        %v1120 = vsub.s32 %v1117, %v1119
        %v1121 = vrot.slane %v1107, %v1120
        %v1122 = vcombine.low %v1097, %v1105
        %v1123 = vcombine.high %v1097, %v1105
        %v1125 = vunpack.c.l.s4 1934713408
        %v1126 = vunpack.c.0.s8 %v1125
        %v1127 = vlaneseq
        %v1128 = vshrl.u32 %v1127, 7
        %v1129 = vsub.s32 %v1126, %v1128
        %v1130 = vrot.slane %v1122, %v1129
        %v1132 = vunpack.c.l.s4 1934713408
        %v1133 = vunpack.c.0.s8 %v1132
        %v1134 = vlaneseq
        %v1135 = vshrl.u32 %v1134, 7
        %v1136 = vsub.s32 %v1133, %v1135
        %v1137 = vrot.slane %v1123, %v1136
        %v1138 = vcombine.low %v1114, %v1130
        %v1139 = vcombine.high %v1114, %v1130
        %v1140 = vcombine.low %v1121, %v1137
        %v1141 = vcombine.high %v1121, %v1137
        %v1142 = vcombine.low %v1051, %v1057
        %v1144 = vunpack.c.l.s4 1983009808
        %v1145 = vunpack.c.0.s8 %v1144
        %v1146 = vlaneseq
        %v1147 = vshrl.u32 %v1146, 7
        %v1148 = vsub.s32 %v1145, %v1147
        %v1149 = vrot.slane %v1142, %v1148
        %v1150 = vcombine.low %v1054, %v1060
        %v1152 = vunpack.c.l.s4 1983009808
        %v1153 = vunpack.c.0.s8 %v1152
        %v1154 = vlaneseq
        %v1155 = vshrl.u32 %v1154, 7
        %v1156 = vsub.s32 %v1153, %v1155
        %v1157 = vrot.slane %v1150, %v1156
        %v1158 = vcombine.low %v1063, %v1069
        %v1160 = vunpack.c.l.s4 1983009808
        %v1161 = vunpack.c.0.s8 %v1160
        %v1162 = vlaneseq
        %v1163 = vshrl.u32 %v1162, 7
        %v1164 = vsub.s32 %v1161, %v1163
        %v1165 = vrot.slane %v1158, %v1164
        %v1166 = vcombine.low %v1066, %v1072
        %v1168 = vunpack.c.l.s4 1983009808
        %v1169 = vunpack.c.0.s8 %v1168
        %v1170 = vlaneseq
        %v1171 = vshrl.u32 %v1170, 7
        %v1172 = vsub.s32 %v1169, %v1171
        %v1173 = vrot.slane %v1166, %v1172
        %v1174 = vcombine.low %v1149, %v1157
        %v1175 = vcombine.high %v1149, %v1157
        %v1177 = vunpack.c.l.s4 1934713408
        %v1178 = vunpack.c.0.s8 %v1177
        %v1179 = vlaneseq
        %v1180 = vshrl.u32 %v1179, 7
        %v1181 = vsub.s32 %v1178, %v1180
        %v1182 = vrot.slane %v1174, %v1181
        %v1184 = vunpack.c.l.s4 1934713408
        %v1185 = vunpack.c.0.s8 %v1184
        %v1186 = vlaneseq
        %v1187 = vshrl.u32 %v1186, 7
        %v1188 = vsub.s32 %v1185, %v1187
        %v1189 = vrot.slane %v1175, %v1188
        %v1190 = vcombine.low %v1165, %v1173
        %v1191 = vcombine.high %v1165, %v1173
        %v1193 = vunpack.c.l.s4 1934713408
        %v1194 = vunpack.c.0.s8 %v1193
        %v1195 = vlaneseq
        %v1196 = vshrl.u32 %v1195, 7
        %v1197 = vsub.s32 %v1194, %v1196
        %v1198 = vrot.slane %v1190, %v1197
        %v1200 = vunpack.c.l.s4 1934713408
        %v1201 = vunpack.c.0.s8 %v1200
        %v1202 = vlaneseq
        %v1203 = vshrl.u32 %v1202, 7
        %v1204 = vsub.s32 %v1201, %v1203
        %v1205 = vrot.slane %v1191, %v1204
        %v1206 = vcombine.low %v1182, %v1198
        %v1207 = vcombine.high %v1182, %v1198
        %v1208 = vcombine.low %v1189, %v1205
        %v1209 = vcombine.high %v1189, %v1205
        %v1210 = vld [vmem:[%s608] sm:$0xff]
        %v1211 = vld [vmem:[%s608 + $0x8] sm:$0xff]
        %v1212 = vsub.f32 %v1210, 1.0
        %v1213 = vsub.f32 %v1211, 1.0
        %v1214 = vmul.f32 %v1212, 1e+09
        %v1215 = vmul.f32 %v1213, 1e+09
        %v1216 = vadd.f32 %v1138, %v1214
        %v1217 = vadd.f32 %v1206, %v1215
        %vm1218 = vcmask 64512
        %v1220 = vsel %vm1218, %v859, 0
        %v1223 = vsel %vm1218, %v864, 0
        %v1226 = vsel %vm1218, %v735, 0
        %1228 = vmatprep.subr.mxu0 0.0
        %1229 = vmatpush1.xpose.msra.mxu0 0.0
        %1230 = vmatprep.subr.mxu0 0.0
        %1231 = vmatpush1.xpose.msra.mxu0 0.0
        %1232 = vmatprep.subr.mxu0 0.0
        %1233 = vmatpush1.xpose.msra.mxu0 0.0
        %1234 = vmatprep.subr.mxu0 0.0
        %1235 = vmatpush1.xpose.msra.mxu0 0.0
        %1236 = vmatprep.subr.mxu0 0.0
        %1237 = vmatpush1.xpose.msra.mxu0 0.0
        %1238 = vmatprep.subr.mxu0 0.0
        %1239 = vmatpush1.xpose.msra.mxu0 0.0
        %1240 = vmatprep.subr.mxu0 0.0
        %1241 = vmatpush1.xpose.msra.mxu0 0.0
        %1242 = vmatprep.subr.mxu0 0.0
        %1243 = vmatpush1.xpose.msra.mxu0 0.0
        %1244 = vmatprep.subr.mxu0 0.0
        %1245 = vmatpush1.xpose.msra.mxu0 0.0
        %1246 = vmatprep.subr.mxu0 0.0
        %1247 = vmatpush1.xpose.msra.mxu0 0.0
        %1248 = vmatprep.subr.mxu0 0.0
        %1249 = vmatpush1.xpose.msra.mxu0 0.0
        %1250 = vmatprep.subr.mxu0 0.0
        %1251 = vmatpush1.xpose.msra.mxu0 0.0
        %1252 = vmatprep.subr.mxu0 0.0
        %1253 = vmatpush1.xpose.msra.mxu0 0.0
        %1254 = vmatprep.subr.mxu0 0.0
        %1255 = vmatpush1.xpose.msra.mxu0 0.0
        %1256 = vmatprep.subr.mxu0 0.0
        %1257 = vmatpush1.xpose.msra.mxu0 0.0
        %1258 = vmatprep.subr.mxu0 0.0
        %1259 = vmatpush1.xpose.msra.mxu0 %v1226
        %1260 = vmatprep.subr.mxu0 0.0
        %1261 = vmatpush2.xpose.msra.mxu0 0.0
        %1262 = vmatprep.subr.mxu0 0.0
        %1263 = vmatpush2.xpose.msra.mxu0 0.0
        %1264 = vmatprep.subr.mxu0 0.0
        %1265 = vmatpush2.xpose.msra.mxu0 0.0
        %1266 = vmatprep.subr.mxu0 0.0
        %1267 = vmatpush2.xpose.msra.mxu0 0.0
        %1268 = vmatprep.subr.mxu0 0.0
        %1269 = vmatpush2.xpose.msra.mxu0 0.0
        %1270 = vmatprep.subr.mxu0 0.0
        %1271 = vmatpush2.xpose.msra.mxu0 0.0
        %1272 = vmatprep.subr.mxu0 0.0
        %1273 = vmatpush2.xpose.msra.mxu0 0.0
        %1274 = vmatprep.subr.mxu0 0.0
        %1275 = vmatpush2.xpose.msra.mxu0 0.0
        %1276 = vmatprep.subr.mxu0 0.0
        %1277 = vmatpush2.xpose.msra.mxu0 0.0
        %1278 = vmatprep.subr.mxu0 0.0
        %1279 = vmatpush2.xpose.msra.mxu0 0.0
        %1280 = vmatprep.subr.mxu0 0.0
        %1281 = vmatpush2.xpose.msra.mxu0 0.0
        %1282 = vmatprep.subr.mxu0 0.0
        %1283 = vmatpush2.xpose.msra.mxu0 0.0
        %1284 = vmatprep.subr.mxu0 0.0
        %1285 = vmatpush2.xpose.msra.mxu0 0.0
        %1286 = vmatprep.subr.mxu0 0.0
        %1287 = vmatpush2.xpose.msra.mxu0 0.0
        %1288 = vmatprep.subr.mxu0 0.0
        %1289 = vmatpush2.xpose.msra.mxu0 0.0
        %1290 = vmatprep.subr.mxu0 0.0
        %1291 = vmatpush2.xpose.msra.mxu0 0.0
        %1292 = vmatprep.mubr.f32.mxu0 0.0
        %1293 = vmatmul.mubr.f32.gmra.mxu0 %v1220
        %v1294 = vpop.f32.mrf.mxu0
        %v1295 = vadd.f32 %v1216, %v1294
        %v1296 = vpop.f32.mrf.mxu0
        %1297 = vmatprep.mubr.f32.mxu0 0.0
        %1298 = vmatmul.mubr.f32.gmra.mxu0 %v1223
        %v1299 = vpop.f32.mrf.mxu0
        %v1300 = vadd.f32 %v1217, %v1299
        %v1301 = vpop.f32.mrf.mxu0
        %1302 = vdwg.mxu0
        %v1303 = vsel %vm1218, %v1295, -inf
        %1304 = vmax.xlane.f32.xlu0 %v1303
        %v1305 = vpop.xlane.xlu0 %1304
        %v1306 = vsel %vm1218, %v1300, -inf
        %1307 = vmax.xlane.f32.xlu0 %v1306
        %v1308 = vpop.xlane.xlu0 %1307
        %v1309 = vsub.f32 %v1295, %v1305
        %v1310 = vsub.f32 %v1300, %v1308
        %v1311 = vmul.f32 %v1309, 1.442695
        %v1312 = vpow.pop %v1311
        %v1313 = vmul.f32 %v1310, 1.442695
        %v1314 = vpow.pop %v1313
        %v1315 = vsel %vm1218, %v1312, 0.0
        %1316 = vadd.xlane.f32.xlu0 %v1315
        %v1317 = vpop.xlane.xlu0 %1316
        %v1318 = vsel %vm1218, %v1314, 0.0
        %1319 = vadd.xlane.f32.xlu0 %v1318
        %v1320 = vpop.xlane.xlu0 %1319
        %v1321 = vrcp.pop %v1317
        %v1322 = vrcp.pop %v1320
        %v1323 = vmul.f32 %v1312, %v1321
        %v1324 = vmul.f32 %v1314, %v1322
        %1325 = vrot.lane.b32.xlu0 %v735, 96
        %v1326 = vpop.permute.xlu0 %1325
        %v1329 = vsel %vm1218, %v1323, 0
        %v1332 = vsel %vm1218, %v1324, 0
        %1334 = vmatprep.subr.mxu0 0.0
        %1335 = vmatpush1.msra.mxu0 0.0
        %1336 = vmatprep.subr.mxu0 0.0
        %1337 = vmatpush1.msra.mxu0 0.0
        %1338 = vmatprep.subr.mxu0 0.0
        %1339 = vmatpush1.msra.mxu0 0.0
        %1340 = vmatprep.subr.mxu0 0.0
        %1341 = vmatpush1.msra.mxu0 0.0
        %1342 = vmatprep.subr.mxu0 0.0
        %1343 = vmatpush1.msra.mxu0 0.0
        %1344 = vmatprep.subr.mxu0 0.0
        %1345 = vmatpush1.msra.mxu0 0.0
        %1346 = vmatprep.subr.mxu0 0.0
        %1347 = vmatpush1.msra.mxu0 0.0
        %1348 = vmatprep.subr.mxu0 0.0
        %1349 = vmatpush1.msra.mxu0 0.0
        %1350 = vmatprep.subr.mxu0 0.0
        %1351 = vmatpush1.msra.mxu0 0.0
        %1352 = vmatprep.subr.mxu0 0.0
        %1353 = vmatpush1.msra.mxu0 0.0
        %1354 = vmatprep.subr.mxu0 0.0
        %1355 = vmatpush1.msra.mxu0 0.0
        %1356 = vmatprep.subr.mxu0 0.0
        %1357 = vmatpush1.msra.mxu0 0.0
        %1358 = vmatprep.subr.mxu0 0.0
        %1359 = vmatpush1.msra.mxu0 0.0
        %1360 = vmatprep.subr.mxu0 0.0
        %1361 = vmatpush1.msra.mxu0 0.0
        %1362 = vmatprep.subr.mxu0 0.0
        %1363 = vmatpush1.msra.mxu0 0.0
        %1364 = vmatprep.subr.mxu0 0.0
        %1365 = vmatpush1.msra.mxu0 %v1326
        %1366 = vmatprep.subr.mxu0 0.0
        %1367 = vmatpush2.msra.mxu0 0.0
        %1368 = vmatprep.subr.mxu0 0.0
        %1369 = vmatpush2.msra.mxu0 0.0
        %1370 = vmatprep.subr.mxu0 0.0
        %1371 = vmatpush2.msra.mxu0 0.0
        %1372 = vmatprep.subr.mxu0 0.0
        %1373 = vmatpush2.msra.mxu0 0.0
        %1374 = vmatprep.subr.mxu0 0.0
        %1375 = vmatpush2.msra.mxu0 0.0
        %1376 = vmatprep.subr.mxu0 0.0
        %1377 = vmatpush2.msra.mxu0 0.0
        %1378 = vmatprep.subr.mxu0 0.0
        %1379 = vmatpush2.msra.mxu0 0.0
        %1380 = vmatprep.subr.mxu0 0.0
        %1381 = vmatpush2.msra.mxu0 0.0
        %1382 = vmatprep.subr.mxu0 0.0
        %1383 = vmatpush2.msra.mxu0 0.0
        %1384 = vmatprep.subr.mxu0 0.0
        %1385 = vmatpush2.msra.mxu0 0.0
        %1386 = vmatprep.subr.mxu0 0.0
        %1387 = vmatpush2.msra.mxu0 0.0
        %1388 = vmatprep.subr.mxu0 0.0
        %1389 = vmatpush2.msra.mxu0 0.0
        %1390 = vmatprep.subr.mxu0 0.0
        %1391 = vmatpush2.msra.mxu0 0.0
        %1392 = vmatprep.subr.mxu0 0.0
        %1393 = vmatpush2.msra.mxu0 0.0
        %1394 = vmatprep.subr.mxu0 0.0
        %1395 = vmatpush2.msra.mxu0 0.0
        %1396 = vmatprep.subr.mxu0 0.0
        %1397 = vmatpush2.msra.mxu0 0.0
        %1398 = vmatprep.mubr.f32.mxu0 0.0
        %1399 = vmatmul.mubr.f32.gmra.mxu0 %v1329
        %v1400 = vpop.f32.mrf.mxu0
        %v1401 = vadd.f32 0.0, %v1400
        %v1402 = vpop.f32.mrf.mxu0
        %1403 = vmatprep.mubr.f32.mxu0 0.0
        %1404 = vmatmul.mubr.f32.gmra.mxu0 %v1332
        %v1405 = vpop.f32.mrf.mxu0
        %v1406 = vadd.f32 0.0, %v1405
        %v1407 = vpop.f32.mrf.mxu0
        %1408 = vdwg.mxu0
        %v1409 = vadd.f32 %v1139, %v1214
        %v1410 = vadd.f32 %v1207, %v1215
        %1411 = vrot.lane.b32.xlu0 %v859, 120
        %v1412 = vpop.permute.xlu0 %1411
        %1413 = vrot.lane.b32.xlu0 %v864, 120
        %v1414 = vpop.permute.xlu0 %1413
        %1415 = vrot.lane.b32.xlu0 %v735, 120
        %v1416 = vpop.permute.xlu0 %1415
        %v1417 = vsel %vm1218, %v1412, 0
        %v1419 = vsel %vm1218, %v1414, 0
        %v1421 = vsel %vm1218, %v1416, 0
        %1423 = vmatprep.subr.mxu0 0.0
        %1424 = vmatpush1.xpose.msra.mxu0 0.0
        %1425 = vmatprep.subr.mxu0 0.0
        %1426 = vmatpush1.xpose.msra.mxu0 0.0
        %1427 = vmatprep.subr.mxu0 0.0
        %1428 = vmatpush1.xpose.msra.mxu0 0.0
        %1429 = vmatprep.subr.mxu0 0.0
        %1430 = vmatpush1.xpose.msra.mxu0 0.0
        %1431 = vmatprep.subr.mxu0 0.0
        %1432 = vmatpush1.xpose.msra.mxu0 0.0
        %1433 = vmatprep.subr.mxu0 0.0
        %1434 = vmatpush1.xpose.msra.mxu0 0.0
        %1435 = vmatprep.subr.mxu0 0.0
        %1436 = vmatpush1.xpose.msra.mxu0 0.0
        %1437 = vmatprep.subr.mxu0 0.0
        %1438 = vmatpush1.xpose.msra.mxu0 0.0
        %1439 = vmatprep.subr.mxu0 0.0
        %1440 = vmatpush1.xpose.msra.mxu0 0.0
        %1441 = vmatprep.subr.mxu0 0.0
        %1442 = vmatpush1.xpose.msra.mxu0 0.0
        %1443 = vmatprep.subr.mxu0 0.0
        %1444 = vmatpush1.xpose.msra.mxu0 0.0
        %1445 = vmatprep.subr.mxu0 0.0
        %1446 = vmatpush1.xpose.msra.mxu0 0.0
        %1447 = vmatprep.subr.mxu0 0.0
        %1448 = vmatpush1.xpose.msra.mxu0 0.0
        %1449 = vmatprep.subr.mxu0 0.0
        %1450 = vmatpush1.xpose.msra.mxu0 0.0
        %1451 = vmatprep.subr.mxu0 0.0
        %1452 = vmatpush1.xpose.msra.mxu0 0.0
        %1453 = vmatprep.subr.mxu0 0.0
        %1454 = vmatpush1.xpose.msra.mxu0 %v1421
        %1455 = vmatprep.subr.mxu0 0.0
        %1456 = vmatpush2.xpose.msra.mxu0 0.0
        %1457 = vmatprep.subr.mxu0 0.0
        %1458 = vmatpush2.xpose.msra.mxu0 0.0
        %1459 = vmatprep.subr.mxu0 0.0
        %1460 = vmatpush2.xpose.msra.mxu0 0.0
        %1461 = vmatprep.subr.mxu0 0.0
        %1462 = vmatpush2.xpose.msra.mxu0 0.0
        %1463 = vmatprep.subr.mxu0 0.0
        %1464 = vmatpush2.xpose.msra.mxu0 0.0
        %1465 = vmatprep.subr.mxu0 0.0
        %1466 = vmatpush2.xpose.msra.mxu0 0.0
        %1467 = vmatprep.subr.mxu0 0.0
        %1468 = vmatpush2.xpose.msra.mxu0 0.0
        %1469 = vmatprep.subr.mxu0 0.0
        %1470 = vmatpush2.xpose.msra.mxu0 0.0
        %1471 = vmatprep.subr.mxu0 0.0
        %1472 = vmatpush2.xpose.msra.mxu0 0.0
        %1473 = vmatprep.subr.mxu0 0.0
        %1474 = vmatpush2.xpose.msra.mxu0 0.0
        %1475 = vmatprep.subr.mxu0 0.0
        %1476 = vmatpush2.xpose.msra.mxu0 0.0
        %1477 = vmatprep.subr.mxu0 0.0
        %1478 = vmatpush2.xpose.msra.mxu0 0.0
        %1479 = vmatprep.subr.mxu0 0.0
        %1480 = vmatpush2.xpose.msra.mxu0 0.0
        %1481 = vmatprep.subr.mxu0 0.0
        %1482 = vmatpush2.xpose.msra.mxu0 0.0
        %1483 = vmatprep.subr.mxu0 0.0
        %1484 = vmatpush2.xpose.msra.mxu0 0.0
        %1485 = vmatprep.subr.mxu0 0.0
        %1486 = vmatpush2.xpose.msra.mxu0 0.0
        %1487 = vmatprep.mubr.f32.mxu0 0.0
        %1488 = vmatmul.mubr.f32.gmra.mxu0 %v1417
        %v1489 = vpop.f32.mrf.mxu0
        %v1490 = vadd.f32 %v1409, %v1489
        %v1491 = vpop.f32.mrf.mxu0
        %1492 = vmatprep.mubr.f32.mxu0 0.0
        %1493 = vmatmul.mubr.f32.gmra.mxu0 %v1419
        %v1494 = vpop.f32.mrf.mxu0
        %v1495 = vadd.f32 %v1410, %v1494
        %v1496 = vpop.f32.mrf.mxu0
        %1497 = vdwg.mxu0
        %v1498 = vsel %vm1218, %v1490, -inf
        %1499 = vmax.xlane.f32.xlu0 %v1498
        %v1500 = vpop.xlane.xlu0 %1499
        %v1501 = vsel %vm1218, %v1495, -inf
        %1502 = vmax.xlane.f32.xlu0 %v1501
        %v1503 = vpop.xlane.xlu0 %1502
        %v1504 = vsub.f32 %v1490, %v1500
        %v1505 = vsub.f32 %v1495, %v1503
        %v1506 = vmul.f32 %v1504, 1.442695
        %v1507 = vpow.pop %v1506
        %v1508 = vmul.f32 %v1505, 1.442695
        %v1509 = vpow.pop %v1508
        %v1510 = vsel %vm1218, %v1507, 0.0
        %1511 = vadd.xlane.f32.xlu0 %v1510
        %v1512 = vpop.xlane.xlu0 %1511
        %v1513 = vsel %vm1218, %v1509, 0.0
        %1514 = vadd.xlane.f32.xlu0 %v1513
        %v1515 = vpop.xlane.xlu0 %1514
        %v1516 = vrcp.pop %v1512
        %v1517 = vrcp.pop %v1515
        %v1518 = vmul.f32 %v1507, %v1516
        %v1519 = vmul.f32 %v1509, %v1517
        %1520 = vrot.lane.b32.xlu0 %v735, 88
        %v1521 = vpop.permute.xlu0 %1520
        %v1524 = vsel %vm1218, %v1518, 0
        %v1527 = vsel %vm1218, %v1519, 0
        %1529 = vmatprep.subr.mxu0 0.0
        %1530 = vmatpush1.msra.mxu0 0.0
        %1531 = vmatprep.subr.mxu0 0.0
        %1532 = vmatpush1.msra.mxu0 0.0
        %1533 = vmatprep.subr.mxu0 0.0
        %1534 = vmatpush1.msra.mxu0 0.0
        %1535 = vmatprep.subr.mxu0 0.0
        %1536 = vmatpush1.msra.mxu0 0.0
        %1537 = vmatprep.subr.mxu0 0.0
        %1538 = vmatpush1.msra.mxu0 0.0
        %1539 = vmatprep.subr.mxu0 0.0
        %1540 = vmatpush1.msra.mxu0 0.0
        %1541 = vmatprep.subr.mxu0 0.0
        %1542 = vmatpush1.msra.mxu0 0.0
        %1543 = vmatprep.subr.mxu0 0.0
        %1544 = vmatpush1.msra.mxu0 0.0
        %1545 = vmatprep.subr.mxu0 0.0
        %1546 = vmatpush1.msra.mxu0 0.0
        %1547 = vmatprep.subr.mxu0 0.0
        %1548 = vmatpush1.msra.mxu0 0.0
        %1549 = vmatprep.subr.mxu0 0.0
        %1550 = vmatpush1.msra.mxu0 0.0
        %1551 = vmatprep.subr.mxu0 0.0
        %1552 = vmatpush1.msra.mxu0 0.0
        %1553 = vmatprep.subr.mxu0 0.0
        %1554 = vmatpush1.msra.mxu0 0.0
        %1555 = vmatprep.subr.mxu0 0.0
        %1556 = vmatpush1.msra.mxu0 0.0
        %1557 = vmatprep.subr.mxu0 0.0
        %1558 = vmatpush1.msra.mxu0 0.0
        %1559 = vmatprep.subr.mxu0 0.0
        %1560 = vmatpush1.msra.mxu0 %v1521
        %1561 = vmatprep.subr.mxu0 0.0
        %1562 = vmatpush2.msra.mxu0 0.0
        %1563 = vmatprep.subr.mxu0 0.0
        %1564 = vmatpush2.msra.mxu0 0.0
        %1565 = vmatprep.subr.mxu0 0.0
        %1566 = vmatpush2.msra.mxu0 0.0
        %1567 = vmatprep.subr.mxu0 0.0
        %1568 = vmatpush2.msra.mxu0 0.0
        %1569 = vmatprep.subr.mxu0 0.0
        %1570 = vmatpush2.msra.mxu0 0.0
        %1571 = vmatprep.subr.mxu0 0.0
        %1572 = vmatpush2.msra.mxu0 0.0
        %1573 = vmatprep.subr.mxu0 0.0
        %1574 = vmatpush2.msra.mxu0 0.0
        %1575 = vmatprep.subr.mxu0 0.0
        %1576 = vmatpush2.msra.mxu0 0.0
        %1577 = vmatprep.subr.mxu0 0.0
        %1578 = vmatpush2.msra.mxu0 0.0
        %1579 = vmatprep.subr.mxu0 0.0
        %1580 = vmatpush2.msra.mxu0 0.0
        %1581 = vmatprep.subr.mxu0 0.0
        %1582 = vmatpush2.msra.mxu0 0.0
        %1583 = vmatprep.subr.mxu0 0.0
        %1584 = vmatpush2.msra.mxu0 0.0
        %1585 = vmatprep.subr.mxu0 0.0
        %1586 = vmatpush2.msra.mxu0 0.0
        %1587 = vmatprep.subr.mxu0 0.0
        %1588 = vmatpush2.msra.mxu0 0.0
        %1589 = vmatprep.subr.mxu0 0.0
        %1590 = vmatpush2.msra.mxu0 0.0
        %1591 = vmatprep.subr.mxu0 0.0
        %1592 = vmatpush2.msra.mxu0 0.0
        %1593 = vmatprep.mubr.f32.mxu0 0.0
        %1594 = vmatmul.mubr.f32.gmra.mxu0 %v1524
        %v1595 = vpop.f32.mrf.mxu0
        %v1596 = vadd.f32 0.0, %v1595
        %v1597 = vpop.f32.mrf.mxu0
        %1598 = vmatprep.mubr.f32.mxu0 0.0
        %1599 = vmatmul.mubr.f32.gmra.mxu0 %v1527
        %v1600 = vpop.f32.mrf.mxu0
        %v1601 = vadd.f32 0.0, %v1600
        %v1602 = vpop.f32.mrf.mxu0
        %1603 = vdwg.mxu0
        %v1604 = vadd.f32 %v1140, %v1214
        %v1605 = vadd.f32 %v1208, %v1215
        %1606 = vrot.lane.b32.xlu0 %v859, 112
        %v1607 = vpop.permute.xlu0 %1606
        %1608 = vrot.lane.b32.xlu0 %v864, 112
        %v1609 = vpop.permute.xlu0 %1608
        %1610 = vrot.lane.b32.xlu0 %v735, 112
        %v1611 = vpop.permute.xlu0 %1610
        %v1612 = vsel %vm1218, %v1607, 0
        %v1614 = vsel %vm1218, %v1609, 0
        %v1616 = vsel %vm1218, %v1611, 0
        %1618 = vmatprep.subr.mxu0 0.0
        %1619 = vmatpush1.xpose.msra.mxu0 0.0
        %1620 = vmatprep.subr.mxu0 0.0
        %1621 = vmatpush1.xpose.msra.mxu0 0.0
        %1622 = vmatprep.subr.mxu0 0.0
        %1623 = vmatpush1.xpose.msra.mxu0 0.0
        %1624 = vmatprep.subr.mxu0 0.0
        %1625 = vmatpush1.xpose.msra.mxu0 0.0
        %1626 = vmatprep.subr.mxu0 0.0
        %1627 = vmatpush1.xpose.msra.mxu0 0.0
        %1628 = vmatprep.subr.mxu0 0.0
        %1629 = vmatpush1.xpose.msra.mxu0 0.0
        %1630 = vmatprep.subr.mxu0 0.0
        %1631 = vmatpush1.xpose.msra.mxu0 0.0
        %1632 = vmatprep.subr.mxu0 0.0
        %1633 = vmatpush1.xpose.msra.mxu0 0.0
        %1634 = vmatprep.subr.mxu0 0.0
        %1635 = vmatpush1.xpose.msra.mxu0 0.0
        %1636 = vmatprep.subr.mxu0 0.0
        %1637 = vmatpush1.xpose.msra.mxu0 0.0
        %1638 = vmatprep.subr.mxu0 0.0
        %1639 = vmatpush1.xpose.msra.mxu0 0.0
        %1640 = vmatprep.subr.mxu0 0.0
        %1641 = vmatpush1.xpose.msra.mxu0 0.0
        %1642 = vmatprep.subr.mxu0 0.0
        %1643 = vmatpush1.xpose.msra.mxu0 0.0
        %1644 = vmatprep.subr.mxu0 0.0
        %1645 = vmatpush1.xpose.msra.mxu0 0.0
        %1646 = vmatprep.subr.mxu0 0.0
        %1647 = vmatpush1.xpose.msra.mxu0 0.0
        %1648 = vmatprep.subr.mxu0 0.0
        %1649 = vmatpush1.xpose.msra.mxu0 %v1616
        %1650 = vmatprep.subr.mxu0 0.0
        %1651 = vmatpush2.xpose.msra.mxu0 0.0
        %1652 = vmatprep.subr.mxu0 0.0
        %1653 = vmatpush2.xpose.msra.mxu0 0.0
        %1654 = vmatprep.subr.mxu0 0.0
        %1655 = vmatpush2.xpose.msra.mxu0 0.0
        %1656 = vmatprep.subr.mxu0 0.0
        %1657 = vmatpush2.xpose.msra.mxu0 0.0
        %1658 = vmatprep.subr.mxu0 0.0
        %1659 = vmatpush2.xpose.msra.mxu0 0.0
        %1660 = vmatprep.subr.mxu0 0.0
        %1661 = vmatpush2.xpose.msra.mxu0 0.0
        %1662 = vmatprep.subr.mxu0 0.0
        %1663 = vmatpush2.xpose.msra.mxu0 0.0
        %1664 = vmatprep.subr.mxu0 0.0
        %1665 = vmatpush2.xpose.msra.mxu0 0.0
        %1666 = vmatprep.subr.mxu0 0.0
        %1667 = vmatpush2.xpose.msra.mxu0 0.0
        %1668 = vmatprep.subr.mxu0 0.0
        %1669 = vmatpush2.xpose.msra.mxu0 0.0
        %1670 = vmatprep.subr.mxu0 0.0
        %1671 = vmatpush2.xpose.msra.mxu0 0.0
        %1672 = vmatprep.subr.mxu0 0.0
        %1673 = vmatpush2.xpose.msra.mxu0 0.0
        %1674 = vmatprep.subr.mxu0 0.0
        %1675 = vmatpush2.xpose.msra.mxu0 0.0
        %1676 = vmatprep.subr.mxu0 0.0
        %1677 = vmatpush2.xpose.msra.mxu0 0.0
        %1678 = vmatprep.subr.mxu0 0.0
        %1679 = vmatpush2.xpose.msra.mxu0 0.0
        %1680 = vmatprep.subr.mxu0 0.0
        %1681 = vmatpush2.xpose.msra.mxu0 0.0
        %1682 = vmatprep.mubr.f32.mxu0 0.0
        %1683 = vmatmul.mubr.f32.gmra.mxu0 %v1612
        %v1684 = vpop.f32.mrf.mxu0
        %v1685 = vadd.f32 %v1604, %v1684
        %v1686 = vpop.f32.mrf.mxu0
        %1687 = vmatprep.mubr.f32.mxu0 0.0
        %1688 = vmatmul.mubr.f32.gmra.mxu0 %v1614
        %v1689 = vpop.f32.mrf.mxu0
        %v1690 = vadd.f32 %v1605, %v1689
        %v1691 = vpop.f32.mrf.mxu0
        %1692 = vdwg.mxu0
        %v1693 = vsel %vm1218, %v1685, -inf
        %1694 = vmax.xlane.f32.xlu0 %v1693
        %v1695 = vpop.xlane.xlu0 %1694
        %v1696 = vsel %vm1218, %v1690, -inf
        %1697 = vmax.xlane.f32.xlu0 %v1696
        %v1698 = vpop.xlane.xlu0 %1697
        %v1699 = vsub.f32 %v1685, %v1695
        %v1700 = vsub.f32 %v1690, %v1698
        %v1701 = vmul.f32 %v1699, 1.442695
        %v1702 = vpow.pop %v1701
        %v1703 = vmul.f32 %v1700, 1.442695
        %v1704 = vpow.pop %v1703
        %v1705 = vsel %vm1218, %v1702, 0.0
        %1706 = vadd.xlane.f32.xlu0 %v1705
        %v1707 = vpop.xlane.xlu0 %1706
        %v1708 = vsel %vm1218, %v1704, 0.0
        %1709 = vadd.xlane.f32.xlu0 %v1708
        %v1710 = vpop.xlane.xlu0 %1709
        %v1711 = vrcp.pop %v1707
        %v1712 = vrcp.pop %v1710
        %v1713 = vmul.f32 %v1702, %v1711
        %v1714 = vmul.f32 %v1704, %v1712
        %1715 = vrot.lane.b32.xlu0 %v735, 80
        %v1716 = vpop.permute.xlu0 %1715
        %v1719 = vsel %vm1218, %v1713, 0
        %v1722 = vsel %vm1218, %v1714, 0
        %1724 = vmatprep.subr.mxu0 0.0
        %1725 = vmatpush1.msra.mxu0 0.0
        %1726 = vmatprep.subr.mxu0 0.0
        %1727 = vmatpush1.msra.mxu0 0.0
        %1728 = vmatprep.subr.mxu0 0.0
        %1729 = vmatpush1.msra.mxu0 0.0
        %1730 = vmatprep.subr.mxu0 0.0
        %1731 = vmatpush1.msra.mxu0 0.0
        %1732 = vmatprep.subr.mxu0 0.0
        %1733 = vmatpush1.msra.mxu0 0.0
        %1734 = vmatprep.subr.mxu0 0.0
        %1735 = vmatpush1.msra.mxu0 0.0
        %1736 = vmatprep.subr.mxu0 0.0
        %1737 = vmatpush1.msra.mxu0 0.0
        %1738 = vmatprep.subr.mxu0 0.0
        %1739 = vmatpush1.msra.mxu0 0.0
        %1740 = vmatprep.subr.mxu0 0.0
        %1741 = vmatpush1.msra.mxu0 0.0
        %1742 = vmatprep.subr.mxu0 0.0
        %1743 = vmatpush1.msra.mxu0 0.0
        %1744 = vmatprep.subr.mxu0 0.0
        %1745 = vmatpush1.msra.mxu0 0.0
        %1746 = vmatprep.subr.mxu0 0.0
        %1747 = vmatpush1.msra.mxu0 0.0
        %1748 = vmatprep.subr.mxu0 0.0
        %1749 = vmatpush1.msra.mxu0 0.0
        %1750 = vmatprep.subr.mxu0 0.0
        %1751 = vmatpush1.msra.mxu0 0.0
        %1752 = vmatprep.subr.mxu0 0.0
        %1753 = vmatpush1.msra.mxu0 0.0
        %1754 = vmatprep.subr.mxu0 0.0
        %1755 = vmatpush1.msra.mxu0 %v1716
        %1756 = vmatprep.subr.mxu0 0.0
        %1757 = vmatpush2.msra.mxu0 0.0
        %1758 = vmatprep.subr.mxu0 0.0
        %1759 = vmatpush2.msra.mxu0 0.0
        %1760 = vmatprep.subr.mxu0 0.0
        %1761 = vmatpush2.msra.mxu0 0.0
        %1762 = vmatprep.subr.mxu0 0.0
        %1763 = vmatpush2.msra.mxu0 0.0
        %1764 = vmatprep.subr.mxu0 0.0
        %1765 = vmatpush2.msra.mxu0 0.0
        %1766 = vmatprep.subr.mxu0 0.0
        %1767 = vmatpush2.msra.mxu0 0.0
        %1768 = vmatprep.subr.mxu0 0.0
        %1769 = vmatpush2.msra.mxu0 0.0
        %1770 = vmatprep.subr.mxu0 0.0
        %1771 = vmatpush2.msra.mxu0 0.0
        %1772 = vmatprep.subr.mxu0 0.0
        %1773 = vmatpush2.msra.mxu0 0.0
        %1774 = vmatprep.subr.mxu0 0.0
        %1775 = vmatpush2.msra.mxu0 0.0
        %1776 = vmatprep.subr.mxu0 0.0
        %1777 = vmatpush2.msra.mxu0 0.0
        %1778 = vmatprep.subr.mxu0 0.0
        %1779 = vmatpush2.msra.mxu0 0.0
        %1780 = vmatprep.subr.mxu0 0.0
        %1781 = vmatpush2.msra.mxu0 0.0
        %1782 = vmatprep.subr.mxu0 0.0
        %1783 = vmatpush2.msra.mxu0 0.0
        %1784 = vmatprep.subr.mxu0 0.0
        %1785 = vmatpush2.msra.mxu0 0.0
        %1786 = vmatprep.subr.mxu0 0.0
        %1787 = vmatpush2.msra.mxu0 0.0
        %1788 = vmatprep.mubr.f32.mxu0 0.0
        %1789 = vmatmul.mubr.f32.gmra.mxu0 %v1719
        %v1790 = vpop.f32.mrf.mxu0
        %v1791 = vadd.f32 0.0, %v1790
        %v1792 = vpop.f32.mrf.mxu0
        %1793 = vmatprep.mubr.f32.mxu0 0.0
        %1794 = vmatmul.mubr.f32.gmra.mxu0 %v1722
        %v1795 = vpop.f32.mrf.mxu0
        %v1796 = vadd.f32 0.0, %v1795
        %v1797 = vpop.f32.mrf.mxu0
        %1798 = vdwg.mxu0
        %v1799 = vadd.f32 %v1141, %v1214
        %v1800 = vadd.f32 %v1209, %v1215
        %1801 = vrot.lane.b32.xlu0 %v859, 104
        %v1802 = vpop.permute.xlu0 %1801
        %1803 = vrot.lane.b32.xlu0 %v864, 104
        %v1804 = vpop.permute.xlu0 %1803
        %1805 = vrot.lane.b32.xlu0 %v735, 104
        %v1806 = vpop.permute.xlu0 %1805
        %v1807 = vsel %vm1218, %v1802, 0
        %v1809 = vsel %vm1218, %v1804, 0
        %v1811 = vsel %vm1218, %v1806, 0
        %1813 = vmatprep.subr.mxu0 0.0
        %1814 = vmatpush1.xpose.msra.mxu0 0.0
        %1815 = vmatprep.subr.mxu0 0.0
        %1816 = vmatpush1.xpose.msra.mxu0 0.0
        %1817 = vmatprep.subr.mxu0 0.0
        %1818 = vmatpush1.xpose.msra.mxu0 0.0
        %1819 = vmatprep.subr.mxu0 0.0
        %1820 = vmatpush1.xpose.msra.mxu0 0.0
        %1821 = vmatprep.subr.mxu0 0.0
        %1822 = vmatpush1.xpose.msra.mxu0 0.0
        %1823 = vmatprep.subr.mxu0 0.0
        %1824 = vmatpush1.xpose.msra.mxu0 0.0
        %1825 = vmatprep.subr.mxu0 0.0
        %1826 = vmatpush1.xpose.msra.mxu0 0.0
        %1827 = vmatprep.subr.mxu0 0.0
        %1828 = vmatpush1.xpose.msra.mxu0 0.0
        %1829 = vmatprep.subr.mxu0 0.0
        %1830 = vmatpush1.xpose.msra.mxu0 0.0
        %1831 = vmatprep.subr.mxu0 0.0
        %1832 = vmatpush1.xpose.msra.mxu0 0.0
        %1833 = vmatprep.subr.mxu0 0.0
        %1834 = vmatpush1.xpose.msra.mxu0 0.0
        %1835 = vmatprep.subr.mxu0 0.0
        %1836 = vmatpush1.xpose.msra.mxu0 0.0
        %1837 = vmatprep.subr.mxu0 0.0
        %1838 = vmatpush1.xpose.msra.mxu0 0.0
        %1839 = vmatprep.subr.mxu0 0.0
        %1840 = vmatpush1.xpose.msra.mxu0 0.0
        %1841 = vmatprep.subr.mxu0 0.0
        %1842 = vmatpush1.xpose.msra.mxu0 0.0
        %1843 = vmatprep.subr.mxu0 0.0
        %1844 = vmatpush1.xpose.msra.mxu0 %v1811
        %1845 = vmatprep.subr.mxu0 0.0
        %1846 = vmatpush2.xpose.msra.mxu0 0.0
        %1847 = vmatprep.subr.mxu0 0.0
        %1848 = vmatpush2.xpose.msra.mxu0 0.0
        %1849 = vmatprep.subr.mxu0 0.0
        %1850 = vmatpush2.xpose.msra.mxu0 0.0
        %1851 = vmatprep.subr.mxu0 0.0
        %1852 = vmatpush2.xpose.msra.mxu0 0.0
        %1853 = vmatprep.subr.mxu0 0.0
        %1854 = vmatpush2.xpose.msra.mxu0 0.0
        %1855 = vmatprep.subr.mxu0 0.0
        %1856 = vmatpush2.xpose.msra.mxu0 0.0
        %1857 = vmatprep.subr.mxu0 0.0
        %1858 = vmatpush2.xpose.msra.mxu0 0.0
        %1859 = vmatprep.subr.mxu0 0.0
        %1860 = vmatpush2.xpose.msra.mxu0 0.0
        %1861 = vmatprep.subr.mxu0 0.0
        %1862 = vmatpush2.xpose.msra.mxu0 0.0
        %1863 = vmatprep.subr.mxu0 0.0
        %1864 = vmatpush2.xpose.msra.mxu0 0.0
        %1865 = vmatprep.subr.mxu0 0.0
        %1866 = vmatpush2.xpose.msra.mxu0 0.0
        %1867 = vmatprep.subr.mxu0 0.0
        %1868 = vmatpush2.xpose.msra.mxu0 0.0
        %1869 = vmatprep.subr.mxu0 0.0
        %1870 = vmatpush2.xpose.msra.mxu0 0.0
        %1871 = vmatprep.subr.mxu0 0.0
        %1872 = vmatpush2.xpose.msra.mxu0 0.0
        %1873 = vmatprep.subr.mxu0 0.0
        %1874 = vmatpush2.xpose.msra.mxu0 0.0
        %1875 = vmatprep.subr.mxu0 0.0
        %1876 = vmatpush2.xpose.msra.mxu0 0.0
        %1877 = vmatprep.mubr.f32.mxu0 0.0
        %1878 = vmatmul.mubr.f32.gmra.mxu0 %v1807
        %v1879 = vpop.f32.mrf.mxu0
        %v1880 = vadd.f32 %v1799, %v1879
        %v1881 = vpop.f32.mrf.mxu0
        %1882 = vmatprep.mubr.f32.mxu0 0.0
        %1883 = vmatmul.mubr.f32.gmra.mxu0 %v1809
        %v1884 = vpop.f32.mrf.mxu0
        %v1885 = vadd.f32 %v1800, %v1884
        %v1886 = vpop.f32.mrf.mxu0
        %1887 = vdwg.mxu0
        %v1888 = vsel %vm1218, %v1880, -inf
        %1889 = vmax.xlane.f32.xlu0 %v1888
        %v1890 = vpop.xlane.xlu0 %1889
        %v1891 = vsel %vm1218, %v1885, -inf
        %1892 = vmax.xlane.f32.xlu0 %v1891
        %v1893 = vpop.xlane.xlu0 %1892
        %v1894 = vsub.f32 %v1880, %v1890
        %v1895 = vsub.f32 %v1885, %v1893
        %v1896 = vmul.f32 %v1894, 1.442695
        %v1897 = vpow.pop %v1896
        %v1898 = vmul.f32 %v1895, 1.442695
        %v1899 = vpow.pop %v1898
        %v1900 = vsel %vm1218, %v1897, 0.0
        %1901 = vadd.xlane.f32.xlu0 %v1900
        %v1902 = vpop.xlane.xlu0 %1901
        %v1903 = vsel %vm1218, %v1899, 0.0
        %1904 = vadd.xlane.f32.xlu0 %v1903
        %v1905 = vpop.xlane.xlu0 %1904
        %v1906 = vrcp.pop %v1902
        %v1907 = vrcp.pop %v1905
        %v1908 = vmul.f32 %v1897, %v1906
        %v1909 = vmul.f32 %v1899, %v1907
        %1910 = vrot.lane.b32.xlu0 %v735, 72
        %v1911 = vpop.permute.xlu0 %1910
        %v1914 = vsel %vm1218, %v1908, 0
        %v1917 = vsel %vm1218, %v1909, 0
        %1919 = vmatprep.subr.mxu0 0.0
        %1920 = vmatpush1.msra.mxu0 0.0
        %1921 = vmatprep.subr.mxu0 0.0
        %1922 = vmatpush1.msra.mxu0 0.0
        %1923 = vmatprep.subr.mxu0 0.0
        %1924 = vmatpush1.msra.mxu0 0.0
        %1925 = vmatprep.subr.mxu0 0.0
        %1926 = vmatpush1.msra.mxu0 0.0
        %1927 = vmatprep.subr.mxu0 0.0
        %1928 = vmatpush1.msra.mxu0 0.0
        %1929 = vmatprep.subr.mxu0 0.0
        %1930 = vmatpush1.msra.mxu0 0.0
        %1931 = vmatprep.subr.mxu0 0.0
        %1932 = vmatpush1.msra.mxu0 0.0
        %1933 = vmatprep.subr.mxu0 0.0
        %1934 = vmatpush1.msra.mxu0 0.0
        %1935 = vmatprep.subr.mxu0 0.0
        %1936 = vmatpush1.msra.mxu0 0.0
        %1937 = vmatprep.subr.mxu0 0.0
        %1938 = vmatpush1.msra.mxu0 0.0
        %1939 = vmatprep.subr.mxu0 0.0
        %1940 = vmatpush1.msra.mxu0 0.0
        %1941 = vmatprep.subr.mxu0 0.0
        %1942 = vmatpush1.msra.mxu0 0.0
        %1943 = vmatprep.subr.mxu0 0.0
        %1944 = vmatpush1.msra.mxu0 0.0
        %1945 = vmatprep.subr.mxu0 0.0
        %1946 = vmatpush1.msra.mxu0 0.0
        %1947 = vmatprep.subr.mxu0 0.0
        %1948 = vmatpush1.msra.mxu0 0.0
        %1949 = vmatprep.subr.mxu0 0.0
        %1950 = vmatpush1.msra.mxu0 %v1911
        %1951 = vmatprep.subr.mxu0 0.0
        %1952 = vmatpush2.msra.mxu0 0.0
        %1953 = vmatprep.subr.mxu0 0.0
        %1954 = vmatpush2.msra.mxu0 0.0
        %1955 = vmatprep.subr.mxu0 0.0
        %1956 = vmatpush2.msra.mxu0 0.0
        %1957 = vmatprep.subr.mxu0 0.0
        %1958 = vmatpush2.msra.mxu0 0.0
        %1959 = vmatprep.subr.mxu0 0.0
        %1960 = vmatpush2.msra.mxu0 0.0
        %1961 = vmatprep.subr.mxu0 0.0
        %1962 = vmatpush2.msra.mxu0 0.0
        %1963 = vmatprep.subr.mxu0 0.0
        %1964 = vmatpush2.msra.mxu0 0.0
        %1965 = vmatprep.subr.mxu0 0.0
        %1966 = vmatpush2.msra.mxu0 0.0
        %1967 = vmatprep.subr.mxu0 0.0
        %1968 = vmatpush2.msra.mxu0 0.0
        %1969 = vmatprep.subr.mxu0 0.0
        %1970 = vmatpush2.msra.mxu0 0.0
        %1971 = vmatprep.subr.mxu0 0.0
        %1972 = vmatpush2.msra.mxu0 0.0
        %1973 = vmatprep.subr.mxu0 0.0
        %1974 = vmatpush2.msra.mxu0 0.0
        %1975 = vmatprep.subr.mxu0 0.0
        %1976 = vmatpush2.msra.mxu0 0.0
        %1977 = vmatprep.subr.mxu0 0.0
        %1978 = vmatpush2.msra.mxu0 0.0
        %1979 = vmatprep.subr.mxu0 0.0
        %1980 = vmatpush2.msra.mxu0 0.0
        %1981 = vmatprep.subr.mxu0 0.0
        %1982 = vmatpush2.msra.mxu0 0.0
        %1983 = vmatprep.mubr.f32.mxu0 0.0
        %1984 = vmatmul.mubr.f32.gmra.mxu0 %v1914
        %v1985 = vpop.f32.mrf.mxu0
        %v1986 = vadd.f32 0.0, %v1985
        %v1987 = vpop.f32.mrf.mxu0
        %1988 = vmatprep.mubr.f32.mxu0 0.0
        %1989 = vmatmul.mubr.f32.gmra.mxu0 %v1917
        %v1990 = vpop.f32.mrf.mxu0
        %v1991 = vadd.f32 0.0, %v1990
        %v1992 = vpop.f32.mrf.mxu0
        %1993 = vdwg.mxu0
        %1996 = vrot.lane.b32.xlu0 %v1596, 8
        %v1997 = vpop.permute.xlu0 %1996
        %1998 = vrot.lane.b32.xlu0 %v1601, 8
        %v1999 = vpop.permute.xlu0 %1998
        %2004 = vrot.lane.b32.xlu0 %v1791, 16
        %v2005 = vpop.permute.xlu0 %2004
        %2006 = vrot.lane.b32.xlu0 %v1796, 16
        %v2007 = vpop.permute.xlu0 %2006
        %2012 = vrot.lane.b32.xlu0 %v1986, 24
        %v2013 = vpop.permute.xlu0 %2012
        %2014 = vrot.lane.b32.xlu0 %v1991, 24
        %v2015 = vpop.permute.xlu0 %2014
        %v2018 = vsel %vm1218, %v1401, %v1997
        %v2019 = vsel %vm1218, %v1406, %v1999
        %vm2020 = vcmask 130048
        %v2021 = vsel %vm2020, %v2018, %v2005
        %v2022 = vsel %vm2020, %v2019, %v2007
        %vm2023 = vcmask 195584
        %v2024 = vsel %vm2023, %v2021, %v2013
        %v2025 = vsel %vm2023, %v2022, %v2015
        %2028 = vrot.lane.b32.xlu0 %v887, 96
        %v2029 = vpop.permute.xlu0 %2028
        %2030 = vrot.lane.b32.xlu0 %v889, 96
        %v2031 = vpop.permute.xlu0 %2030
        %v2034 = vmul.f32 %v2024, %v2029
        %v2035 = vmul.f32 %v2025, %v2031
        %v2036 = vld [vmem:[#allocation10] sm:$0xff]
        %v2037 = vld [vmem:[#allocation10 + $0x8] sm:$0xff]
        %v2038 = vld [vmem:[#allocation10 + $0x10] sm:$0xff]
        %v2039 = vld [vmem:[#allocation10 + $0x18] sm:$0xff]
        %v2040 = vld [vmem:[#allocation11] sm:$0x1]
        %v2042 = vlaneseq
        %v2043 = vshrl.u32 %v2042, 7
        %v2044 = vsub.s32 0, %v2043
        %v2045 = vrot.slane %v2040, %v2044
        %v2048 = vsel %vm738, %v2034, 0
        %v2051 = vsel %vm738, %v2035, 0
        %2053 = vmatprep.subr.mxu0 0.0
        %2054 = vmatpush1.msra.mxu0 0.0
        %2055 = vmatprep.subr.mxu0 0.0
        %2056 = vmatpush1.msra.mxu0 0.0
        %2057 = vmatprep.subr.mxu0 0.0
        %2058 = vmatpush1.msra.mxu0 0.0
        %2059 = vmatprep.subr.mxu0 0.0
        %2060 = vmatpush1.msra.mxu0 0.0
        %2061 = vmatprep.subr.mxu0 0.0
        %2062 = vmatpush1.msra.mxu0 0.0
        %2063 = vmatprep.subr.mxu0 0.0
        %2064 = vmatpush1.msra.mxu0 0.0
        %2065 = vmatprep.subr.mxu0 0.0
        %2066 = vmatpush1.msra.mxu0 0.0
        %2067 = vmatprep.subr.mxu0 0.0
        %2068 = vmatpush1.msra.mxu0 0.0
        %2069 = vmatprep.subr.mxu0 0.0
        %2070 = vmatpush1.msra.mxu0 0.0
        %2071 = vmatprep.subr.mxu0 0.0
        %2072 = vmatpush1.msra.mxu0 0.0
        %2073 = vmatprep.subr.mxu0 0.0
        %2074 = vmatpush1.msra.mxu0 0.0
        %2075 = vmatprep.subr.mxu0 0.0
        %2076 = vmatpush1.msra.mxu0 0.0
        %2077 = vmatprep.subr.mxu0 0.0
        %2078 = vmatpush1.msra.mxu0 %v2039
        %2079 = vmatprep.subr.mxu0 0.0
        %2080 = vmatpush1.msra.mxu0 %v2038
        %2081 = vmatprep.subr.mxu0 0.0
        %2082 = vmatpush1.msra.mxu0 %v2037
        %2083 = vmatprep.subr.mxu0 0.0
        %2084 = vmatpush1.msra.mxu0 %v2036
        %2085 = vmatprep.subr.mxu0 0.0
        %2086 = vmatpush2.msra.mxu0 0.0
        %2087 = vmatprep.subr.mxu0 0.0
        %2088 = vmatpush2.msra.mxu0 0.0
        %2089 = vmatprep.subr.mxu0 0.0
        %2090 = vmatpush2.msra.mxu0 0.0
        %2091 = vmatprep.subr.mxu0 0.0
        %2092 = vmatpush2.msra.mxu0 0.0
        %2093 = vmatprep.subr.mxu0 0.0
        %2094 = vmatpush2.msra.mxu0 0.0
        %2095 = vmatprep.subr.mxu0 0.0
        %2096 = vmatpush2.msra.mxu0 0.0
        %2097 = vmatprep.subr.mxu0 0.0
        %2098 = vmatpush2.msra.mxu0 0.0
        %2099 = vmatprep.subr.mxu0 0.0
        %2100 = vmatpush2.msra.mxu0 0.0
        %2101 = vmatprep.subr.mxu0 0.0
        %2102 = vmatpush2.msra.mxu0 0.0
        %2103 = vmatprep.subr.mxu0 0.0
        %2104 = vmatpush2.msra.mxu0 0.0
        %2105 = vmatprep.subr.mxu0 0.0
        %2106 = vmatpush2.msra.mxu0 0.0
        %2107 = vmatprep.subr.mxu0 0.0
        %2108 = vmatpush2.msra.mxu0 0.0
        %2109 = vmatprep.subr.mxu0 0.0
        %2110 = vmatpush2.msra.mxu0 0.0
        %2111 = vmatprep.subr.mxu0 0.0
        %2112 = vmatpush2.msra.mxu0 0.0
        %2113 = vmatprep.subr.mxu0 0.0
        %2114 = vmatpush2.msra.mxu0 0.0
        %2115 = vmatprep.subr.mxu0 0.0
        %2116 = vmatpush2.msra.mxu0 0.0
        %2117 = vmatprep.mubr.f32.mxu0 0.0
        %2118 = vmatmul.mubr.f32.gmra.mxu0 %v2048
        %v2119 = vpop.f32.mrf.mxu0
        %v2120 = vadd.f32 %v2045, %v2119
        %v2121 = vpop.f32.mrf.mxu0
        %2122 = vmatprep.mubr.f32.mxu0 0.0
        %2123 = vmatmul.mubr.f32.gmra.mxu0 %v2051
        %v2124 = vpop.f32.mrf.mxu0
        %v2125 = vadd.f32 %v2045, %v2124
        %v2126 = vpop.f32.mrf.mxu0
        %2127 = vdwg.mxu0
        %v2128 = vadd.f32 %v780, %v2120
        %v2129 = vadd.f32 %v781, %v2125
        %2130 = vst.msk [vmem:[%s618] sm:$0xff] %vm738, %v2128
        %2131 = vst.msk [vmem:[%s618 + $0x8] sm:$0xff] %vm738, %v2129
        %s2132 = smul.u32 2, %s34
        %p2133 = scmp.lt.s32.totalorder %s33, 1
        %s2134 = scalar_select %p2133, %s33, 1
        %p2135 = scmp.lt.s32.totalorder %s2132, 1
        %s2136 = scalar_select %p2135, %s2132, 1
        %s2137 = smul.addr %s2134, 2
        %s2138 = sadd.s32 %s2136, %s2137
        %s2139 = smul.addr %s2138, 8
        %s2140 = scalar_lea.vmem %s12, %s2139
        // Predicated region
        $region97: #{bidirectional_triangle_attention.2} parent=67 // pred_check
          %p2141 = pneg %p339
        $region98: #{bidirectional_triangle_attention.2} parent=67 // pred_check_branch
          %2143 = sbr.rel (%p2141) target = $region100
        $region99: #{bidirectional_triangle_attention.2} parent=67 // pred_region
          %s2144 = smul.u32 2, %s34
        $region100: #{bidirectional_triangle_attention.2} parent=67 // pred_fallthru
          _
      $region68: #{bidirectional_triangle_attention.2} parent=5 // pred_fallthru
        _
      %p2145 = scmp.le.s32.totalorder 2, %s24
      // Predicated region
      $region101: #{bidirectional_triangle_attention.2} parent=5 // pred_check
        %p2146 = pneg %p2145
      $region102: #{bidirectional_triangle_attention.2} parent=5 // pred_check_branch
        %2148 = sbr.rel (%p2146) target = $region104
      $region103: #{bidirectional_triangle_attention.2} parent=5 // pred_region
        %s2149 = ssub.s32 %s24, 2
        // Predicated region
        $region105: #{bidirectional_triangle_attention.2} parent=103 // pred_check
          %p2150 = pneg %p345
        $region106: #{bidirectional_triangle_attention.2} parent=103 // pred_check_branch
          %2152 = sbr.rel (%p2150) target = $region108
        $region107: #{bidirectional_triangle_attention.2} parent=103 // pred_region
          %s2153 = smul.u32 2, %s36
          %p2154 = scmp.lt.s32.totalorder %s35, 1
          %s2155 = scalar_select %p2154, %s35, 1
          %p2156 = scmp.lt.s32.totalorder %s2153, 1
          %s2157 = scalar_select %p2156, %s2153, 1
          %s2158 = smul.addr %s2155, 2
          %s2159 = sadd.s32 %s2157, %s2158
          %s2160 = smul.addr %s2159, 8
          %s2161 = scalar_lea.vmem %s12, %s2160
        $region108: #{bidirectional_triangle_attention.2} parent=103 // pred_fallthru
          _
      $region104: #{bidirectional_triangle_attention.2} parent=5 // pred_fallthru
        _
    $region6: #{bidirectional_triangle_attention.2} parent=1 // loop_footer
      %s28 = sadd.s32 1, %s24
    $region7: #{bidirectional_triangle_attention.2} parent=1 // loop_footer_branch
      %23 = sbr.rel target = $region3
    $region8: #{bidirectional_triangle_attention.2} parent=1 // loop_exit
      _
    %2162 = vsyncpa [#allocation4], 1
    %s2163 = scalar_lea.sflag [#allocation4], 1
    %2164 = vsyncpa %s2163, 1
    %2165 = vsyncpa [#allocation6], 1
    %2166 = vsyncpa [#allocation9], 1
    %2167 = vsyncpa [#allocation12], 1

// kernel: bidirectional_triangle_attention.3
$region0: #{bidirectional_triangle_attention.3}
  #allocation0 [shape = 'u32[]', space=smem, size = 0x4, offset = 0x4, fixed_abs, tag = 'smem constant byte address 0x4 - core index']
  #allocation1 [shape = 'u32[144,128]{1,0:T(1,128)}', space=vmem, size = 0x12000, scoped, tag = 'internal scratch']
  #allocation2 [shape = 'f32[16,64]{1,0:T(8,128)}', space=vmem, size = 0x2000, scoped, tag = 'scratch operand']
  %s0 = inlined_call_operand.vmem [shape: f32[2,8,32], index: 0, kind: input, shape index: {}]
  %s1 = inlined_call_operand.vmem [shape: f32[2,16,32], index: 1, kind: input, shape index: {}]
  %s2 = inlined_call_operand.vmem [shape: f32[2,16,8,32], index: 2, kind: input, shape index: {}]
  %s3 = inlined_call_operand.vmem [shape: f32[2,8,16], index: 3, kind: input, shape index: {}]
  %s4 = inlined_call_operand.vmem [shape: f32[1,32], index: 4, kind: input, shape index: {}]
  %s5 = inlined_call_operand.vmem [shape: f32[1,32], index: 5, kind: input, shape index: {}]
  %s6 = inlined_call_operand.vmem [shape: f32[4,32], index: 6, kind: input, shape index: {}]
  %s7 = inlined_call_operand.vmem [shape: f32[32,64], index: 7, kind: input, shape index: {}]
  %s8 = inlined_call_operand.vmem [shape: f32[1,32], index: 8, kind: input, shape index: {}]
  %s9 = inlined_call_operand.vmem [shape: f32[32,64], index: 9, kind: input, shape index: {}]
  %s10 = inlined_call_operand.vmem [shape: f32[32,32], index: 10, kind: input, shape index: {}]
  %s11 = inlined_call_operand.vmem [shape: f32[1,32], index: 11, kind: input, shape index: {}]
  %s12 = inlined_call_operand.hbm [shape: f32[2,8,32], index: 12, kind: output, shape index: {}]
  %s13 = sld [smem:[#allocation0]]
  $region85: #{bidirectional_triangle_attention.3} parent=0
    _
  %s15 = ssub.s32 1, %s13
  %s16 = scalar_select 0, %s15, %s13
  $region1: #{bidirectional_triangle_attention.3} parent=0
    #allocation3 [shape = 'u8[8192]{0}', space=vmem, size = 0x2000, scoped, tag = 'output window, operand 0']
    #allocation4 [shape = 's32[2]{0}', space=sflag, size = 0x8, scoped, tag = 'scoped memory for bidirectional_triangle_attention.3']
    %17 = vsyncpa [#allocation4], 0
    %s18 = scalar_lea.sflag [#allocation4], 1
    %19 = vsyncpa %s18, 0
    loop: start=0, step=1, limit=4
    $region2: #{bidirectional_triangle_attention.3} parent=1 // loop_pre_header
      _
    $region3: #{bidirectional_triangle_attention.3} parent=1 // loop_header
      %s21 = sphi 0, %s25
      %p22 = scmp.ge.s32.totalorder %s21, 4
      %s28 = sphi 0, %s40
      %s29 = sphi 0, %s36
      %s30 = sphi 0, %s28
      %s31 = sphi 0, %s29
      %s32 = sphi 0, %s30
      %s33 = sphi 0, %s31
      %s45 = sphi 0, %s47
      %s48 = sphi 0, %s45
      %s49 = sphi 0, %s48
      %s65 = sphi 0, %s49
      %s71 = sphi 0, %s73
      %s74 = sphi 0, %s71
      %s75 = sphi 0, %s74
      %s91 = sphi 0, %s75
      %s99 = sphi 0, %s101
      %s102 = sphi 0, %s99
      %s103 = sphi 0, %s102
      %s119 = sphi 0, %s103
      %s127 = sphi 0, %s129
      %s130 = sphi 0, %s127
      %s131 = sphi 0, %s130
      %s147 = sphi 0, %s131
      %s151 = sphi 0, %s151
      %s153 = sphi 0, %s151
      %s154 = sphi 0, %s153
      %s168 = sphi 0, %s154
      %s172 = sphi 0, %s172
      %s174 = sphi 0, %s172
      %s175 = sphi 0, %s174
      %s189 = sphi 0, %s175
      %s193 = sphi 0, %s193
      %s195 = sphi 0, %s193
      %s196 = sphi 0, %s195
      %s210 = sphi 0, %s196
      %s214 = sphi 0, %s214
      %s216 = sphi 0, %s214
      %s217 = sphi 0, %s216
      %s231 = sphi 0, %s217
      %s235 = sphi 0, %s235
      %s237 = sphi 0, %s235
      %s238 = sphi 0, %s237
      %s252 = sphi 0, %s238
      %s256 = sphi 0, %s256
      %s258 = sphi 0, %s256
      %s259 = sphi 0, %s258
      %s273 = sphi 0, %s259
      %s277 = sphi 0, %s277
      %s279 = sphi 0, %s277
      %s280 = sphi 0, %s279
      %s294 = sphi 0, %s280
      %s298 = sphi 0, %s298
      %s300 = sphi 0, %s298
      %s301 = sphi 0, %s300
      %s315 = sphi 0, %s301
      %s323 = sphi 0, %s325
      %s326 = sphi 0, %s323
      %s327 = sphi 0, %s326
      %s343 = sphi 0, %s327
    $region4: #{bidirectional_triangle_attention.3} parent=1 // loop_header_branch
      %24 = sbr.rel (%p22) target = $region8
    $region5: #{bidirectional_triangle_attention.3} parent=1 // loop_body
      %s26 = ssub.s32 %s21, 1
      %s27 = ssub.s32 %s21, 2
      %s34 = sadd.s32 1, %s29
      %p35 = scmp.ge.s32.totalorder %s34, 1
      %s36 = scalar_select %p35, 0, %s34
      %s37 = sadd.s32 1, %s28
      %s38 = scalar_select %p35, %s37, %s28
      %p39 = scmp.ge.s32.totalorder %s38, 2
      %s40 = scalar_select %p39, 0, %s38
      %s41 = ssub.s32 %s28, %s40
      %s42 = ssub.s32 %s29, %s36
      %s43 = sor.u32 %s41, %s42
      %p44 = scmp.eq.s32.totalorder %s43, 0
      %s46 = sadd.s32 %s45, 1
      %s47 = scalar_select %p44, %s45, %s46
      %p50 = pneg %p44
      %p51 = scmp.eq.s32.totalorder %s21, 1
      %p52 = por %p50, %p51
      %p53 = scmp.ne.s32.totalorder %s45, %s48
      %p54 = scmp.eq.s32.totalorder %s21, 0
      %p55 = por %p53, %p54
      %p56 = scmp.ne.s32.totalorder %s45, %s48
      %p57 = scmp.eq.s32.totalorder %s26, 1
      %p58 = por %p56, %p57
      %p59 = scmp.ne.s32.totalorder %s48, %s49
      %p60 = scmp.eq.s32.totalorder %s26, 0
      %p61 = por %p59, %p60
      %p62 = scmp.ne.s32.totalorder %s48, %s49
      %p63 = scmp.eq.s32.totalorder %s27, 1
      %p64 = por %p62, %p63
      %p66 = scmp.ne.s32.totalorder %s49, %s65
      %p67 = scmp.eq.s32.totalorder %s27, 0
      %p68 = por %p66, %p67
      %s69 = ssub.s32 %s28, %s40
      %p70 = scmp.eq.s32.totalorder %s69, 0
      %s72 = sadd.s32 %s71, 1
      %s73 = scalar_select %p70, %s71, %s72
      %p76 = pneg %p70
      %p77 = scmp.eq.s32.totalorder %s21, 1
      %p78 = por %p76, %p77
      %p79 = scmp.ne.s32.totalorder %s71, %s74
      %p80 = scmp.eq.s32.totalorder %s21, 0
      %p81 = por %p79, %p80
      %p82 = scmp.ne.s32.totalorder %s71, %s74
      %p83 = scmp.eq.s32.totalorder %s26, 1
      %p84 = por %p82, %p83
      %p85 = scmp.ne.s32.totalorder %s74, %s75
      %p86 = scmp.eq.s32.totalorder %s26, 0
      %p87 = por %p85, %p86
      %p88 = scmp.ne.s32.totalorder %s74, %s75
      %p89 = scmp.eq.s32.totalorder %s27, 1
      %p90 = por %p88, %p89
      %p92 = scmp.ne.s32.totalorder %s75, %s91
      %p93 = scmp.eq.s32.totalorder %s27, 0
      %p94 = por %p92, %p93
      %s95 = ssub.s32 %s28, %s40
      %s96 = ssub.s32 %s29, %s36
      %s97 = sor.u32 %s95, %s96
      %p98 = scmp.eq.s32.totalorder %s97, 0
      %s100 = sadd.s32 %s99, 1
      %s101 = scalar_select %p98, %s99, %s100
      %p104 = pneg %p98
      %p105 = scmp.eq.s32.totalorder %s21, 1
      %p106 = por %p104, %p105
      %p107 = scmp.ne.s32.totalorder %s99, %s102
      %p108 = scmp.eq.s32.totalorder %s21, 0
      %p109 = por %p107, %p108
      %p110 = scmp.ne.s32.totalorder %s99, %s102
      %p111 = scmp.eq.s32.totalorder %s26, 1
      %p112 = por %p110, %p111
      %p113 = scmp.ne.s32.totalorder %s102, %s103
      %p114 = scmp.eq.s32.totalorder %s26, 0
      %p115 = por %p113, %p114
      %p116 = scmp.ne.s32.totalorder %s102, %s103
      %p117 = scmp.eq.s32.totalorder %s27, 1
      %p118 = por %p116, %p117
      %p120 = scmp.ne.s32.totalorder %s103, %s119
      %p121 = scmp.eq.s32.totalorder %s27, 0
      %p122 = por %p120, %p121
      %s123 = ssub.s32 %s28, %s40
      %s124 = ssub.s32 %s29, %s36
      %s125 = sor.u32 %s123, %s124
      %p126 = scmp.eq.s32.totalorder %s125, 0
      %s128 = sadd.s32 %s127, 1
      %s129 = scalar_select %p126, %s127, %s128
      %p132 = pneg %p126
      %p133 = scmp.eq.s32.totalorder %s21, 1
      %p134 = por %p132, %p133
      %p135 = scmp.ne.s32.totalorder %s127, %s130
      %p136 = scmp.eq.s32.totalorder %s21, 0
      %p137 = por %p135, %p136
      %p138 = scmp.ne.s32.totalorder %s127, %s130
      %p139 = scmp.eq.s32.totalorder %s26, 1
      %p140 = por %p138, %p139
      %p141 = scmp.ne.s32.totalorder %s130, %s131
      %p142 = scmp.eq.s32.totalorder %s26, 0
      %p143 = por %p141, %p142
      %p144 = scmp.ne.s32.totalorder %s130, %s131
      %p145 = scmp.eq.s32.totalorder %s27, 1
      %p146 = por %p144, %p145
      %p148 = scmp.ne.s32.totalorder %s131, %s147
      %p149 = scmp.eq.s32.totalorder %s27, 0
      %p150 = por %p148, %p149
      %s152 = sadd.s32 %s151, 1
      %p155 = scmp.eq.s32.totalorder %s21, 1
      %p156 = scmp.ne.s32.totalorder %s151, %s153
      %p157 = scmp.eq.s32.totalorder %s21, 0
      %p158 = por %p156, %p157
      %p159 = scmp.ne.s32.totalorder %s151, %s153
      %p160 = scmp.eq.s32.totalorder %s26, 1
      %p161 = por %p159, %p160
      %p162 = scmp.ne.s32.totalorder %s153, %s154
      %p163 = scmp.eq.s32.totalorder %s26, 0
      %p164 = por %p162, %p163
      %p165 = scmp.ne.s32.totalorder %s153, %s154
      %p166 = scmp.eq.s32.totalorder %s27, 1
      %p167 = por %p165, %p166
      %p169 = scmp.ne.s32.totalorder %s154, %s168
      %p170 = scmp.eq.s32.totalorder %s27, 0
      %p171 = por %p169, %p170
      %s173 = sadd.s32 %s172, 1
      %p176 = scmp.eq.s32.totalorder %s21, 1
      %p177 = scmp.ne.s32.totalorder %s172, %s174
      %p178 = scmp.eq.s32.totalorder %s21, 0
      %p179 = por %p177, %p178
      %p180 = scmp.ne.s32.totalorder %s172, %s174
      %p181 = scmp.eq.s32.totalorder %s26, 1
      %p182 = por %p180, %p181
      %p183 = scmp.ne.s32.totalorder %s174, %s175
      %p184 = scmp.eq.s32.totalorder %s26, 0
      %p185 = por %p183, %p184
      %p186 = scmp.ne.s32.totalorder %s174, %s175
      %p187 = scmp.eq.s32.totalorder %s27, 1
      %p188 = por %p186, %p187
      %p190 = scmp.ne.s32.totalorder %s175, %s189
      %p191 = scmp.eq.s32.totalorder %s27, 0
      %p192 = por %p190, %p191
      %s194 = sadd.s32 %s193, 1
      %p197 = scmp.eq.s32.totalorder %s21, 1
      %p198 = scmp.ne.s32.totalorder %s193, %s195
      %p199 = scmp.eq.s32.totalorder %s21, 0
      %p200 = por %p198, %p199
      %p201 = scmp.ne.s32.totalorder %s193, %s195
      %p202 = scmp.eq.s32.totalorder %s26, 1
      %p203 = por %p201, %p202
      %p204 = scmp.ne.s32.totalorder %s195, %s196
      %p205 = scmp.eq.s32.totalorder %s26, 0
      %p206 = por %p204, %p205
      %p207 = scmp.ne.s32.totalorder %s195, %s196
      %p208 = scmp.eq.s32.totalorder %s27, 1
      %p209 = por %p207, %p208
      %p211 = scmp.ne.s32.totalorder %s196, %s210
      %p212 = scmp.eq.s32.totalorder %s27, 0
      %p213 = por %p211, %p212
      %s215 = sadd.s32 %s214, 1
      %p218 = scmp.eq.s32.totalorder %s21, 1
      %p219 = scmp.ne.s32.totalorder %s214, %s216
      %p220 = scmp.eq.s32.totalorder %s21, 0
      %p221 = por %p219, %p220
      %p222 = scmp.ne.s32.totalorder %s214, %s216
      %p223 = scmp.eq.s32.totalorder %s26, 1
      %p224 = por %p222, %p223
      %p225 = scmp.ne.s32.totalorder %s216, %s217
      %p226 = scmp.eq.s32.totalorder %s26, 0
      %p227 = por %p225, %p226
      %p228 = scmp.ne.s32.totalorder %s216, %s217
      %p229 = scmp.eq.s32.totalorder %s27, 1
      %p230 = por %p228, %p229
      %p232 = scmp.ne.s32.totalorder %s217, %s231
      %p233 = scmp.eq.s32.totalorder %s27, 0
      %p234 = por %p232, %p233
      %s236 = sadd.s32 %s235, 1
      %p239 = scmp.eq.s32.totalorder %s21, 1
      %p240 = scmp.ne.s32.totalorder %s235, %s237
      %p241 = scmp.eq.s32.totalorder %s21, 0
      %p242 = por %p240, %p241
      %p243 = scmp.ne.s32.totalorder %s235, %s237
      %p244 = scmp.eq.s32.totalorder %s26, 1
      %p245 = por %p243, %p244
      %p246 = scmp.ne.s32.totalorder %s237, %s238
      %p247 = scmp.eq.s32.totalorder %s26, 0
      %p248 = por %p246, %p247
      %p249 = scmp.ne.s32.totalorder %s237, %s238
      %p250 = scmp.eq.s32.totalorder %s27, 1
      %p251 = por %p249, %p250
      %p253 = scmp.ne.s32.totalorder %s238, %s252
      %p254 = scmp.eq.s32.totalorder %s27, 0
      %p255 = por %p253, %p254
      %s257 = sadd.s32 %s256, 1
      %p260 = scmp.eq.s32.totalorder %s21, 1
      %p261 = scmp.ne.s32.totalorder %s256, %s258
      %p262 = scmp.eq.s32.totalorder %s21, 0
      %p263 = por %p261, %p262
      %p264 = scmp.ne.s32.totalorder %s256, %s258
      %p265 = scmp.eq.s32.totalorder %s26, 1
      %p266 = por %p264, %p265
      %p267 = scmp.ne.s32.totalorder %s258, %s259
      %p268 = scmp.eq.s32.totalorder %s26, 0
      %p269 = por %p267, %p268
      %p270 = scmp.ne.s32.totalorder %s258, %s259
      %p271 = scmp.eq.s32.totalorder %s27, 1
      %p272 = por %p270, %p271
      %p274 = scmp.ne.s32.totalorder %s259, %s273
      %p275 = scmp.eq.s32.totalorder %s27, 0
      %p276 = por %p274, %p275
      %s278 = sadd.s32 %s277, 1
      %p281 = scmp.eq.s32.totalorder %s21, 1
      %p282 = scmp.ne.s32.totalorder %s277, %s279
      %p283 = scmp.eq.s32.totalorder %s21, 0
      %p284 = por %p282, %p283
      %p285 = scmp.ne.s32.totalorder %s277, %s279
      %p286 = scmp.eq.s32.totalorder %s26, 1
      %p287 = por %p285, %p286
      %p288 = scmp.ne.s32.totalorder %s279, %s280
      %p289 = scmp.eq.s32.totalorder %s26, 0
      %p290 = por %p288, %p289
      %p291 = scmp.ne.s32.totalorder %s279, %s280
      %p292 = scmp.eq.s32.totalorder %s27, 1
      %p293 = por %p291, %p292
      %p295 = scmp.ne.s32.totalorder %s280, %s294
      %p296 = scmp.eq.s32.totalorder %s27, 0
      %p297 = por %p295, %p296
      %s299 = sadd.s32 %s298, 1
      %p302 = scmp.eq.s32.totalorder %s21, 1
      %p303 = scmp.ne.s32.totalorder %s298, %s300
      %p304 = scmp.eq.s32.totalorder %s21, 0
      %p305 = por %p303, %p304
      %p306 = scmp.ne.s32.totalorder %s298, %s300
      %p307 = scmp.eq.s32.totalorder %s26, 1
      %p308 = por %p306, %p307
      %p309 = scmp.ne.s32.totalorder %s300, %s301
      %p310 = scmp.eq.s32.totalorder %s26, 0
      %p311 = por %p309, %p310
      %p312 = scmp.ne.s32.totalorder %s300, %s301
      %p313 = scmp.eq.s32.totalorder %s27, 1
      %p314 = por %p312, %p313
      %p316 = scmp.ne.s32.totalorder %s301, %s315
      %p317 = scmp.eq.s32.totalorder %s27, 0
      %p318 = por %p316, %p317
      %s319 = ssub.s32 %s28, %s40
      %s320 = ssub.s32 %s29, %s36
      %s321 = sor.u32 %s319, %s320
      %p322 = scmp.eq.s32.totalorder %s321, 0
      %s324 = sadd.s32 %s323, 1
      %s325 = scalar_select %p322, %s323, %s324
      %p328 = pneg %p322
      %p329 = scmp.eq.s32.totalorder %s21, 1
      %p330 = por %p328, %p329
      %p331 = scmp.ne.s32.totalorder %s323, %s326
      %p332 = scmp.eq.s32.totalorder %s21, 0
      %p333 = por %p331, %p332
      %p334 = scmp.ne.s32.totalorder %s323, %s326
      %p335 = scmp.eq.s32.totalorder %s26, 1
      %p336 = por %p334, %p335
      %p337 = scmp.ne.s32.totalorder %s326, %s327
      %p338 = scmp.eq.s32.totalorder %s26, 0
      %p339 = por %p337, %p338
      %p340 = scmp.ne.s32.totalorder %s326, %s327
      %p341 = scmp.eq.s32.totalorder %s27, 1
      %p342 = por %p340, %p341
      %p344 = scmp.ne.s32.totalorder %s327, %s343
      %p345 = scmp.eq.s32.totalorder %s27, 0
      %p346 = por %p344, %p345
      %p347 = scmp.le.s32.totalorder 1, %s21
      %p348 = scmp.lt.s32.totalorder %s21, 3
      %p349 = pnand %p347, %p348
      %p350 = pneg %p349
      // Predicated region
      $region9: #{bidirectional_triangle_attention.3} parent=5 // pred_check
        _
      $region10: #{bidirectional_triangle_attention.3} parent=5 // pred_check_branch
        %352 = sbr.rel (%p349) target = $region12
      $region11: #{bidirectional_triangle_attention.3} parent=5 // pred_region
        %s353 = ssub.s32 %s21, 1
        // Predicated region
        $region13: #{bidirectional_triangle_attention.3} parent=11 // pred_check
          %p354 = pneg %p164
        $region14: #{bidirectional_triangle_attention.3} parent=11 // pred_check_branch
          %356 = sbr.rel (%p354) target = $region16
        $region15: #{bidirectional_triangle_attention.3} parent=11 // pred_region
          _
        $region16: #{bidirectional_triangle_attention.3} parent=11 // pred_fallthru
          _
        // Predicated region
        $region17: #{bidirectional_triangle_attention.3} parent=11 // pred_check
          %p357 = pneg %p185
        $region18: #{bidirectional_triangle_attention.3} parent=11 // pred_check_branch
          %359 = sbr.rel (%p357) target = $region20
        $region19: #{bidirectional_triangle_attention.3} parent=11 // pred_region
          _
        $region20: #{bidirectional_triangle_attention.3} parent=11 // pred_fallthru
          _
        // Predicated region
        $region21: #{bidirectional_triangle_attention.3} parent=11 // pred_check
          %p360 = pneg %p206
        $region22: #{bidirectional_triangle_attention.3} parent=11 // pred_check_branch
          %362 = sbr.rel (%p360) target = $region24
        $region23: #{bidirectional_triangle_attention.3} parent=11 // pred_region
          _
        $region24: #{bidirectional_triangle_attention.3} parent=11 // pred_fallthru
          _
        // Predicated region
        $region25: #{bidirectional_triangle_attention.3} parent=11 // pred_check
          %p363 = pneg %p227
        $region26: #{bidirectional_triangle_attention.3} parent=11 // pred_check_branch
          %365 = sbr.rel (%p363) target = $region28
        $region27: #{bidirectional_triangle_attention.3} parent=11 // pred_region
          _
        $region28: #{bidirectional_triangle_attention.3} parent=11 // pred_fallthru
          _
        // Predicated region
        $region29: #{bidirectional_triangle_attention.3} parent=11 // pred_check
          %p366 = pneg %p248
        $region30: #{bidirectional_triangle_attention.3} parent=11 // pred_check_branch
          %368 = sbr.rel (%p366) target = $region32
        $region31: #{bidirectional_triangle_attention.3} parent=11 // pred_region
          _
        $region32: #{bidirectional_triangle_attention.3} parent=11 // pred_fallthru
          _
        // Predicated region
        $region33: #{bidirectional_triangle_attention.3} parent=11 // pred_check
          %p369 = pneg %p269
        $region34: #{bidirectional_triangle_attention.3} parent=11 // pred_check_branch
          %371 = sbr.rel (%p369) target = $region36
        $region35: #{bidirectional_triangle_attention.3} parent=11 // pred_region
          _
        $region36: #{bidirectional_triangle_attention.3} parent=11 // pred_fallthru
          _
        // Predicated region
        $region37: #{bidirectional_triangle_attention.3} parent=11 // pred_check
          %p372 = pneg %p290
        $region38: #{bidirectional_triangle_attention.3} parent=11 // pred_check_branch
          %374 = sbr.rel (%p372) target = $region40
        $region39: #{bidirectional_triangle_attention.3} parent=11 // pred_region
          _
        $region40: #{bidirectional_triangle_attention.3} parent=11 // pred_fallthru
          _
        // Predicated region
        $region41: #{bidirectional_triangle_attention.3} parent=11 // pred_check
          %p375 = pneg %p311
        $region42: #{bidirectional_triangle_attention.3} parent=11 // pred_check_branch
          %377 = sbr.rel (%p375) target = $region44
        $region43: #{bidirectional_triangle_attention.3} parent=11 // pred_region
          _
        $region44: #{bidirectional_triangle_attention.3} parent=11 // pred_fallthru
          _
      $region12: #{bidirectional_triangle_attention.3} parent=5 // pred_fallthru
        _
      %p378 = scmp.lt.s32.totalorder %s21, 2
      // Predicated region
      $region45: #{bidirectional_triangle_attention.3} parent=5 // pred_check
        %p379 = pneg %p378
      $region46: #{bidirectional_triangle_attention.3} parent=5 // pred_check_branch
        %381 = sbr.rel (%p379) target = $region48
      $region47: #{bidirectional_triangle_attention.3} parent=5 // pred_region
        // Predicated region
        $region49: #{bidirectional_triangle_attention.3} parent=47 // pred_check
          %p382 = pneg %p55
        $region50: #{bidirectional_triangle_attention.3} parent=47 // pred_check_branch
          %384 = sbr.rel (%p382) target = $region52
        $region51: #{bidirectional_triangle_attention.3} parent=47 // pred_region
          %p385 = scmp.lt.s32.totalorder %s28, 1
          %s386 = scalar_select %p385, %s28, 1
          %p387 = scmp.lt.s32.totalorder %s29, 0
          %s388 = scalar_select %p387, %s29, 0
          %s389 = sadd.s32 %s388, %s386
          %s390 = smul.addr %s389, 8
          %s391 = scalar_lea.vmem %s0, %s390
        $region52: #{bidirectional_triangle_attention.3} parent=47 // pred_fallthru
          _
        // Predicated region
        $region53: #{bidirectional_triangle_attention.3} parent=47 // pred_check
          %p392 = pneg %p81
        $region54: #{bidirectional_triangle_attention.3} parent=47 // pred_check_branch
          %394 = sbr.rel (%p392) target = $region56
        $region55: #{bidirectional_triangle_attention.3} parent=47 // pred_region
          %p395 = scmp.lt.s32.totalorder %s28, 1
          %s396 = scalar_select %p395, %s28, 1
          %s397 = smul.addr %s396, 2
          %s398 = smul.addr %s397, 8
          %s399 = scalar_lea.vmem %s1, %s398
        $region56: #{bidirectional_triangle_attention.3} parent=47 // pred_fallthru
          _
        // Predicated region
        $region57: #{bidirectional_triangle_attention.3} parent=47 // pred_check
          %p400 = pneg %p109
        $region58: #{bidirectional_triangle_attention.3} parent=47 // pred_check_branch
          %402 = sbr.rel (%p400) target = $region60
        $region59: #{bidirectional_triangle_attention.3} parent=47 // pred_region
          %p403 = scmp.lt.s32.totalorder %s28, 1
          %s404 = scalar_select %p403, %s28, 1
          %p405 = scmp.lt.s32.totalorder %s29, 0
          %s406 = scalar_select %p405, %s29, 0
          %s407 = smul.addr %s404, 16
          %s408 = sadd.s32 %s406, %s407
          %s409 = smul.addr %s408, 8
          %s410 = scalar_lea.vmem %s2, %s409
        $region60: #{bidirectional_triangle_attention.3} parent=47 // pred_fallthru
          _
        // Predicated region
        $region61: #{bidirectional_triangle_attention.3} parent=47 // pred_check
          %p411 = pneg %p137
        $region62: #{bidirectional_triangle_attention.3} parent=47 // pred_check_branch
          %413 = sbr.rel (%p411) target = $region64
        $region63: #{bidirectional_triangle_attention.3} parent=47 // pred_region
          %p414 = scmp.lt.s32.totalorder %s28, 1
          %s415 = scalar_select %p414, %s28, 1
          %p416 = scmp.lt.s32.totalorder %s29, 0
          %s417 = scalar_select %p416, %s29, 0
          %s418 = sadd.s32 %s417, %s415
          %s419 = smul.addr %s418, 8
          %s420 = scalar_lea.vmem %s3, %s419
        $region64: #{bidirectional_triangle_attention.3} parent=47 // pred_fallthru
          _
      $region48: #{bidirectional_triangle_attention.3} parent=5 // pred_fallthru
        _
      %p421 = scmp.le.s32.totalorder 1, %s21
      %p422 = scmp.lt.s32.totalorder %s21, 3
      %p423 = pnand %p421, %p422
      %p424 = pneg %p423
      // Predicated region
      $region65: #{bidirectional_triangle_attention.3} parent=5 // pred_check
        _
      $region66: #{bidirectional_triangle_attention.3} parent=5 // pred_check_branch
        %426 = sbr.rel (%p423) target = $region68
      $region67: #{bidirectional_triangle_attention.3} parent=5 // pred_region
        %s427 = ssub.s32 %s21, 1
        %p428 = scmp.lt.s32.totalorder %s30, 1
        %s429 = scalar_select %p428, %s30, 1
        %p430 = scmp.lt.s32.totalorder %s31, 0
        %s431 = scalar_select %p430, %s31, 0
        %s432 = sadd.s32 %s431, %s429
        %s433 = smul.addr %s432, 8
        %s434 = scalar_lea.vmem %s0, %s433
        %p435 = pneg %p61
        %p436 = pneg %p58
        %p437 = scmp.lt.s32.totalorder %s30, 1
        %s438 = scalar_select %p437, %s30, 1
        %s439 = smul.addr %s438, 2
        %s440 = smul.addr %s439, 8
        %s441 = scalar_lea.vmem %s1, %s440
        %p442 = pneg %p87
        %p443 = pneg %p84
        %p444 = scmp.lt.s32.totalorder %s30, 1
        %s445 = scalar_select %p444, %s30, 1
        %p446 = scmp.lt.s32.totalorder %s31, 0
        %s447 = scalar_select %p446, %s31, 0
        %s448 = smul.addr %s445, 16
        %s449 = sadd.s32 %s447, %s448
        %s450 = smul.addr %s449, 8
        %s451 = scalar_lea.vmem %s2, %s450
        %p452 = pneg %p115
        %p453 = pneg %p112
        %p454 = scmp.lt.s32.totalorder %s30, 1
        %s455 = scalar_select %p454, %s30, 1
        %p456 = scmp.lt.s32.totalorder %s31, 0
        %s457 = scalar_select %p456, %s31, 0
        %s458 = sadd.s32 %s457, %s455
        %s459 = smul.addr %s458, 8
        %s460 = scalar_lea.vmem %s3, %s459
        %p461 = pneg %p143
        %p462 = pneg %p140
        %p463 = pneg %p164
        %p464 = pneg %p161
        %p465 = pneg %p185
        %p466 = pneg %p182
        %p467 = pneg %p206
        %p468 = pneg %p203
        %p469 = pneg %p227
        %p470 = pneg %p224
        %p471 = pneg %p248
        %p472 = pneg %p245
        %p473 = pneg %p269
        %p474 = pneg %p266
        %p475 = pneg %p290
        %p476 = pneg %p287
        %p477 = pneg %p311
        %p478 = pneg %p308
        %p479 = pneg %p339
        %p480 = pneg %p336
        %s481 = sand.u32 %s326, 1
        %s482 = scalar_lea.sflag [#allocation4], %s481
        %s483 = sand.u32 %s326, 1
        %s484 = smul.addr %s483, 8
        %s485 = scalar_lea.vmem [#allocation3], %s484
        %p486 = scmp.lt.s32.totalorder %s30, 1
        %s487 = scalar_select %p486, %s30, 1
        %p488 = scmp.lt.s32.totalorder %s31, 0
        %s489 = scalar_select %p488, %s31, 0
        %s490 = sadd.s32 %s489, %s487
        %s491 = smul.addr %s490, 8
        %s492 = scalar_lea.vmem %s0, %s491
        %p493 = scmp.lt.s32.totalorder %s30, 1
        %s494 = scalar_select %p493, %s30, 1
        %s495 = smul.addr %s494, 2
        %s496 = smul.addr %s495, 8
        %s497 = scalar_lea.vmem %s1, %s496
        %p498 = scmp.lt.s32.totalorder %s30, 1
        %s499 = scalar_select %p498, %s30, 1
        %p500 = scmp.lt.s32.totalorder %s31, 0
        %s501 = scalar_select %p500, %s31, 0
        %s502 = smul.addr %s499, 16
        %s503 = sadd.s32 %s501, %s502
        %s504 = smul.addr %s503, 8
        %s505 = scalar_lea.vmem %s2, %s504
        %p506 = scmp.lt.s32.totalorder %s30, 1
        %s507 = scalar_select %p506, %s30, 1
        %p508 = scmp.lt.s32.totalorder %s31, 0
        %s509 = scalar_select %p508, %s31, 0
        %s510 = sadd.s32 %s509, %s507
        %s511 = smul.addr %s510, 8
        %s512 = scalar_lea.vmem %s3, %s511
        %v513 = vld [vmem:[%s4] sm:$0x1]
        %v514 = vld [vmem:[%s5] sm:$0x1]
        %p515 = scmp.eq.s32.totalorder %s31, 0
        // Predicated region
        $region69: #{bidirectional_triangle_attention.3} parent=67 // pred_check
          %p516 = pneg %p515
        $region70: #{bidirectional_triangle_attention.3} parent=67 // pred_check_branch
          %518 = sbr.rel (%p516) target = $region72
        $region71: #{bidirectional_triangle_attention.3} parent=67 // pred_region
          %v519 = vld [vmem:[%s497] sm:$0xff]
          %v520 = vld [vmem:[%s497 + $0x8] sm:$0xff]
          %v521 = vld [vmem:[%s9] sm:$0xff]
          %v522 = vld [vmem:[%s9 + $0x8] sm:$0xff]
          %v523 = vld [vmem:[%s9 + $0x10] sm:$0xff]
          %v524 = vld [vmem:[%s9 + $0x18] sm:$0xff]
          %vm525 = vcmask 261120
          %v527 = vsel %vm525, %v519, 0
          %v530 = vsel %vm525, %v520, 0
          %532 = vmatprep.subr.mxu0 0.0
          %533 = vmatpush1.msra.mxu0 0.0
          %534 = vmatprep.subr.mxu0 0.0
          %535 = vmatpush1.msra.mxu0 0.0
          %536 = vmatprep.subr.mxu0 0.0
          %537 = vmatpush1.msra.mxu0 0.0
          %538 = vmatprep.subr.mxu0 0.0
          %539 = vmatpush1.msra.mxu0 0.0
          %540 = vmatprep.subr.mxu0 0.0
          %541 = vmatpush1.msra.mxu0 0.0
          %542 = vmatprep.subr.mxu0 0.0
          %543 = vmatpush1.msra.mxu0 0.0
          %544 = vmatprep.subr.mxu0 0.0
          %545 = vmatpush1.msra.mxu0 0.0
          %546 = vmatprep.subr.mxu0 0.0
          %547 = vmatpush1.msra.mxu0 0.0
          %548 = vmatprep.subr.mxu0 0.0
          %549 = vmatpush1.msra.mxu0 0.0
          %550 = vmatprep.subr.mxu0 0.0
          %551 = vmatpush1.msra.mxu0 0.0
          %552 = vmatprep.subr.mxu0 0.0
          %553 = vmatpush1.msra.mxu0 0.0
          %554 = vmatprep.subr.mxu0 0.0
          %555 = vmatpush1.msra.mxu0 0.0
          %556 = vmatprep.subr.mxu0 0.0
          %557 = vmatpush1.msra.mxu0 %v524
          %558 = vmatprep.subr.mxu0 0.0
          %559 = vmatpush1.msra.mxu0 %v523
          %560 = vmatprep.subr.mxu0 0.0
          %561 = vmatpush1.msra.mxu0 %v522
          %562 = vmatprep.subr.mxu0 0.0
          %563 = vmatpush1.msra.mxu0 %v521
          %564 = vmatprep.subr.mxu0 0.0
          %565 = vmatpush2.msra.mxu0 0.0
          %566 = vmatprep.subr.mxu0 0.0
          %567 = vmatpush2.msra.mxu0 0.0
          %568 = vmatprep.subr.mxu0 0.0
          %569 = vmatpush2.msra.mxu0 0.0
          %570 = vmatprep.subr.mxu0 0.0
          %571 = vmatpush2.msra.mxu0 0.0
          %572 = vmatprep.subr.mxu0 0.0
          %573 = vmatpush2.msra.mxu0 0.0
          %574 = vmatprep.subr.mxu0 0.0
          %575 = vmatpush2.msra.mxu0 0.0
          %576 = vmatprep.subr.mxu0 0.0
          %577 = vmatpush2.msra.mxu0 0.0
          %578 = vmatprep.subr.mxu0 0.0
          %579 = vmatpush2.msra.mxu0 0.0
          %580 = vmatprep.subr.mxu0 0.0
          %581 = vmatpush2.msra.mxu0 0.0
          %582 = vmatprep.subr.mxu0 0.0
          %583 = vmatpush2.msra.mxu0 0.0
          %584 = vmatprep.subr.mxu0 0.0
          %585 = vmatpush2.msra.mxu0 0.0
          %586 = vmatprep.subr.mxu0 0.0
          %587 = vmatpush2.msra.mxu0 0.0
          %588 = vmatprep.subr.mxu0 0.0
          %589 = vmatpush2.msra.mxu0 0.0
          %590 = vmatprep.subr.mxu0 0.0
          %591 = vmatpush2.msra.mxu0 0.0
          %592 = vmatprep.subr.mxu0 0.0
          %593 = vmatpush2.msra.mxu0 0.0
          %594 = vmatprep.subr.mxu0 0.0
          %595 = vmatpush2.msra.mxu0 0.0
          %596 = vmatprep.mubr.f32.mxu0 0.0
          %597 = vmatmul.mubr.f32.gmra.mxu0 %v527
          %v598 = vpop.f32.mrf.mxu0
          %v599 = vadd.f32 0.0, %v598
          %v600 = vpop.f32.mrf.mxu0
          %601 = vmatprep.mubr.f32.mxu0 0.0
          %602 = vmatmul.mubr.f32.gmra.mxu0 %v530
          %v603 = vpop.f32.mrf.mxu0
          %v604 = vadd.f32 0.0, %v603
          %v605 = vpop.f32.mrf.mxu0
          %606 = vdwg.mxu0
          %vm607 = vcmask 523264
          %608 = vst.msk [vmem:[#allocation2] sm:$0xff] %vm607, %v599
          %609 = vst.msk [vmem:[#allocation2 + $0x8] sm:$0xff] %vm607, %v604
        $region72: #{bidirectional_triangle_attention.3} parent=67 // pred_fallthru
          _
        %v610 = vld [vmem:[#allocation2] sm:$0xff]
        %v611 = vld [vmem:[#allocation2 + $0x8] sm:$0xff]
        %v612 = vld [vmem:[%s492] sm:$0xff]
        %vm613 = vcmask 261120
        %v614 = vsel %vm613, %v612, 0.0
        %615 = vadd.xlane.f32.xlu0 %v614
        %v616 = vpop.xlane.xlu0 %615
        %v617 = vrcp.pop 32.0
        %v618 = vmul.f32 %v616, %v617
        %v619 = vsub.f32 %v612, %v618
        %v620 = vmul.f32 %v619, %v619
        %v621 = vsel %vm613, %v620, 0.0
        %622 = vadd.xlane.f32.xlu0 %v621
        %v623 = vpop.xlane.xlu0 %622
        %v624 = vmul.f32 %v623, %v617
        %v625 = vadd.f32 %v624, 1e-05
        %v626 = vrsqrt.pop %v625
        %v627 = vmul.f32 %v619, %v626
        %v629 = vlaneseq
        %v630 = vshrl.u32 %v629, 7
        %v631 = vsub.s32 0, %v630
        %v632 = vrot.slane %v513, %v631
        %v634 = vmul.f32 %v627, %v632
        %v636 = vlaneseq
        %v637 = vshrl.u32 %v636, 7
        %v638 = vsub.s32 0, %v637
        %v639 = vrot.slane %v514, %v638
        %v641 = vadd.f32 %v634, %v639
        %v642 = vld [vmem:[%s7] sm:$0xff]
        %v643 = vld [vmem:[%s7 + $0x8] sm:$0xff]
        %v644 = vld [vmem:[%s7 + $0x10] sm:$0xff]
        %v645 = vld [vmem:[%s7 + $0x18] sm:$0xff]
        %v647 = vsel %vm613, %v641, 0
        %649 = vmatprep.subr.mxu0 0.0
        %650 = vmatpush1.msra.mxu0 0.0
        %651 = vmatprep.subr.mxu0 0.0
        %652 = vmatpush1.msra.mxu0 0.0
        %653 = vmatprep.subr.mxu0 0.0
        %654 = vmatpush1.msra.mxu0 0.0
        %655 = vmatprep.subr.mxu0 0.0
        %656 = vmatpush1.msra.mxu0 0.0
        %657 = vmatprep.subr.mxu0 0.0
        %658 = vmatpush1.msra.mxu0 0.0
        %659 = vmatprep.subr.mxu0 0.0
        %660 = vmatpush1.msra.mxu0 0.0
        %661 = vmatprep.subr.mxu0 0.0
        %662 = vmatpush1.msra.mxu0 0.0
        %663 = vmatprep.subr.mxu0 0.0
        %664 = vmatpush1.msra.mxu0 0.0
        %665 = vmatprep.subr.mxu0 0.0
        %666 = vmatpush1.msra.mxu0 0.0
        %667 = vmatprep.subr.mxu0 0.0
        %668 = vmatpush1.msra.mxu0 0.0
        %669 = vmatprep.subr.mxu0 0.0
        %670 = vmatpush1.msra.mxu0 0.0
        %671 = vmatprep.subr.mxu0 0.0
        %672 = vmatpush1.msra.mxu0 0.0
        %673 = vmatprep.subr.mxu0 0.0
        %674 = vmatpush1.msra.mxu0 %v645
        %675 = vmatprep.subr.mxu0 0.0
        %676 = vmatpush1.msra.mxu0 %v644
        %677 = vmatprep.subr.mxu0 0.0
        %678 = vmatpush1.msra.mxu0 %v643
        %679 = vmatprep.subr.mxu0 0.0
        %680 = vmatpush1.msra.mxu0 %v642
        %681 = vmatprep.subr.mxu0 0.0
        %682 = vmatpush2.msra.mxu0 0.0
        %683 = vmatprep.subr.mxu0 0.0
        %684 = vmatpush2.msra.mxu0 0.0
        %685 = vmatprep.subr.mxu0 0.0
        %686 = vmatpush2.msra.mxu0 0.0
        %687 = vmatprep.subr.mxu0 0.0
        %688 = vmatpush2.msra.mxu0 0.0
        %689 = vmatprep.subr.mxu0 0.0
        %690 = vmatpush2.msra.mxu0 0.0
        %691 = vmatprep.subr.mxu0 0.0
        %692 = vmatpush2.msra.mxu0 0.0
        %693 = vmatprep.subr.mxu0 0.0
        %694 = vmatpush2.msra.mxu0 0.0
        %695 = vmatprep.subr.mxu0 0.0
        %696 = vmatpush2.msra.mxu0 0.0
        %697 = vmatprep.subr.mxu0 0.0
        %698 = vmatpush2.msra.mxu0 0.0
        %699 = vmatprep.subr.mxu0 0.0
        %700 = vmatpush2.msra.mxu0 0.0
        %701 = vmatprep.subr.mxu0 0.0
        %702 = vmatpush2.msra.mxu0 0.0
        %703 = vmatprep.subr.mxu0 0.0
        %704 = vmatpush2.msra.mxu0 0.0
        %705 = vmatprep.subr.mxu0 0.0
        %706 = vmatpush2.msra.mxu0 0.0
        %707 = vmatprep.subr.mxu0 0.0
        %708 = vmatpush2.msra.mxu0 0.0
        %709 = vmatprep.subr.mxu0 0.0
        %710 = vmatpush2.msra.mxu0 0.0
        %711 = vmatprep.subr.mxu0 0.0
        %712 = vmatpush2.msra.mxu0 0.0
        %713 = vmatprep.mubr.f32.mxu0 0.0
        %714 = vmatmul.mubr.f32.gmra.mxu0 %v647
        %v715 = vpop.f32.mrf.mxu0
        %v716 = vadd.f32 0.0, %v715
        %v717 = vpop.f32.mrf.mxu0
        %718 = vdwg.mxu0
        %v719 = vld [vmem:[%s8] sm:$0x1]
        %v721 = vlaneseq
        %v722 = vshrl.u32 %v721, 7
        %v723 = vsub.s32 0, %v722
        %v724 = vrot.slane %v719, %v723
        %725 = vrot.lane.b32.xlu0 %v724, 32
        %v726 = vpop.permute.xlu0 %725
        %v728 = vadd.f32 %v716, %v726
        %v729 = vxor.u32 %v728, 2147483648
        %v730 = vmul.f32 %v729, 1.442695
        %v731 = vpow.pop %v730
        %v732 = vadd.f32 %v731, 1.0
        %v733 = vrcp.pop %v732
        %v734 = vmul.f32 1.0, %v733
        %v735 = vld [vmem:[%s505] sm:$0xff]
        %v736 = vld [vmem:[%s505 + $0x8] sm:$0xff]
        %v737 = vld [vmem:[%s505 + $0x10] sm:$0xff]
        %v738 = vld [vmem:[%s505 + $0x18] sm:$0xff]
        %v739 = vld [vmem:[%s505 + $0x20] sm:$0xff]
        %v740 = vld [vmem:[%s505 + $0x28] sm:$0xff]
        %v741 = vld [vmem:[%s505 + $0x30] sm:$0xff]
        %v742 = vld [vmem:[%s505 + $0x38] sm:$0xff]
        %v743 = vld [vmem:[%s505 + $0x40] sm:$0xff]
        %v744 = vld [vmem:[%s505 + $0x48] sm:$0xff]
        %v745 = vld [vmem:[%s505 + $0x50] sm:$0xff]
        %v746 = vld [vmem:[%s505 + $0x58] sm:$0xff]
        %v747 = vld [vmem:[%s505 + $0x60] sm:$0xff]
        %v748 = vld [vmem:[%s505 + $0x68] sm:$0xff]
        %v749 = vld [vmem:[%s505 + $0x70] sm:$0xff]
        %v750 = vld [vmem:[%s505 + $0x78] sm:$0xff]
        %v751 = vld [vmem:[%s6] sm:$0xf]
        %v753 = vsel %vm613, %v751, 0
        %v756 = vsel %vm613, %v735, 0
        %v759 = vsel %vm613, %v736, 0
        %v762 = vsel %vm613, %v737, 0
        %v765 = vsel %vm613, %v738, 0
        %v768 = vsel %vm613, %v739, 0
        %v771 = vsel %vm613, %v740, 0
        %v774 = vsel %vm613, %v741, 0
        %v777 = vsel %vm613, %v742, 0
        %v780 = vsel %vm613, %v743, 0
        %v783 = vsel %vm613, %v744, 0
        %v786 = vsel %vm613, %v745, 0
        %v789 = vsel %vm613, %v746, 0
        %v792 = vsel %vm613, %v747, 0
        %v795 = vsel %vm613, %v748, 0
        %v798 = vsel %vm613, %v749, 0
        %v801 = vsel %vm613, %v750, 0
        %803 = vmatprep.subr.mxu0 0.0
        %804 = vmatpush1.xpose.msra.mxu0 %v801
        %805 = vmatprep.subr.mxu0 0.0
        %806 = vmatpush1.xpose.msra.mxu0 %v798
        %807 = vmatprep.subr.mxu0 0.0
        %808 = vmatpush1.xpose.msra.mxu0 %v795
        %809 = vmatprep.subr.mxu0 0.0
        %810 = vmatpush1.xpose.msra.mxu0 %v792
        %811 = vmatprep.subr.mxu0 0.0
        %812 = vmatpush1.xpose.msra.mxu0 %v789
        %813 = vmatprep.subr.mxu0 0.0
        %814 = vmatpush1.xpose.msra.mxu0 %v786
        %815 = vmatprep.subr.mxu0 0.0
        %816 = vmatpush1.xpose.msra.mxu0 %v783
        %817 = vmatprep.subr.mxu0 0.0
        %818 = vmatpush1.xpose.msra.mxu0 %v780
        %819 = vmatprep.subr.mxu0 0.0
        %820 = vmatpush1.xpose.msra.mxu0 %v777
        %821 = vmatprep.subr.mxu0 0.0
        %822 = vmatpush1.xpose.msra.mxu0 %v774
        %823 = vmatprep.subr.mxu0 0.0
        %824 = vmatpush1.xpose.msra.mxu0 %v771
        %825 = vmatprep.subr.mxu0 0.0
        %826 = vmatpush1.xpose.msra.mxu0 %v768
        %827 = vmatprep.subr.mxu0 0.0
        %828 = vmatpush1.xpose.msra.mxu0 %v765
        %829 = vmatprep.subr.mxu0 0.0
        %830 = vmatpush1.xpose.msra.mxu0 %v762
        %831 = vmatprep.subr.mxu0 0.0
        %832 = vmatpush1.xpose.msra.mxu0 %v759
        %833 = vmatprep.subr.mxu0 0.0
        %834 = vmatpush1.xpose.msra.mxu0 %v756
        %835 = vmatprep.subr.mxu0 0.0
        %836 = vmatpush2.xpose.msra.mxu0 0.0
        %837 = vmatprep.subr.mxu0 0.0
        %838 = vmatpush2.xpose.msra.mxu0 0.0
        %839 = vmatprep.subr.mxu0 0.0
        %840 = vmatpush2.xpose.msra.mxu0 0.0
        %841 = vmatprep.subr.mxu0 0.0
        %842 = vmatpush2.xpose.msra.mxu0 0.0
        %843 = vmatprep.subr.mxu0 0.0
        %844 = vmatpush2.xpose.msra.mxu0 0.0
        %845 = vmatprep.subr.mxu0 0.0
        %846 = vmatpush2.xpose.msra.mxu0 0.0
        %847 = vmatprep.subr.mxu0 0.0
        %848 = vmatpush2.xpose.msra.mxu0 0.0
        %849 = vmatprep.subr.mxu0 0.0
        %850 = vmatpush2.xpose.msra.mxu0 0.0
        %851 = vmatprep.subr.mxu0 0.0
        %852 = vmatpush2.xpose.msra.mxu0 0.0
        %853 = vmatprep.subr.mxu0 0.0
        %854 = vmatpush2.xpose.msra.mxu0 0.0
        %855 = vmatprep.subr.mxu0 0.0
        %856 = vmatpush2.xpose.msra.mxu0 0.0
        %857 = vmatprep.subr.mxu0 0.0
        %858 = vmatpush2.xpose.msra.mxu0 0.0
        %859 = vmatprep.subr.mxu0 0.0
        %860 = vmatpush2.xpose.msra.mxu0 0.0
        %861 = vmatprep.subr.mxu0 0.0
        %862 = vmatpush2.xpose.msra.mxu0 0.0
        %863 = vmatprep.subr.mxu0 0.0
        %864 = vmatpush2.xpose.msra.mxu0 0.0
        %865 = vmatprep.subr.mxu0 0.0
        %866 = vmatpush2.xpose.msra.mxu0 0.0
        %867 = vmatprep.mubr.f32.mxu0 0.0
        %868 = vmatmul.mubr.f32.gmra.mxu0 %v753
        %v869 = vpop.f32.mrf.mxu0
        %v870 = vadd.f32 0.0, %v869
        %v871 = vpop.f32.mrf.mxu0
        %872 = vdwg.mxu0
        %874 = vrot.lane.b32.xlu0 %v870, 120
        %v875 = vpop.permute.xlu0 %874
        %877 = vrot.lane.b32.xlu0 %v870, 112
        %v878 = vpop.permute.xlu0 %877
        %880 = vrot.lane.b32.xlu0 %v870, 104
        %v881 = vpop.permute.xlu0 %880
        %883 = vrot.lane.b32.xlu0 %v870, 96
        %v884 = vpop.permute.xlu0 %883
        %886 = vrot.lane.b32.xlu0 %v870, 88
        %v887 = vpop.permute.xlu0 %886
        %889 = vrot.lane.b32.xlu0 %v870, 80
        %v890 = vpop.permute.xlu0 %889
        %892 = vrot.lane.b32.xlu0 %v870, 72
        %v893 = vpop.permute.xlu0 %892
        %895 = vrot.lane.b32.xlu0 %v870, 64
        %v896 = vpop.permute.xlu0 %895
        %898 = vrot.lane.b32.xlu0 %v870, 56
        %v899 = vpop.permute.xlu0 %898
        %901 = vrot.lane.b32.xlu0 %v870, 48
        %v902 = vpop.permute.xlu0 %901
        %904 = vrot.lane.b32.xlu0 %v870, 40
        %v905 = vpop.permute.xlu0 %904
        %907 = vrot.lane.b32.xlu0 %v870, 32
        %v908 = vpop.permute.xlu0 %907
        %910 = vrot.lane.b32.xlu0 %v870, 24
        %v911 = vpop.permute.xlu0 %910
        %913 = vrot.lane.b32.xlu0 %v870, 16
        %v914 = vpop.permute.xlu0 %913
        %916 = vrot.lane.b32.xlu0 %v870, 8
        %v917 = vpop.permute.xlu0 %916
        %v919 = vcombine.low %v870, %v878
        %v921 = vunpack.c.l.s4 1983009808
        %v922 = vunpack.c.0.s8 %v921
        %v923 = vlaneseq
        %v924 = vshrl.u32 %v923, 7
        %v925 = vsub.s32 %v922, %v924
        %v926 = vrot.slane %v919, %v925
        %v927 = vcombine.low %v875, %v881
        %v929 = vunpack.c.l.s4 1983009808
        %v930 = vunpack.c.0.s8 %v929
        %v931 = vlaneseq
        %v932 = vshrl.u32 %v931, 7
        %v933 = vsub.s32 %v930, %v932
        %v934 = vrot.slane %v927, %v933
        %v935 = vcombine.low %v884, %v890
        %v937 = vunpack.c.l.s4 1983009808
        %v938 = vunpack.c.0.s8 %v937
        %v939 = vlaneseq
        %v940 = vshrl.u32 %v939, 7
        %v941 = vsub.s32 %v938, %v940
        %v942 = vrot.slane %v935, %v941
        %v943 = vcombine.low %v887, %v893
        %v945 = vunpack.c.l.s4 1983009808
        %v946 = vunpack.c.0.s8 %v945
        %v947 = vlaneseq
        %v948 = vshrl.u32 %v947, 7
        %v949 = vsub.s32 %v946, %v948
        %v950 = vrot.slane %v943, %v949
        %v951 = vcombine.low %v926, %v934
        %v952 = vcombine.high %v926, %v934
        %v954 = vunpack.c.l.s4 1934713408
        %v955 = vunpack.c.0.s8 %v954
        %v956 = vlaneseq
        %v957 = vshrl.u32 %v956, 7
        %v958 = vsub.s32 %v955, %v957
        %v959 = vrot.slane %v951, %v958
        %v961 = vunpack.c.l.s4 1934713408
        %v962 = vunpack.c.0.s8 %v961
        %v963 = vlaneseq
        %v964 = vshrl.u32 %v963, 7
        %v965 = vsub.s32 %v962, %v964
        %v966 = vrot.slane %v952, %v965
        %v967 = vcombine.low %v942, %v950
        %v968 = vcombine.high %v942, %v950
        %v970 = vunpack.c.l.s4 1934713408
        %v971 = vunpack.c.0.s8 %v970
        %v972 = vlaneseq
        %v973 = vshrl.u32 %v972, 7
        %v974 = vsub.s32 %v971, %v973
        %v975 = vrot.slane %v967, %v974
        %v977 = vunpack.c.l.s4 1934713408
        %v978 = vunpack.c.0.s8 %v977
        %v979 = vlaneseq
        %v980 = vshrl.u32 %v979, 7
        %v981 = vsub.s32 %v978, %v980
        %v982 = vrot.slane %v968, %v981
        %v983 = vcombine.low %v959, %v975
        %v984 = vcombine.high %v959, %v975
        %v985 = vcombine.low %v966, %v982
        %v986 = vcombine.high %v966, %v982
        %v987 = vcombine.low %v896, %v902
        %v989 = vunpack.c.l.s4 1983009808
        %v990 = vunpack.c.0.s8 %v989
        %v991 = vlaneseq
        %v992 = vshrl.u32 %v991, 7
        %v993 = vsub.s32 %v990, %v992
        %v994 = vrot.slane %v987, %v993
        %v995 = vcombine.low %v899, %v905
        %v997 = vunpack.c.l.s4 1983009808
        %v998 = vunpack.c.0.s8 %v997
        %v999 = vlaneseq
        %v1000 = vshrl.u32 %v999, 7
        %v1001 = vsub.s32 %v998, %v1000
        %v1002 = vrot.slane %v995, %v1001
        %v1003 = vcombine.low %v908, %v914
        %v1005 = vunpack.c.l.s4 1983009808
        %v1006 = vunpack.c.0.s8 %v1005
        %v1007 = vlaneseq
        %v1008 = vshrl.u32 %v1007, 7
        %v1009 = vsub.s32 %v1006, %v1008
        %v1010 = vrot.slane %v1003, %v1009
        %v1011 = vcombine.low %v911, %v917
        %v1013 = vunpack.c.l.s4 1983009808
        %v1014 = vunpack.c.0.s8 %v1013
        %v1015 = vlaneseq
        %v1016 = vshrl.u32 %v1015, 7
        %v1017 = vsub.s32 %v1014, %v1016
        %v1018 = vrot.slane %v1011, %v1017
        %v1019 = vcombine.low %v994, %v1002
        %v1020 = vcombine.high %v994, %v1002
        %v1022 = vunpack.c.l.s4 1934713408
        %v1023 = vunpack.c.0.s8 %v1022
        %v1024 = vlaneseq
        %v1025 = vshrl.u32 %v1024, 7
        %v1026 = vsub.s32 %v1023, %v1025
        %v1027 = vrot.slane %v1019, %v1026
        %v1029 = vunpack.c.l.s4 1934713408
        %v1030 = vunpack.c.0.s8 %v1029
        %v1031 = vlaneseq
        %v1032 = vshrl.u32 %v1031, 7
        %v1033 = vsub.s32 %v1030, %v1032
        %v1034 = vrot.slane %v1020, %v1033
        %v1035 = vcombine.low %v1010, %v1018
        %v1036 = vcombine.high %v1010, %v1018
        %v1038 = vunpack.c.l.s4 1934713408
        %v1039 = vunpack.c.0.s8 %v1038
        %v1040 = vlaneseq
        %v1041 = vshrl.u32 %v1040, 7
        %v1042 = vsub.s32 %v1039, %v1041
        %v1043 = vrot.slane %v1035, %v1042
        %v1045 = vunpack.c.l.s4 1934713408
        %v1046 = vunpack.c.0.s8 %v1045
        %v1047 = vlaneseq
        %v1048 = vshrl.u32 %v1047, 7
        %v1049 = vsub.s32 %v1046, %v1048
        %v1050 = vrot.slane %v1036, %v1049
        %v1051 = vcombine.low %v1027, %v1043
        %v1052 = vcombine.high %v1027, %v1043
        %v1053 = vcombine.low %v1034, %v1050
        %v1054 = vcombine.high %v1034, %v1050
        %v1055 = vld [vmem:[%s512] sm:$0xff]
        %v1056 = vsub.f32 %v1055, 1.0
        %v1057 = vmul.f32 %v1056, 1e+09
        %1058 = vxpose.xlu0.b32.start [1/16] %v983, 128
        %1059 = vxpose.xlu0.b32.cont [2/16] %v1051, 128
        %1060 = vxpose.xlu0.b32.cont [3/16] 0.0, 128
        %1061 = vxpose.xlu0.b32.cont [4/16] 0.0, 128
        %1062 = vxpose.xlu0.b32.cont [5/16] 0.0, 128
        %1063 = vxpose.xlu0.b32.cont [6/16] 0.0, 128
        %1064 = vxpose.xlu0.b32.cont [7/16] 0.0, 128
        %1065 = vxpose.xlu0.b32.cont [8/16] 0.0, 128
        %1066 = vxpose.xlu0.b32.cont [9/16] 0.0, 128
        %1067 = vxpose.xlu0.b32.cont [10/16] 0.0, 128
        %1068 = vxpose.xlu0.b32.cont [11/16] 0.0, 128
        %1069 = vxpose.xlu0.b32.cont [12/16] 0.0, 128
        %1070 = vxpose.xlu0.b32.cont [13/16] 0.0, 128
        %1071 = vxpose.xlu0.b32.cont [14/16] 0.0, 128
        %1072 = vxpose.xlu0.b32.cont [15/16] 0.0, 128
        %1073 = vxpose.xlu0.b32.end [16/16] 0.0, 128
        %v1074 = vpop.trf.xlu0
        %v1075 = vpop.trf.xlu0
        %v1076 = vpop.trf.xlu0
        %v1077 = vpop.trf.xlu0
        %v1078 = vpop.trf.xlu0
        %v1079 = vpop.trf.xlu0
        %v1080 = vpop.trf.xlu0
        %v1081 = vpop.trf.xlu0
        %v1082 = vpop.trf.xlu0
        %v1083 = vpop.trf.xlu0
        %v1084 = vpop.trf.xlu0
        %v1085 = vpop.trf.xlu0
        %v1086 = vpop.trf.xlu0
        %v1087 = vpop.trf.xlu0
        %v1088 = vpop.trf.xlu0
        %v1089 = vpop.trf.xlu0
        %v1090 = vadd.f32 %v1074, %v1057
        %vm1091 = vcmask 64512
        %v1093 = vsel %vm1091, %v716, 0
        %v1096 = vsel %vm1091, %v610, 0
        %v1099 = vsel %vm1091, %v611, 0
        %1101 = vmatprep.subr.mxu0 0.0
        %1102 = vmatpush1.xpose.msra.mxu0 0.0
        %1103 = vmatprep.subr.mxu0 0.0
        %1104 = vmatpush1.xpose.msra.mxu0 0.0
        %1105 = vmatprep.subr.mxu0 0.0
        %1106 = vmatpush1.xpose.msra.mxu0 0.0
        %1107 = vmatprep.subr.mxu0 0.0
        %1108 = vmatpush1.xpose.msra.mxu0 0.0
        %1109 = vmatprep.subr.mxu0 0.0
        %1110 = vmatpush1.xpose.msra.mxu0 0.0
        %1111 = vmatprep.subr.mxu0 0.0
        %1112 = vmatpush1.xpose.msra.mxu0 0.0
        %1113 = vmatprep.subr.mxu0 0.0
        %1114 = vmatpush1.xpose.msra.mxu0 0.0
        %1115 = vmatprep.subr.mxu0 0.0
        %1116 = vmatpush1.xpose.msra.mxu0 0.0
        %1117 = vmatprep.subr.mxu0 0.0
        %1118 = vmatpush1.xpose.msra.mxu0 0.0
        %1119 = vmatprep.subr.mxu0 0.0
        %1120 = vmatpush1.xpose.msra.mxu0 0.0
        %1121 = vmatprep.subr.mxu0 0.0
        %1122 = vmatpush1.xpose.msra.mxu0 0.0
        %1123 = vmatprep.subr.mxu0 0.0
        %1124 = vmatpush1.xpose.msra.mxu0 0.0
        %1125 = vmatprep.subr.mxu0 0.0
        %1126 = vmatpush1.xpose.msra.mxu0 0.0
        %1127 = vmatprep.subr.mxu0 0.0
        %1128 = vmatpush1.xpose.msra.mxu0 0.0
        %1129 = vmatprep.subr.mxu0 0.0
        %1130 = vmatpush1.xpose.msra.mxu0 %v1099
        %1131 = vmatprep.subr.mxu0 0.0
        %1132 = vmatpush1.xpose.msra.mxu0 %v1096
        %1133 = vmatprep.subr.mxu0 0.0
        %1134 = vmatpush2.xpose.msra.mxu0 0.0
        %1135 = vmatprep.subr.mxu0 0.0
        %1136 = vmatpush2.xpose.msra.mxu0 0.0
        %1137 = vmatprep.subr.mxu0 0.0
        %1138 = vmatpush2.xpose.msra.mxu0 0.0
        %1139 = vmatprep.subr.mxu0 0.0
        %1140 = vmatpush2.xpose.msra.mxu0 0.0
        %1141 = vmatprep.subr.mxu0 0.0
        %1142 = vmatpush2.xpose.msra.mxu0 0.0
        %1143 = vmatprep.subr.mxu0 0.0
        %1144 = vmatpush2.xpose.msra.mxu0 0.0
        %1145 = vmatprep.subr.mxu0 0.0
        %1146 = vmatpush2.xpose.msra.mxu0 0.0
        %1147 = vmatprep.subr.mxu0 0.0
        %1148 = vmatpush2.xpose.msra.mxu0 0.0
        %1149 = vmatprep.subr.mxu0 0.0
        %1150 = vmatpush2.xpose.msra.mxu0 0.0
        %1151 = vmatprep.subr.mxu0 0.0
        %1152 = vmatpush2.xpose.msra.mxu0 0.0
        %1153 = vmatprep.subr.mxu0 0.0
        %1154 = vmatpush2.xpose.msra.mxu0 0.0
        %1155 = vmatprep.subr.mxu0 0.0
        %1156 = vmatpush2.xpose.msra.mxu0 0.0
        %1157 = vmatprep.subr.mxu0 0.0
        %1158 = vmatpush2.xpose.msra.mxu0 0.0
        %1159 = vmatprep.subr.mxu0 0.0
        %1160 = vmatpush2.xpose.msra.mxu0 0.0
        %1161 = vmatprep.subr.mxu0 0.0
        %1162 = vmatpush2.xpose.msra.mxu0 0.0
        %1163 = vmatprep.subr.mxu0 0.0
        %1164 = vmatpush2.xpose.msra.mxu0 0.0
        %1165 = vmatprep.mubr.f32.mxu0 0.0
        %1166 = vmatmul.mubr.f32.gmra.mxu0 %v1093
        %v1167 = vpop.f32.mrf.mxu0
        %v1168 = vadd.f32 %v1090, %v1167
        %v1169 = vpop.f32.mrf.mxu0
        %1170 = vdwg.mxu0
        %vm1171 = vcmask 130048
        %v1172 = vsel %vm1171, %v1168, -inf
        %1173 = vmax.xlane.f32.xlu0 %v1172
        %v1174 = vpop.xlane.xlu0 %1173
        %v1175 = vsub.f32 %v1168, %v1174
        %v1176 = vmul.f32 %v1175, 1.442695
        %v1177 = vpow.pop %v1176
        %v1178 = vsel %vm1171, %v1177, 0.0
        %1179 = vadd.xlane.f32.xlu0 %v1178
        %v1180 = vpop.xlane.xlu0 %1179
        %v1181 = vrcp.pop %v1180
        %v1182 = vmul.f32 %v1177, %v1181
        %1183 = vrot.lane.b32.xlu0 %v610, 96
        %v1184 = vpop.permute.xlu0 %1183
        %1185 = vrot.lane.b32.xlu0 %v611, 96
        %v1186 = vpop.permute.xlu0 %1185
        %v1190 = vsel %vm1171, %v1182, 0
        %1192 = vmatprep.subr.mxu0 0.0
        %1193 = vmatpush1.msra.mxu0 0.0
        %1194 = vmatprep.subr.mxu0 0.0
        %1195 = vmatpush1.msra.mxu0 0.0
        %1196 = vmatprep.subr.mxu0 0.0
        %1197 = vmatpush1.msra.mxu0 0.0
        %1198 = vmatprep.subr.mxu0 0.0
        %1199 = vmatpush1.msra.mxu0 0.0
        %1200 = vmatprep.subr.mxu0 0.0
        %1201 = vmatpush1.msra.mxu0 0.0
        %1202 = vmatprep.subr.mxu0 0.0
        %1203 = vmatpush1.msra.mxu0 0.0
        %1204 = vmatprep.subr.mxu0 0.0
        %1205 = vmatpush1.msra.mxu0 0.0
        %1206 = vmatprep.subr.mxu0 0.0
        %1207 = vmatpush1.msra.mxu0 0.0
        %1208 = vmatprep.subr.mxu0 0.0
        %1209 = vmatpush1.msra.mxu0 0.0
        %1210 = vmatprep.subr.mxu0 0.0
        %1211 = vmatpush1.msra.mxu0 0.0
        %1212 = vmatprep.subr.mxu0 0.0
        %1213 = vmatpush1.msra.mxu0 0.0
        %1214 = vmatprep.subr.mxu0 0.0
        %1215 = vmatpush1.msra.mxu0 0.0
        %1216 = vmatprep.subr.mxu0 0.0
        %1217 = vmatpush1.msra.mxu0 0.0
        %1218 = vmatprep.subr.mxu0 0.0
        %1219 = vmatpush1.msra.mxu0 0.0
        %1220 = vmatprep.subr.mxu0 0.0
        %1221 = vmatpush1.msra.mxu0 %v1186
        %1222 = vmatprep.subr.mxu0 0.0
        %1223 = vmatpush1.msra.mxu0 %v1184
        %1224 = vmatprep.subr.mxu0 0.0
        %1225 = vmatpush2.msra.mxu0 0.0
        %1226 = vmatprep.subr.mxu0 0.0
        %1227 = vmatpush2.msra.mxu0 0.0
        %1228 = vmatprep.subr.mxu0 0.0
        %1229 = vmatpush2.msra.mxu0 0.0
        %1230 = vmatprep.subr.mxu0 0.0
        %1231 = vmatpush2.msra.mxu0 0.0
        %1232 = vmatprep.subr.mxu0 0.0
        %1233 = vmatpush2.msra.mxu0 0.0
        %1234 = vmatprep.subr.mxu0 0.0
        %1235 = vmatpush2.msra.mxu0 0.0
        %1236 = vmatprep.subr.mxu0 0.0
        %1237 = vmatpush2.msra.mxu0 0.0
        %1238 = vmatprep.subr.mxu0 0.0
        %1239 = vmatpush2.msra.mxu0 0.0
        %1240 = vmatprep.subr.mxu0 0.0
        %1241 = vmatpush2.msra.mxu0 0.0
        %1242 = vmatprep.subr.mxu0 0.0
        %1243 = vmatpush2.msra.mxu0 0.0
        %1244 = vmatprep.subr.mxu0 0.0
        %1245 = vmatpush2.msra.mxu0 0.0
        %1246 = vmatprep.subr.mxu0 0.0
        %1247 = vmatpush2.msra.mxu0 0.0
        %1248 = vmatprep.subr.mxu0 0.0
        %1249 = vmatpush2.msra.mxu0 0.0
        %1250 = vmatprep.subr.mxu0 0.0
        %1251 = vmatpush2.msra.mxu0 0.0
        %1252 = vmatprep.subr.mxu0 0.0
        %1253 = vmatpush2.msra.mxu0 0.0
        %1254 = vmatprep.subr.mxu0 0.0
        %1255 = vmatpush2.msra.mxu0 0.0
        %1256 = vmatprep.mubr.f32.mxu0 0.0
        %1257 = vmatmul.mubr.f32.gmra.mxu0 %v1190
        %v1258 = vpop.f32.mrf.mxu0
        %v1259 = vadd.f32 0.0, %v1258
        %v1260 = vpop.f32.mrf.mxu0
        %1261 = vdwg.mxu0
        %1262 = vxpose.xlu0.b32.start [1/16] %v984, 128
        %1263 = vxpose.xlu0.b32.cont [2/16] %v1052, 128
        %1264 = vxpose.xlu0.b32.cont [3/16] 0.0, 128
        %1265 = vxpose.xlu0.b32.cont [4/16] 0.0, 128
        %1266 = vxpose.xlu0.b32.cont [5/16] 0.0, 128
        %1267 = vxpose.xlu0.b32.cont [6/16] 0.0, 128
        %1268 = vxpose.xlu0.b32.cont [7/16] 0.0, 128
        %1269 = vxpose.xlu0.b32.cont [8/16] 0.0, 128
        %1270 = vxpose.xlu0.b32.cont [9/16] 0.0, 128
        %1271 = vxpose.xlu0.b32.cont [10/16] 0.0, 128
        %1272 = vxpose.xlu0.b32.cont [11/16] 0.0, 128
        %1273 = vxpose.xlu0.b32.cont [12/16] 0.0, 128
        %1274 = vxpose.xlu0.b32.cont [13/16] 0.0, 128
        %1275 = vxpose.xlu0.b32.cont [14/16] 0.0, 128
        %1276 = vxpose.xlu0.b32.cont [15/16] 0.0, 128
        %1277 = vxpose.xlu0.b32.end [16/16] 0.0, 128
        %v1278 = vpop.trf.xlu0
        %v1279 = vpop.trf.xlu0
        %v1280 = vpop.trf.xlu0
        %v1281 = vpop.trf.xlu0
        %v1282 = vpop.trf.xlu0
        %v1283 = vpop.trf.xlu0
        %v1284 = vpop.trf.xlu0
        %v1285 = vpop.trf.xlu0
        %v1286 = vpop.trf.xlu0
        %v1287 = vpop.trf.xlu0
        %v1288 = vpop.trf.xlu0
        %v1289 = vpop.trf.xlu0
        %v1290 = vpop.trf.xlu0
        %v1291 = vpop.trf.xlu0
        %v1292 = vpop.trf.xlu0
        %v1293 = vpop.trf.xlu0
        %v1294 = vadd.f32 %v1278, %v1057
        %1295 = vrot.lane.b32.xlu0 %v716, 120
        %v1296 = vpop.permute.xlu0 %1295
        %1297 = vrot.lane.b32.xlu0 %v610, 120
        %v1298 = vpop.permute.xlu0 %1297
        %1299 = vrot.lane.b32.xlu0 %v611, 120
        %v1300 = vpop.permute.xlu0 %1299
        %v1301 = vsel %vm1091, %v1296, 0
        %v1303 = vsel %vm1091, %v1298, 0
        %v1305 = vsel %vm1091, %v1300, 0
        %1307 = vmatprep.subr.mxu0 0.0
        %1308 = vmatpush1.xpose.msra.mxu0 0.0
        %1309 = vmatprep.subr.mxu0 0.0
        %1310 = vmatpush1.xpose.msra.mxu0 0.0
        %1311 = vmatprep.subr.mxu0 0.0
        %1312 = vmatpush1.xpose.msra.mxu0 0.0
        %1313 = vmatprep.subr.mxu0 0.0
        %1314 = vmatpush1.xpose.msra.mxu0 0.0
        %1315 = vmatprep.subr.mxu0 0.0
        %1316 = vmatpush1.xpose.msra.mxu0 0.0
        %1317 = vmatprep.subr.mxu0 0.0
        %1318 = vmatpush1.xpose.msra.mxu0 0.0
        %1319 = vmatprep.subr.mxu0 0.0
        %1320 = vmatpush1.xpose.msra.mxu0 0.0
        %1321 = vmatprep.subr.mxu0 0.0
        %1322 = vmatpush1.xpose.msra.mxu0 0.0
        %1323 = vmatprep.subr.mxu0 0.0
        %1324 = vmatpush1.xpose.msra.mxu0 0.0
        %1325 = vmatprep.subr.mxu0 0.0
        %1326 = vmatpush1.xpose.msra.mxu0 0.0
        %1327 = vmatprep.subr.mxu0 0.0
        %1328 = vmatpush1.xpose.msra.mxu0 0.0
        %1329 = vmatprep.subr.mxu0 0.0
        %1330 = vmatpush1.xpose.msra.mxu0 0.0
        %1331 = vmatprep.subr.mxu0 0.0
        %1332 = vmatpush1.xpose.msra.mxu0 0.0
        %1333 = vmatprep.subr.mxu0 0.0
        %1334 = vmatpush1.xpose.msra.mxu0 0.0
        %1335 = vmatprep.subr.mxu0 0.0
        %1336 = vmatpush1.xpose.msra.mxu0 %v1305
        %1337 = vmatprep.subr.mxu0 0.0
        %1338 = vmatpush1.xpose.msra.mxu0 %v1303
        %1339 = vmatprep.subr.mxu0 0.0
        %1340 = vmatpush2.xpose.msra.mxu0 0.0
        %1341 = vmatprep.subr.mxu0 0.0
        %1342 = vmatpush2.xpose.msra.mxu0 0.0
        %1343 = vmatprep.subr.mxu0 0.0
        %1344 = vmatpush2.xpose.msra.mxu0 0.0
        %1345 = vmatprep.subr.mxu0 0.0
        %1346 = vmatpush2.xpose.msra.mxu0 0.0
        %1347 = vmatprep.subr.mxu0 0.0
        %1348 = vmatpush2.xpose.msra.mxu0 0.0
        %1349 = vmatprep.subr.mxu0 0.0
        %1350 = vmatpush2.xpose.msra.mxu0 0.0
        %1351 = vmatprep.subr.mxu0 0.0
        %1352 = vmatpush2.xpose.msra.mxu0 0.0
        %1353 = vmatprep.subr.mxu0 0.0
        %1354 = vmatpush2.xpose.msra.mxu0 0.0
        %1355 = vmatprep.subr.mxu0 0.0
        %1356 = vmatpush2.xpose.msra.mxu0 0.0
        %1357 = vmatprep.subr.mxu0 0.0
        %1358 = vmatpush2.xpose.msra.mxu0 0.0
        %1359 = vmatprep.subr.mxu0 0.0
        %1360 = vmatpush2.xpose.msra.mxu0 0.0
        %1361 = vmatprep.subr.mxu0 0.0
        %1362 = vmatpush2.xpose.msra.mxu0 0.0
        %1363 = vmatprep.subr.mxu0 0.0
        %1364 = vmatpush2.xpose.msra.mxu0 0.0
        %1365 = vmatprep.subr.mxu0 0.0
        %1366 = vmatpush2.xpose.msra.mxu0 0.0
        %1367 = vmatprep.subr.mxu0 0.0
        %1368 = vmatpush2.xpose.msra.mxu0 0.0
        %1369 = vmatprep.subr.mxu0 0.0
        %1370 = vmatpush2.xpose.msra.mxu0 0.0
        %1371 = vmatprep.mubr.f32.mxu0 0.0
        %1372 = vmatmul.mubr.f32.gmra.mxu0 %v1301
        %v1373 = vpop.f32.mrf.mxu0
        %v1374 = vadd.f32 %v1294, %v1373
        %v1375 = vpop.f32.mrf.mxu0
        %1376 = vdwg.mxu0
        %v1377 = vsel %vm1171, %v1374, -inf
        %1378 = vmax.xlane.f32.xlu0 %v1377
        %v1379 = vpop.xlane.xlu0 %1378
        %v1380 = vsub.f32 %v1374, %v1379
        %v1381 = vmul.f32 %v1380, 1.442695
        %v1382 = vpow.pop %v1381
        %v1383 = vsel %vm1171, %v1382, 0.0
        %1384 = vadd.xlane.f32.xlu0 %v1383
        %v1385 = vpop.xlane.xlu0 %1384
        %v1386 = vrcp.pop %v1385
        %v1387 = vmul.f32 %v1382, %v1386
        %1388 = vrot.lane.b32.xlu0 %v610, 88
        %v1389 = vpop.permute.xlu0 %1388
        %1390 = vrot.lane.b32.xlu0 %v611, 88
        %v1391 = vpop.permute.xlu0 %1390
        %v1395 = vsel %vm1171, %v1387, 0
        %1397 = vmatprep.subr.mxu0 0.0
        %1398 = vmatpush1.msra.mxu0 0.0
        %1399 = vmatprep.subr.mxu0 0.0
        %1400 = vmatpush1.msra.mxu0 0.0
        %1401 = vmatprep.subr.mxu0 0.0
        %1402 = vmatpush1.msra.mxu0 0.0
        %1403 = vmatprep.subr.mxu0 0.0
        %1404 = vmatpush1.msra.mxu0 0.0
        %1405 = vmatprep.subr.mxu0 0.0
        %1406 = vmatpush1.msra.mxu0 0.0
        %1407 = vmatprep.subr.mxu0 0.0
        %1408 = vmatpush1.msra.mxu0 0.0
        %1409 = vmatprep.subr.mxu0 0.0
        %1410 = vmatpush1.msra.mxu0 0.0
        %1411 = vmatprep.subr.mxu0 0.0
        %1412 = vmatpush1.msra.mxu0 0.0
        %1413 = vmatprep.subr.mxu0 0.0
        %1414 = vmatpush1.msra.mxu0 0.0
        %1415 = vmatprep.subr.mxu0 0.0
        %1416 = vmatpush1.msra.mxu0 0.0
        %1417 = vmatprep.subr.mxu0 0.0
        %1418 = vmatpush1.msra.mxu0 0.0
        %1419 = vmatprep.subr.mxu0 0.0
        %1420 = vmatpush1.msra.mxu0 0.0
        %1421 = vmatprep.subr.mxu0 0.0
        %1422 = vmatpush1.msra.mxu0 0.0
        %1423 = vmatprep.subr.mxu0 0.0
        %1424 = vmatpush1.msra.mxu0 0.0
        %1425 = vmatprep.subr.mxu0 0.0
        %1426 = vmatpush1.msra.mxu0 %v1391
        %1427 = vmatprep.subr.mxu0 0.0
        %1428 = vmatpush1.msra.mxu0 %v1389
        %1429 = vmatprep.subr.mxu0 0.0
        %1430 = vmatpush2.msra.mxu0 0.0
        %1431 = vmatprep.subr.mxu0 0.0
        %1432 = vmatpush2.msra.mxu0 0.0
        %1433 = vmatprep.subr.mxu0 0.0
        %1434 = vmatpush2.msra.mxu0 0.0
        %1435 = vmatprep.subr.mxu0 0.0
        %1436 = vmatpush2.msra.mxu0 0.0
        %1437 = vmatprep.subr.mxu0 0.0
        %1438 = vmatpush2.msra.mxu0 0.0
        %1439 = vmatprep.subr.mxu0 0.0
        %1440 = vmatpush2.msra.mxu0 0.0
        %1441 = vmatprep.subr.mxu0 0.0
        %1442 = vmatpush2.msra.mxu0 0.0
        %1443 = vmatprep.subr.mxu0 0.0
        %1444 = vmatpush2.msra.mxu0 0.0
        %1445 = vmatprep.subr.mxu0 0.0
        %1446 = vmatpush2.msra.mxu0 0.0
        %1447 = vmatprep.subr.mxu0 0.0
        %1448 = vmatpush2.msra.mxu0 0.0
        %1449 = vmatprep.subr.mxu0 0.0
        %1450 = vmatpush2.msra.mxu0 0.0
        %1451 = vmatprep.subr.mxu0 0.0
        %1452 = vmatpush2.msra.mxu0 0.0
        %1453 = vmatprep.subr.mxu0 0.0
        %1454 = vmatpush2.msra.mxu0 0.0
        %1455 = vmatprep.subr.mxu0 0.0
        %1456 = vmatpush2.msra.mxu0 0.0
        %1457 = vmatprep.subr.mxu0 0.0
        %1458 = vmatpush2.msra.mxu0 0.0
        %1459 = vmatprep.subr.mxu0 0.0
        %1460 = vmatpush2.msra.mxu0 0.0
        %1461 = vmatprep.mubr.f32.mxu0 0.0
        %1462 = vmatmul.mubr.f32.gmra.mxu0 %v1395
        %v1463 = vpop.f32.mrf.mxu0
        %v1464 = vadd.f32 0.0, %v1463
        %v1465 = vpop.f32.mrf.mxu0
        %1466 = vdwg.mxu0
        %1467 = vxpose.xlu0.b32.start [1/16] %v985, 128
        %1468 = vxpose.xlu0.b32.cont [2/16] %v1053, 128
        %1469 = vxpose.xlu0.b32.cont [3/16] 0.0, 128
        %1470 = vxpose.xlu0.b32.cont [4/16] 0.0, 128
        %1471 = vxpose.xlu0.b32.cont [5/16] 0.0, 128
        %1472 = vxpose.xlu0.b32.cont [6/16] 0.0, 128
        %1473 = vxpose.xlu0.b32.cont [7/16] 0.0, 128
        %1474 = vxpose.xlu0.b32.cont [8/16] 0.0, 128
        %1475 = vxpose.xlu0.b32.cont [9/16] 0.0, 128
        %1476 = vxpose.xlu0.b32.cont [10/16] 0.0, 128
        %1477 = vxpose.xlu0.b32.cont [11/16] 0.0, 128
        %1478 = vxpose.xlu0.b32.cont [12/16] 0.0, 128
        %1479 = vxpose.xlu0.b32.cont [13/16] 0.0, 128
        %1480 = vxpose.xlu0.b32.cont [14/16] 0.0, 128
        %1481 = vxpose.xlu0.b32.cont [15/16] 0.0, 128
        %1482 = vxpose.xlu0.b32.end [16/16] 0.0, 128
        %v1483 = vpop.trf.xlu0
        %v1484 = vpop.trf.xlu0
        %v1485 = vpop.trf.xlu0
        %v1486 = vpop.trf.xlu0
        %v1487 = vpop.trf.xlu0
        %v1488 = vpop.trf.xlu0
        %v1489 = vpop.trf.xlu0
        %v1490 = vpop.trf.xlu0
        %v1491 = vpop.trf.xlu0
        %v1492 = vpop.trf.xlu0
        %v1493 = vpop.trf.xlu0
        %v1494 = vpop.trf.xlu0
        %v1495 = vpop.trf.xlu0
        %v1496 = vpop.trf.xlu0
        %v1497 = vpop.trf.xlu0
        %v1498 = vpop.trf.xlu0
        %v1499 = vadd.f32 %v1483, %v1057
        %1500 = vrot.lane.b32.xlu0 %v716, 112
        %v1501 = vpop.permute.xlu0 %1500
        %1502 = vrot.lane.b32.xlu0 %v610, 112
        %v1503 = vpop.permute.xlu0 %1502
        %1504 = vrot.lane.b32.xlu0 %v611, 112
        %v1505 = vpop.permute.xlu0 %1504
        %v1506 = vsel %vm1091, %v1501, 0
        %v1508 = vsel %vm1091, %v1503, 0
        %v1510 = vsel %vm1091, %v1505, 0
        %1512 = vmatprep.subr.mxu0 0.0
        %1513 = vmatpush1.xpose.msra.mxu0 0.0
        %1514 = vmatprep.subr.mxu0 0.0
        %1515 = vmatpush1.xpose.msra.mxu0 0.0
        %1516 = vmatprep.subr.mxu0 0.0
        %1517 = vmatpush1.xpose.msra.mxu0 0.0
        %1518 = vmatprep.subr.mxu0 0.0
        %1519 = vmatpush1.xpose.msra.mxu0 0.0
        %1520 = vmatprep.subr.mxu0 0.0
        %1521 = vmatpush1.xpose.msra.mxu0 0.0
        %1522 = vmatprep.subr.mxu0 0.0
        %1523 = vmatpush1.xpose.msra.mxu0 0.0
        %1524 = vmatprep.subr.mxu0 0.0
        %1525 = vmatpush1.xpose.msra.mxu0 0.0
        %1526 = vmatprep.subr.mxu0 0.0
        %1527 = vmatpush1.xpose.msra.mxu0 0.0
        %1528 = vmatprep.subr.mxu0 0.0
        %1529 = vmatpush1.xpose.msra.mxu0 0.0
        %1530 = vmatprep.subr.mxu0 0.0
        %1531 = vmatpush1.xpose.msra.mxu0 0.0
        %1532 = vmatprep.subr.mxu0 0.0
        %1533 = vmatpush1.xpose.msra.mxu0 0.0
        %1534 = vmatprep.subr.mxu0 0.0
        %1535 = vmatpush1.xpose.msra.mxu0 0.0
        %1536 = vmatprep.subr.mxu0 0.0
        %1537 = vmatpush1.xpose.msra.mxu0 0.0
        %1538 = vmatprep.subr.mxu0 0.0
        %1539 = vmatpush1.xpose.msra.mxu0 0.0
        %1540 = vmatprep.subr.mxu0 0.0
        %1541 = vmatpush1.xpose.msra.mxu0 %v1510
        %1542 = vmatprep.subr.mxu0 0.0
        %1543 = vmatpush1.xpose.msra.mxu0 %v1508
        %1544 = vmatprep.subr.mxu0 0.0
        %1545 = vmatpush2.xpose.msra.mxu0 0.0
        %1546 = vmatprep.subr.mxu0 0.0
        %1547 = vmatpush2.xpose.msra.mxu0 0.0
        %1548 = vmatprep.subr.mxu0 0.0
        %1549 = vmatpush2.xpose.msra.mxu0 0.0
        %1550 = vmatprep.subr.mxu0 0.0
        %1551 = vmatpush2.xpose.msra.mxu0 0.0
        %1552 = vmatprep.subr.mxu0 0.0
        %1553 = vmatpush2.xpose.msra.mxu0 0.0
        %1554 = vmatprep.subr.mxu0 0.0
        %1555 = vmatpush2.xpose.msra.mxu0 0.0
        %1556 = vmatprep.subr.mxu0 0.0
        %1557 = vmatpush2.xpose.msra.mxu0 0.0
        %1558 = vmatprep.subr.mxu0 0.0
        %1559 = vmatpush2.xpose.msra.mxu0 0.0
        %1560 = vmatprep.subr.mxu0 0.0
        %1561 = vmatpush2.xpose.msra.mxu0 0.0
        %1562 = vmatprep.subr.mxu0 0.0
        %1563 = vmatpush2.xpose.msra.mxu0 0.0
        %1564 = vmatprep.subr.mxu0 0.0
        %1565 = vmatpush2.xpose.msra.mxu0 0.0
        %1566 = vmatprep.subr.mxu0 0.0
        %1567 = vmatpush2.xpose.msra.mxu0 0.0
        %1568 = vmatprep.subr.mxu0 0.0
        %1569 = vmatpush2.xpose.msra.mxu0 0.0
        %1570 = vmatprep.subr.mxu0 0.0
        %1571 = vmatpush2.xpose.msra.mxu0 0.0
        %1572 = vmatprep.subr.mxu0 0.0
        %1573 = vmatpush2.xpose.msra.mxu0 0.0
        %1574 = vmatprep.subr.mxu0 0.0
        %1575 = vmatpush2.xpose.msra.mxu0 0.0
        %1576 = vmatprep.mubr.f32.mxu0 0.0
        %1577 = vmatmul.mubr.f32.gmra.mxu0 %v1506
        %v1578 = vpop.f32.mrf.mxu0
        %v1579 = vadd.f32 %v1499, %v1578
        %v1580 = vpop.f32.mrf.mxu0
        %1581 = vdwg.mxu0
        %v1582 = vsel %vm1171, %v1579, -inf
        %1583 = vmax.xlane.f32.xlu0 %v1582
        %v1584 = vpop.xlane.xlu0 %1583
        %v1585 = vsub.f32 %v1579, %v1584
        %v1586 = vmul.f32 %v1585, 1.442695
        %v1587 = vpow.pop %v1586
        %v1588 = vsel %vm1171, %v1587, 0.0
        %1589 = vadd.xlane.f32.xlu0 %v1588
        %v1590 = vpop.xlane.xlu0 %1589
        %v1591 = vrcp.pop %v1590
        %v1592 = vmul.f32 %v1587, %v1591
        %1593 = vrot.lane.b32.xlu0 %v610, 80
        %v1594 = vpop.permute.xlu0 %1593
        %1595 = vrot.lane.b32.xlu0 %v611, 80
        %v1596 = vpop.permute.xlu0 %1595
        %v1600 = vsel %vm1171, %v1592, 0
        %1602 = vmatprep.subr.mxu0 0.0
        %1603 = vmatpush1.msra.mxu0 0.0
        %1604 = vmatprep.subr.mxu0 0.0
        %1605 = vmatpush1.msra.mxu0 0.0
        %1606 = vmatprep.subr.mxu0 0.0
        %1607 = vmatpush1.msra.mxu0 0.0
        %1608 = vmatprep.subr.mxu0 0.0
        %1609 = vmatpush1.msra.mxu0 0.0
        %1610 = vmatprep.subr.mxu0 0.0
        %1611 = vmatpush1.msra.mxu0 0.0
        %1612 = vmatprep.subr.mxu0 0.0
        %1613 = vmatpush1.msra.mxu0 0.0
        %1614 = vmatprep.subr.mxu0 0.0
        %1615 = vmatpush1.msra.mxu0 0.0
        %1616 = vmatprep.subr.mxu0 0.0
        %1617 = vmatpush1.msra.mxu0 0.0
        %1618 = vmatprep.subr.mxu0 0.0
        %1619 = vmatpush1.msra.mxu0 0.0
        %1620 = vmatprep.subr.mxu0 0.0
        %1621 = vmatpush1.msra.mxu0 0.0
        %1622 = vmatprep.subr.mxu0 0.0
        %1623 = vmatpush1.msra.mxu0 0.0
        %1624 = vmatprep.subr.mxu0 0.0
        %1625 = vmatpush1.msra.mxu0 0.0
        %1626 = vmatprep.subr.mxu0 0.0
        %1627 = vmatpush1.msra.mxu0 0.0
        %1628 = vmatprep.subr.mxu0 0.0
        %1629 = vmatpush1.msra.mxu0 0.0
        %1630 = vmatprep.subr.mxu0 0.0
        %1631 = vmatpush1.msra.mxu0 %v1596
        %1632 = vmatprep.subr.mxu0 0.0
        %1633 = vmatpush1.msra.mxu0 %v1594
        %1634 = vmatprep.subr.mxu0 0.0
        %1635 = vmatpush2.msra.mxu0 0.0
        %1636 = vmatprep.subr.mxu0 0.0
        %1637 = vmatpush2.msra.mxu0 0.0
        %1638 = vmatprep.subr.mxu0 0.0
        %1639 = vmatpush2.msra.mxu0 0.0
        %1640 = vmatprep.subr.mxu0 0.0
        %1641 = vmatpush2.msra.mxu0 0.0
        %1642 = vmatprep.subr.mxu0 0.0
        %1643 = vmatpush2.msra.mxu0 0.0
        %1644 = vmatprep.subr.mxu0 0.0
        %1645 = vmatpush2.msra.mxu0 0.0
        %1646 = vmatprep.subr.mxu0 0.0
        %1647 = vmatpush2.msra.mxu0 0.0
        %1648 = vmatprep.subr.mxu0 0.0
        %1649 = vmatpush2.msra.mxu0 0.0
        %1650 = vmatprep.subr.mxu0 0.0
        %1651 = vmatpush2.msra.mxu0 0.0
        %1652 = vmatprep.subr.mxu0 0.0
        %1653 = vmatpush2.msra.mxu0 0.0
        %1654 = vmatprep.subr.mxu0 0.0
        %1655 = vmatpush2.msra.mxu0 0.0
        %1656 = vmatprep.subr.mxu0 0.0
        %1657 = vmatpush2.msra.mxu0 0.0
        %1658 = vmatprep.subr.mxu0 0.0
        %1659 = vmatpush2.msra.mxu0 0.0
        %1660 = vmatprep.subr.mxu0 0.0
        %1661 = vmatpush2.msra.mxu0 0.0
        %1662 = vmatprep.subr.mxu0 0.0
        %1663 = vmatpush2.msra.mxu0 0.0
        %1664 = vmatprep.subr.mxu0 0.0
        %1665 = vmatpush2.msra.mxu0 0.0
        %1666 = vmatprep.mubr.f32.mxu0 0.0
        %1667 = vmatmul.mubr.f32.gmra.mxu0 %v1600
        %v1668 = vpop.f32.mrf.mxu0
        %v1669 = vadd.f32 0.0, %v1668
        %v1670 = vpop.f32.mrf.mxu0
        %1671 = vdwg.mxu0
        %1672 = vxpose.xlu0.b32.start [1/16] %v986, 128
        %1673 = vxpose.xlu0.b32.cont [2/16] %v1054, 128
        %1674 = vxpose.xlu0.b32.cont [3/16] 0.0, 128
        %1675 = vxpose.xlu0.b32.cont [4/16] 0.0, 128
        %1676 = vxpose.xlu0.b32.cont [5/16] 0.0, 128
        %1677 = vxpose.xlu0.b32.cont [6/16] 0.0, 128
        %1678 = vxpose.xlu0.b32.cont [7/16] 0.0, 128
        %1679 = vxpose.xlu0.b32.cont [8/16] 0.0, 128
        %1680 = vxpose.xlu0.b32.cont [9/16] 0.0, 128
        %1681 = vxpose.xlu0.b32.cont [10/16] 0.0, 128
        %1682 = vxpose.xlu0.b32.cont [11/16] 0.0, 128
        %1683 = vxpose.xlu0.b32.cont [12/16] 0.0, 128
        %1684 = vxpose.xlu0.b32.cont [13/16] 0.0, 128
        %1685 = vxpose.xlu0.b32.cont [14/16] 0.0, 128
        %1686 = vxpose.xlu0.b32.cont [15/16] 0.0, 128
        %1687 = vxpose.xlu0.b32.end [16/16] 0.0, 128
        %v1688 = vpop.trf.xlu0
        %v1689 = vpop.trf.xlu0
        %v1690 = vpop.trf.xlu0
        %v1691 = vpop.trf.xlu0
        %v1692 = vpop.trf.xlu0
        %v1693 = vpop.trf.xlu0
        %v1694 = vpop.trf.xlu0
        %v1695 = vpop.trf.xlu0
        %v1696 = vpop.trf.xlu0
        %v1697 = vpop.trf.xlu0
        %v1698 = vpop.trf.xlu0
        %v1699 = vpop.trf.xlu0
        %v1700 = vpop.trf.xlu0
        %v1701 = vpop.trf.xlu0
        %v1702 = vpop.trf.xlu0
        %v1703 = vpop.trf.xlu0
        %v1704 = vadd.f32 %v1688, %v1057
        %1705 = vrot.lane.b32.xlu0 %v716, 104
        %v1706 = vpop.permute.xlu0 %1705
        %1707 = vrot.lane.b32.xlu0 %v610, 104
        %v1708 = vpop.permute.xlu0 %1707
        %1709 = vrot.lane.b32.xlu0 %v611, 104
        %v1710 = vpop.permute.xlu0 %1709
        %v1711 = vsel %vm1091, %v1706, 0
        %v1713 = vsel %vm1091, %v1708, 0
        %v1715 = vsel %vm1091, %v1710, 0
        %1717 = vmatprep.subr.mxu0 0.0
        %1718 = vmatpush1.xpose.msra.mxu0 0.0
        %1719 = vmatprep.subr.mxu0 0.0
        %1720 = vmatpush1.xpose.msra.mxu0 0.0
        %1721 = vmatprep.subr.mxu0 0.0
        %1722 = vmatpush1.xpose.msra.mxu0 0.0
        %1723 = vmatprep.subr.mxu0 0.0
        %1724 = vmatpush1.xpose.msra.mxu0 0.0
        %1725 = vmatprep.subr.mxu0 0.0
        %1726 = vmatpush1.xpose.msra.mxu0 0.0
        %1727 = vmatprep.subr.mxu0 0.0
        %1728 = vmatpush1.xpose.msra.mxu0 0.0
        %1729 = vmatprep.subr.mxu0 0.0
        %1730 = vmatpush1.xpose.msra.mxu0 0.0
        %1731 = vmatprep.subr.mxu0 0.0
        %1732 = vmatpush1.xpose.msra.mxu0 0.0
        %1733 = vmatprep.subr.mxu0 0.0
        %1734 = vmatpush1.xpose.msra.mxu0 0.0
        %1735 = vmatprep.subr.mxu0 0.0
        %1736 = vmatpush1.xpose.msra.mxu0 0.0
        %1737 = vmatprep.subr.mxu0 0.0
        %1738 = vmatpush1.xpose.msra.mxu0 0.0
        %1739 = vmatprep.subr.mxu0 0.0
        %1740 = vmatpush1.xpose.msra.mxu0 0.0
        %1741 = vmatprep.subr.mxu0 0.0
        %1742 = vmatpush1.xpose.msra.mxu0 0.0
        %1743 = vmatprep.subr.mxu0 0.0
        %1744 = vmatpush1.xpose.msra.mxu0 0.0
        %1745 = vmatprep.subr.mxu0 0.0
        %1746 = vmatpush1.xpose.msra.mxu0 %v1715
        %1747 = vmatprep.subr.mxu0 0.0
        %1748 = vmatpush1.xpose.msra.mxu0 %v1713
        %1749 = vmatprep.subr.mxu0 0.0
        %1750 = vmatpush2.xpose.msra.mxu0 0.0
        %1751 = vmatprep.subr.mxu0 0.0
        %1752 = vmatpush2.xpose.msra.mxu0 0.0
        %1753 = vmatprep.subr.mxu0 0.0
        %1754 = vmatpush2.xpose.msra.mxu0 0.0
        %1755 = vmatprep.subr.mxu0 0.0
        %1756 = vmatpush2.xpose.msra.mxu0 0.0
        %1757 = vmatprep.subr.mxu0 0.0
        %1758 = vmatpush2.xpose.msra.mxu0 0.0
        %1759 = vmatprep.subr.mxu0 0.0
        %1760 = vmatpush2.xpose.msra.mxu0 0.0
        %1761 = vmatprep.subr.mxu0 0.0
        %1762 = vmatpush2.xpose.msra.mxu0 0.0
        %1763 = vmatprep.subr.mxu0 0.0
        %1764 = vmatpush2.xpose.msra.mxu0 0.0
        %1765 = vmatprep.subr.mxu0 0.0
        %1766 = vmatpush2.xpose.msra.mxu0 0.0
        %1767 = vmatprep.subr.mxu0 0.0
        %1768 = vmatpush2.xpose.msra.mxu0 0.0
        %1769 = vmatprep.subr.mxu0 0.0
        %1770 = vmatpush2.xpose.msra.mxu0 0.0
        %1771 = vmatprep.subr.mxu0 0.0
        %1772 = vmatpush2.xpose.msra.mxu0 0.0
        %1773 = vmatprep.subr.mxu0 0.0
        %1774 = vmatpush2.xpose.msra.mxu0 0.0
        %1775 = vmatprep.subr.mxu0 0.0
        %1776 = vmatpush2.xpose.msra.mxu0 0.0
        %1777 = vmatprep.subr.mxu0 0.0
        %1778 = vmatpush2.xpose.msra.mxu0 0.0
        %1779 = vmatprep.subr.mxu0 0.0
        %1780 = vmatpush2.xpose.msra.mxu0 0.0
        %1781 = vmatprep.mubr.f32.mxu0 0.0
        %1782 = vmatmul.mubr.f32.gmra.mxu0 %v1711
        %v1783 = vpop.f32.mrf.mxu0
        %v1784 = vadd.f32 %v1704, %v1783
        %v1785 = vpop.f32.mrf.mxu0
        %1786 = vdwg.mxu0
        %v1787 = vsel %vm1171, %v1784, -inf
        %1788 = vmax.xlane.f32.xlu0 %v1787
        %v1789 = vpop.xlane.xlu0 %1788
        %v1790 = vsub.f32 %v1784, %v1789
        %v1791 = vmul.f32 %v1790, 1.442695
        %v1792 = vpow.pop %v1791
        %v1793 = vsel %vm1171, %v1792, 0.0
        %1794 = vadd.xlane.f32.xlu0 %v1793
        %v1795 = vpop.xlane.xlu0 %1794
        %v1796 = vrcp.pop %v1795
        %v1797 = vmul.f32 %v1792, %v1796
        %1798 = vrot.lane.b32.xlu0 %v610, 72
        %v1799 = vpop.permute.xlu0 %1798
        %1800 = vrot.lane.b32.xlu0 %v611, 72
        %v1801 = vpop.permute.xlu0 %1800
        %v1805 = vsel %vm1171, %v1797, 0
        %1807 = vmatprep.subr.mxu0 0.0
        %1808 = vmatpush1.msra.mxu0 0.0
        %1809 = vmatprep.subr.mxu0 0.0
        %1810 = vmatpush1.msra.mxu0 0.0
        %1811 = vmatprep.subr.mxu0 0.0
        %1812 = vmatpush1.msra.mxu0 0.0
        %1813 = vmatprep.subr.mxu0 0.0
        %1814 = vmatpush1.msra.mxu0 0.0
        %1815 = vmatprep.subr.mxu0 0.0
        %1816 = vmatpush1.msra.mxu0 0.0
        %1817 = vmatprep.subr.mxu0 0.0
        %1818 = vmatpush1.msra.mxu0 0.0
        %1819 = vmatprep.subr.mxu0 0.0
        %1820 = vmatpush1.msra.mxu0 0.0
        %1821 = vmatprep.subr.mxu0 0.0
        %1822 = vmatpush1.msra.mxu0 0.0
        %1823 = vmatprep.subr.mxu0 0.0
        %1824 = vmatpush1.msra.mxu0 0.0
        %1825 = vmatprep.subr.mxu0 0.0
        %1826 = vmatpush1.msra.mxu0 0.0
        %1827 = vmatprep.subr.mxu0 0.0
        %1828 = vmatpush1.msra.mxu0 0.0
        %1829 = vmatprep.subr.mxu0 0.0
        %1830 = vmatpush1.msra.mxu0 0.0
        %1831 = vmatprep.subr.mxu0 0.0
        %1832 = vmatpush1.msra.mxu0 0.0
        %1833 = vmatprep.subr.mxu0 0.0
        %1834 = vmatpush1.msra.mxu0 0.0
        %1835 = vmatprep.subr.mxu0 0.0
        %1836 = vmatpush1.msra.mxu0 %v1801
        %1837 = vmatprep.subr.mxu0 0.0
        %1838 = vmatpush1.msra.mxu0 %v1799
        %1839 = vmatprep.subr.mxu0 0.0
        %1840 = vmatpush2.msra.mxu0 0.0
        %1841 = vmatprep.subr.mxu0 0.0
        %1842 = vmatpush2.msra.mxu0 0.0
        %1843 = vmatprep.subr.mxu0 0.0
        %1844 = vmatpush2.msra.mxu0 0.0
        %1845 = vmatprep.subr.mxu0 0.0
        %1846 = vmatpush2.msra.mxu0 0.0
        %1847 = vmatprep.subr.mxu0 0.0
        %1848 = vmatpush2.msra.mxu0 0.0
        %1849 = vmatprep.subr.mxu0 0.0
        %1850 = vmatpush2.msra.mxu0 0.0
        %1851 = vmatprep.subr.mxu0 0.0
        %1852 = vmatpush2.msra.mxu0 0.0
        %1853 = vmatprep.subr.mxu0 0.0
        %1854 = vmatpush2.msra.mxu0 0.0
        %1855 = vmatprep.subr.mxu0 0.0
        %1856 = vmatpush2.msra.mxu0 0.0
        %1857 = vmatprep.subr.mxu0 0.0
        %1858 = vmatpush2.msra.mxu0 0.0
        %1859 = vmatprep.subr.mxu0 0.0
        %1860 = vmatpush2.msra.mxu0 0.0
        %1861 = vmatprep.subr.mxu0 0.0
        %1862 = vmatpush2.msra.mxu0 0.0
        %1863 = vmatprep.subr.mxu0 0.0
        %1864 = vmatpush2.msra.mxu0 0.0
        %1865 = vmatprep.subr.mxu0 0.0
        %1866 = vmatpush2.msra.mxu0 0.0
        %1867 = vmatprep.subr.mxu0 0.0
        %1868 = vmatpush2.msra.mxu0 0.0
        %1869 = vmatprep.subr.mxu0 0.0
        %1870 = vmatpush2.msra.mxu0 0.0
        %1871 = vmatprep.mubr.f32.mxu0 0.0
        %1872 = vmatmul.mubr.f32.gmra.mxu0 %v1805
        %v1873 = vpop.f32.mrf.mxu0
        %v1874 = vadd.f32 0.0, %v1873
        %v1875 = vpop.f32.mrf.mxu0
        %1876 = vdwg.mxu0
        %1878 = vrot.lane.b32.xlu0 %v1464, 8
        %v1879 = vpop.permute.xlu0 %1878
        %1882 = vrot.lane.b32.xlu0 %v1669, 16
        %v1883 = vpop.permute.xlu0 %1882
        %1886 = vrot.lane.b32.xlu0 %v1874, 24
        %v1887 = vpop.permute.xlu0 %1886
        %v1889 = vsel %vm1091, %v1259, %v1879
        %v1890 = vsel %vm1171, %v1889, %v1883
        %vm1891 = vcmask 195584
        %v1892 = vsel %vm1891, %v1890, %v1887
        %1894 = vrot.lane.b32.xlu0 %v734, 96
        %v1895 = vpop.permute.xlu0 %1894
        %v1897 = vmul.f32 %v1892, %v1895
        %v1898 = vld [vmem:[%s10] sm:$0xff]
        %v1899 = vld [vmem:[%s10 + $0x8] sm:$0xff]
        %v1900 = vld [vmem:[%s10 + $0x10] sm:$0xff]
        %v1901 = vld [vmem:[%s10 + $0x18] sm:$0xff]
        %v1902 = vld [vmem:[%s11] sm:$0x1]
        %v1904 = vlaneseq
        %v1905 = vshrl.u32 %v1904, 7
        %v1906 = vsub.s32 0, %v1905
        %v1907 = vrot.slane %v1902, %v1906
        %v1910 = vsel %vm613, %v1897, 0
        %1912 = vmatprep.subr.mxu0 0.0
        %1913 = vmatpush1.msra.mxu0 0.0
        %1914 = vmatprep.subr.mxu0 0.0
        %1915 = vmatpush1.msra.mxu0 0.0
        %1916 = vmatprep.subr.mxu0 0.0
        %1917 = vmatpush1.msra.mxu0 0.0
        %1918 = vmatprep.subr.mxu0 0.0
        %1919 = vmatpush1.msra.mxu0 0.0
        %1920 = vmatprep.subr.mxu0 0.0
        %1921 = vmatpush1.msra.mxu0 0.0
        %1922 = vmatprep.subr.mxu0 0.0
        %1923 = vmatpush1.msra.mxu0 0.0
        %1924 = vmatprep.subr.mxu0 0.0
        %1925 = vmatpush1.msra.mxu0 0.0
        %1926 = vmatprep.subr.mxu0 0.0
        %1927 = vmatpush1.msra.mxu0 0.0
        %1928 = vmatprep.subr.mxu0 0.0
        %1929 = vmatpush1.msra.mxu0 0.0
        %1930 = vmatprep.subr.mxu0 0.0
        %1931 = vmatpush1.msra.mxu0 0.0
        %1932 = vmatprep.subr.mxu0 0.0
        %1933 = vmatpush1.msra.mxu0 0.0
        %1934 = vmatprep.subr.mxu0 0.0
        %1935 = vmatpush1.msra.mxu0 0.0
        %1936 = vmatprep.subr.mxu0 0.0
        %1937 = vmatpush1.msra.mxu0 %v1901
        %1938 = vmatprep.subr.mxu0 0.0
        %1939 = vmatpush1.msra.mxu0 %v1900
        %1940 = vmatprep.subr.mxu0 0.0
        %1941 = vmatpush1.msra.mxu0 %v1899
        %1942 = vmatprep.subr.mxu0 0.0
        %1943 = vmatpush1.msra.mxu0 %v1898
        %1944 = vmatprep.subr.mxu0 0.0
        %1945 = vmatpush2.msra.mxu0 0.0
        %1946 = vmatprep.subr.mxu0 0.0
        %1947 = vmatpush2.msra.mxu0 0.0
        %1948 = vmatprep.subr.mxu0 0.0
        %1949 = vmatpush2.msra.mxu0 0.0
        %1950 = vmatprep.subr.mxu0 0.0
        %1951 = vmatpush2.msra.mxu0 0.0
        %1952 = vmatprep.subr.mxu0 0.0
        %1953 = vmatpush2.msra.mxu0 0.0
        %1954 = vmatprep.subr.mxu0 0.0
        %1955 = vmatpush2.msra.mxu0 0.0
        %1956 = vmatprep.subr.mxu0 0.0
        %1957 = vmatpush2.msra.mxu0 0.0
        %1958 = vmatprep.subr.mxu0 0.0
        %1959 = vmatpush2.msra.mxu0 0.0
        %1960 = vmatprep.subr.mxu0 0.0
        %1961 = vmatpush2.msra.mxu0 0.0
        %1962 = vmatprep.subr.mxu0 0.0
        %1963 = vmatpush2.msra.mxu0 0.0
        %1964 = vmatprep.subr.mxu0 0.0
        %1965 = vmatpush2.msra.mxu0 0.0
        %1966 = vmatprep.subr.mxu0 0.0
        %1967 = vmatpush2.msra.mxu0 0.0
        %1968 = vmatprep.subr.mxu0 0.0
        %1969 = vmatpush2.msra.mxu0 0.0
        %1970 = vmatprep.subr.mxu0 0.0
        %1971 = vmatpush2.msra.mxu0 0.0
        %1972 = vmatprep.subr.mxu0 0.0
        %1973 = vmatpush2.msra.mxu0 0.0
        %1974 = vmatprep.subr.mxu0 0.0
        %1975 = vmatpush2.msra.mxu0 0.0
        %1976 = vmatprep.mubr.f32.mxu0 0.0
        %1977 = vmatmul.mubr.f32.gmra.mxu0 %v1910
        %v1978 = vpop.f32.mrf.mxu0
        %v1979 = vadd.f32 %v1907, %v1978
        %v1980 = vpop.f32.mrf.mxu0
        %1981 = vdwg.mxu0
        %v1982 = vadd.f32 %v641, %v1979
        %1983 = vst.msk [vmem:[%s485] sm:$0xff] %vm613, %v1982
        %s1984 = sand.u32 %s326, 1
        %s1985 = scalar_lea.sflag [#allocation4], %s1984
        %s1986 = sand.u32 %s326, 1
        %s1987 = smul.addr %s1986, 8
        %s1988 = scalar_lea.vmem [#allocation3], %s1987
        // Predicated region
        $region73: #{bidirectional_triangle_attention.3} parent=67 // pred_check
          %p1989 = pneg %p336
        $region74: #{bidirectional_triangle_attention.3} parent=67 // pred_check_branch
          %1991 = sbr.rel (%p1989) target = $region76
        $region75: #{bidirectional_triangle_attention.3} parent=67 // pred_region
          %s1993 = ssub.s32 128, 128
          %1994 = vsyncadd %s1985, %s1993
          %s1995 = sadd.s32 %s31, %s30
          %s1996 = smul.addr %s1995, 128
          %s1997 = scalar_lea.hbm %s12, %s1996
          %s1999 = sshll.u32 %s1988, 4
          %s2000 = int_to_ptr.vmem [resolvable:$true] %s1999
          %2002 = dma.vmem_to_hbm [thread:$0]  %s2000, 128, %s1997, %s1985
        $region76: #{bidirectional_triangle_attention.3} parent=67 // pred_fallthru
          _
      $region68: #{bidirectional_triangle_attention.3} parent=5 // pred_fallthru
        _
      %p2003 = scmp.le.s32.totalorder 2, %s21
      // Predicated region
      $region77: #{bidirectional_triangle_attention.3} parent=5 // pred_check
        %p2004 = pneg %p2003
      $region78: #{bidirectional_triangle_attention.3} parent=5 // pred_check_branch
        %2006 = sbr.rel (%p2004) target = $region80
      $region79: #{bidirectional_triangle_attention.3} parent=5 // pred_region
        %s2007 = ssub.s32 %s21, 2
        // Predicated region
        $region81: #{bidirectional_triangle_attention.3} parent=79 // pred_check
          %p2008 = pneg %p342
        $region82: #{bidirectional_triangle_attention.3} parent=79 // pred_check_branch
          %2010 = sbr.rel (%p2008) target = $region84
        $region83: #{bidirectional_triangle_attention.3} parent=79 // pred_region
          %s2011 = sand.u32 %s327, 1
          %s2012 = scalar_lea.sflag [#allocation4], %s2011
          %s2013 = sand.u32 %s327, 1
          %s2014 = smul.addr %s2013, 8
          %s2015 = scalar_lea.vmem [#allocation3], %s2014
          %2016 = dma.done %s2012, 128
        $region84: #{bidirectional_triangle_attention.3} parent=79 // pred_fallthru
          _
      $region80: #{bidirectional_triangle_attention.3} parent=5 // pred_fallthru
        _
    $region6: #{bidirectional_triangle_attention.3} parent=1 // loop_footer
      %s25 = sadd.s32 1, %s21
    $region7: #{bidirectional_triangle_attention.3} parent=1 // loop_footer_branch
      %20 = sbr.rel target = $region3
    $region8: #{bidirectional_triangle_attention.3} parent=1 // loop_exit
      _
    %2017 = vsyncpa [#allocation4], 1
    %s2018 = scalar_lea.sflag [#allocation4], 1
    %2019 = vsyncpa %s2018, 1

</llo_original>
